<compile_context>
chip_gen: v7x
topology: tpu7x:2x2x1
jax: 0.10.0
libtpu: 0.0.40
codegen_flags: <defaults>
</compile_context>

<pallas_src>
import functools

import jax
import jax.numpy as jnp
from jax.experimental import pallas as pl
from jax.experimental.pallas import tpu as pltpu

EMBED_DIM = 256   # nn.Embedding(vocab, 256)
HIDDEN = 156      # nn.LSTM(hidden_size=156)  == input_dim in the module
OUT_DIM = 1       # nn.Linear(156, 1)


def _lstm_kernel(x_ref, wih_ref, whh_ref, b_ref, hout_ref,
                 gi_sc, gf_sc, gg_sc, go_sc, *, seq_len, batch):
    """Full LSTM forward in one invocation (no grid).

    x_ref:   (T*B, E)  time-major flattened embedded tokens
    wih_ref: (4, E, H) per-gate input weights (transposed), gate order i,f,g,o
    whh_ref: (4, H, H) per-gate recurrent weights (transposed)
    b_ref:   (4, 1, H) per-gate bias (b_ih + b_hh)
    hout_ref:(B, H)    final hidden state (lane-dense output)
    g*_sc:   (T*B, H)  VMEM scratch holding the precomputed per-gate inputs
    """
    H = HIDDEN
    x = x_ref[...]                                             # (T*B, E)

    # --- Phase 1: input projection hoisted out of the recurrence -----------
    # One (T*B, E) @ (E, H) MXU matmul per gate, bias folded in once.
    gi_sc[...] = jnp.dot(x, wih_ref[0], preferred_element_type=jnp.float32) + b_ref[0]
    gf_sc[...] = jnp.dot(x, wih_ref[1], preferred_element_type=jnp.float32) + b_ref[1]
    gg_sc[...] = jnp.dot(x, wih_ref[2], preferred_element_type=jnp.float32) + b_ref[2]
    go_sc[...] = jnp.dot(x, wih_ref[3], preferred_element_type=jnp.float32) + b_ref[3]

    # Loop-invariant recurrent weights (per-gate -> no lane slicing per step).
    w_i = whh_ref[0]
    w_f = whh_ref[1]
    w_g = whh_ref[2]
    w_o = whh_ref[3]

    # --- Phase 2: the recurrence (only h @ W_hh^T per gate per step) -------
    def step(t, carry):
        h, c = carry
        rows = pl.ds(pl.multiple_of(t * batch, batch), batch)   # aligned slice
        i_g = jax.nn.sigmoid(gi_sc[rows, :] +
                             jnp.dot(h, w_i, preferred_element_type=jnp.float32))
        f_g = jax.nn.sigmoid(gf_sc[rows, :] +
                             jnp.dot(h, w_f, preferred_element_type=jnp.float32))
        g_g = jnp.tanh(gg_sc[rows, :] +
                       jnp.dot(h, w_g, preferred_element_type=jnp.float32))
        o_g = jax.nn.sigmoid(go_sc[rows, :] +
                             jnp.dot(h, w_o, preferred_element_type=jnp.float32))
        c_new = f_g * c + i_g * g_g
        h_new = o_g * jnp.tanh(c_new)
        return h_new, c_new

    h0 = jnp.zeros((batch, H), jnp.float32)
    c0 = jnp.zeros((batch, H), jnp.float32)
    h_final, _ = jax.lax.fori_loop(0, seq_len, step, (h0, c0), unroll=True)

    hout_ref[...] = h_final                                     # (B, H) lane-dense


@jax.jit
def lstm_classifier_forward(tokens, params):
    """tokens: (B, T) int32. Returns sigmoid probabilities of shape (B, 1)."""
    H, E = HIDDEN, EMBED_DIM

    # Embedding lookup (gather) is plain-JAX glue.
    emb = jnp.take(params["embedding"], tokens, axis=0).astype(jnp.float32)  # (B,T,E)
    B, T, _ = emb.shape
    Bp = max(8, -(-B // 8) * 8)                       # pad batch to sublane multiple

    emb_tm = jnp.transpose(emb, (1, 0, 2))            # (T, B, E) time-major
    emb_tm = jnp.pad(emb_tm, ((0, 0), (0, Bp - B), (0, 0)))
    x_flat = emb_tm.reshape(T * Bp, E)                # (T*Bp, E)

    # Per-gate (i, f, g, o) transposed weight / fused-bias layout.
    wih = jnp.transpose(params["w_ih"].reshape(4, H, E), (0, 2, 1))   # (4, E, H)
    whh = jnp.transpose(params["w_hh"].reshape(4, H, H), (0, 2, 1))   # (4, H, H)
    b = (params["b_ih"] + params["b_hh"]).reshape(4, 1, H)            # (4, 1, H)

    kernel = functools.partial(_lstm_kernel, seq_len=T, batch=Bp)

    h_pad = pl.pallas_call(
        kernel,
        out_shape=jax.ShapeDtypeStruct((Bp, H), jnp.float32),
        in_specs=[
            pl.BlockSpec(memory_space=pltpu.MemorySpace.VMEM),   # x_flat
            pl.BlockSpec(memory_space=pltpu.MemorySpace.VMEM),   # W_ih^T per gate
            pl.BlockSpec(memory_space=pltpu.MemorySpace.VMEM),   # W_hh^T per gate
            pl.BlockSpec(memory_space=pltpu.MemorySpace.VMEM),   # fused bias per gate
        ],
        out_specs=pl.BlockSpec(memory_space=pltpu.MemorySpace.VMEM),
        scratch_shapes=[
            pltpu.VMEM((T * Bp, H), jnp.float32),    # gate-i inputs
            pltpu.VMEM((T * Bp, H), jnp.float32),    # gate-f inputs
            pltpu.VMEM((T * Bp, H), jnp.float32),    # gate-g inputs
            pltpu.VMEM((T * Bp, H), jnp.float32),    # gate-o inputs
        ],
    )(x_flat, wih, whh, b)

    h = h_pad[:B]                                     # drop padded batch rows
    # TODO(synk): Dropout(p=0.2) is identity here (eval-mode semantics);
    # training-mode stochastic dropout is not implemented.
    # Final (H, 1) linear + sigmoid in the wrapper (lane-dense kernel output).
    return jax.nn.sigmoid(h @ params["w_lin"].T + params["b_lin"])


def make_params(vocab_len, key):
    """Deterministic synthetic parameters with PyTorch-compatible shapes."""
    ks = jax.random.split(key, 7)
    H, E = HIDDEN, EMBED_DIM
    scale = 1.0 / jnp.sqrt(jnp.float32(H))
    w_ih = jax.random.uniform(ks[0], (4 * H, E), jnp.float32, -scale, scale)
    w_hh = jax.random.uniform(ks[1], (4 * H, H), jnp.float32, -scale, scale)
    b_ih = jax.random.uniform(ks[2], (4 * H,), jnp.float32, -scale, scale)
    b_hh = jax.random.uniform(ks[3], (4 * H,), jnp.float32, -scale, scale)
    w_lin = jax.random.uniform(ks[4], (OUT_DIM, H), jnp.float32, -scale, scale)
    b_lin = jax.random.uniform(ks[5], (OUT_DIM,), jnp.float32, -scale, scale)
    embedding = jax.random.normal(ks[6], (vocab_len, E), jnp.float32)
    return {
        "embedding": embedding,
        "w_ih": w_ih,        # (4H, E), PyTorch gate order i,f,g,o
        "w_hh": w_hh,        # (4H, H)
        "b_ih": b_ih,        # (4H,)
        "b_hh": b_hh,        # (4H,)
        "w_lin": w_lin,      # (1, H)
        "b_lin": b_lin,      # (1,)
    }


def ref_forward(tokens, params):
    """Pure-JAX reference mirroring nn.Embedding + nn.LSTM + nn.Linear + sigmoid."""
    emb = jnp.take(params["embedding"], tokens, axis=0).astype(jnp.float32)
    B = emb.shape[0]
    H = HIDDEN
    w_ih_t = params["w_ih"].T                     # (E, 4H)
    w_hh_t = params["w_hh"].T                     # (H, 4H)
    b = params["b_ih"] + params["b_hh"]           # (4H,)

    def step(carry, x_t):
        h, c = carry
        gates = x_t @ w_ih_t + h @ w_hh_t + b
        i = jax.nn.sigmoid(gates[:, :H])
        f = jax.nn.sigmoid(gates[:, H:2 * H])
        g = jnp.tanh(gates[:, 2 * H:3 * H])
        o = jax.nn.sigmoid(gates[:, 3 * H:])
        c = f * c + i * g
        h = o * jnp.tanh(c)
        return (h, c), None

    init = (jnp.zeros((B, H), jnp.float32), jnp.zeros((B, H), jnp.float32))
    (h, _), _ = jax.lax.scan(step, init, jnp.transpose(emb, (1, 0, 2)))
    return jax.nn.sigmoid(h @ params["w_lin"].T + params["b_lin"])


if __name__ == "__main__":
    VOCAB = 64
    B, T = 2, 8
    key = jax.random.PRNGKey(0)
    k_tok, k_par = jax.random.split(key)
    tokens = jax.random.randint(k_tok, (B, T), 0, VOCAB, dtype=jnp.int32)
    params = make_params(VOCAB, k_par)

    out = jax.block_until_ready(lstm_classifier_forward(tokens, params))
    ref = jax.block_until_ready(ref_forward(tokens, params))

    assert out.shape == (B, OUT_DIM), out.shape
    assert jnp.allclose(out, ref, atol=1e-5, rtol=1e-5), (out, ref)
    print("KERNEL_OK")
</pallas_src>

<mosaic_0001>
module attributes {stable_mosaic.version = 11 : i64} {
  func.func @_lstm_kernel(%arg0: memref<64x256xf32, #tpu.memory_space<vmem>>, %arg1: memref<4x256x156xf32, #tpu.memory_space<vmem>>, %arg2: memref<4x156x156xf32, #tpu.memory_space<vmem>>, %arg3: memref<4x1x156xf32, #tpu.memory_space<vmem>>, %arg4: memref<8x156xf32, #tpu.memory_space<vmem>>, %arg5: memref<64x156xf32, #tpu.memory_space<vmem>>, %arg6: memref<64x156xf32, #tpu.memory_space<vmem>>, %arg7: memref<64x156xf32, #tpu.memory_space<vmem>>, %arg8: memref<64x156xf32, #tpu.memory_space<vmem>>) attributes {dimension_semantics = [], scalar_prefetch = 0 : i64, scratch_operands = 4 : i64, tpu.core_type = #tpu.core_type<tc>} {
    %c0 = arith.constant 0 : index
    %c0_0 = arith.constant 0 : index
    %0 = vector.load %arg0[%c0, %c0_0] : memref<64x256xf32, #tpu.memory_space<vmem>>, vector<64x256xf32>
    %c0_1 = arith.constant 0 : index
    %c0_2 = arith.constant 0 : index
    %c0_3 = arith.constant 0 : index
    %1 = vector.load %arg1[%c0_1, %c0_2, %c0_3] : memref<4x256x156xf32, #tpu.memory_space<vmem>>, vector<1x256x156xf32>
    %2 = vector.shape_cast %1 : vector<1x256x156xf32> to vector<256x156xf32>
    %cst = arith.constant dense<0.000000e+00> : vector<64x156xf32>
    %3 = tpu.matmul %0, %2, %cst {dimension_numbers = #tpu.dot_dimension_numbers<[1], [0], [0], [1], [0, 0, 1, 1], [], []>} : vector<64x256xf32>, vector<256x156xf32>, vector<64x156xf32> -> vector<64x156xf32>
    %c0_4 = arith.constant 0 : index
    %c0_5 = arith.constant 0 : index
    %c0_6 = arith.constant 0 : index
    %4 = vector.load %arg3[%c0_4, %c0_5, %c0_6] : memref<4x1x156xf32, #tpu.memory_space<vmem>>, vector<1x1x156xf32>
    %5 = vector.shape_cast %4 : vector<1x1x156xf32> to vector<1x156xf32>
    %6 = vector.broadcast %5 : vector<1x156xf32> to vector<64x156xf32>
    %7 = arith.addf %3, %6 : vector<64x156xf32>
    %c0_7 = arith.constant 0 : index
    %c0_8 = arith.constant 0 : index
    %8 = vector.load %arg5[%c0_7, %c0_8] : memref<64x156xf32, #tpu.memory_space<vmem>>, vector<64x156xf32>
    tpu.vector_store %arg5[%c0_7, %c0_8], %7 {strides = array<i32>} : memref<64x156xf32, #tpu.memory_space<vmem>>, vector<64x156xf32>,
    %c1 = arith.constant 1 : index
    %c0_9 = arith.constant 0 : index
    %c0_10 = arith.constant 0 : index
    %9 = vector.load %arg1[%c1, %c0_9, %c0_10] : memref<4x256x156xf32, #tpu.memory_space<vmem>>, vector<1x256x156xf32>
    %10 = vector.shape_cast %9 : vector<1x256x156xf32> to vector<256x156xf32>
    %cst_11 = arith.constant dense<0.000000e+00> : vector<64x156xf32>
    %11 = tpu.matmul %0, %10, %cst_11 {dimension_numbers = #tpu.dot_dimension_numbers<[1], [0], [0], [1], [0, 0, 1, 1], [], []>} : vector<64x256xf32>, vector<256x156xf32>, vector<64x156xf32> -> vector<64x156xf32>
    %c1_12 = arith.constant 1 : index
    %c0_13 = arith.constant 0 : index
    %c0_14 = arith.constant 0 : index
    %12 = vector.load %arg3[%c1_12, %c0_13, %c0_14] : memref<4x1x156xf32, #tpu.memory_space<vmem>>, vector<1x1x156xf32>
    %13 = vector.shape_cast %12 : vector<1x1x156xf32> to vector<1x156xf32>
    %14 = vector.broadcast %13 : vector<1x156xf32> to vector<64x156xf32>
    %15 = arith.addf %11, %14 : vector<64x156xf32>
    %c0_15 = arith.constant 0 : index
    %c0_16 = arith.constant 0 : index
    %16 = vector.load %arg6[%c0_15, %c0_16] : memref<64x156xf32, #tpu.memory_space<vmem>>, vector<64x156xf32>
    tpu.vector_store %arg6[%c0_15, %c0_16], %15 {strides = array<i32>} : memref<64x156xf32, #tpu.memory_space<vmem>>, vector<64x156xf32>,
    %c2 = arith.constant 2 : index
    %c0_17 = arith.constant 0 : index
    %c0_18 = arith.constant 0 : index
    %17 = vector.load %arg1[%c2, %c0_17, %c0_18] : memref<4x256x156xf32, #tpu.memory_space<vmem>>, vector<1x256x156xf32>
    %18 = vector.shape_cast %17 : vector<1x256x156xf32> to vector<256x156xf32>
    %cst_19 = arith.constant dense<0.000000e+00> : vector<64x156xf32>
    %19 = tpu.matmul %0, %18, %cst_19 {dimension_numbers = #tpu.dot_dimension_numbers<[1], [0], [0], [1], [0, 0, 1, 1], [], []>} : vector<64x256xf32>, vector<256x156xf32>, vector<64x156xf32> -> vector<64x156xf32>
    %c2_20 = arith.constant 2 : index
    %c0_21 = arith.constant 0 : index
    %c0_22 = arith.constant 0 : index
    %20 = vector.load %arg3[%c2_20, %c0_21, %c0_22] : memref<4x1x156xf32, #tpu.memory_space<vmem>>, vector<1x1x156xf32>
    %21 = vector.shape_cast %20 : vector<1x1x156xf32> to vector<1x156xf32>
    %22 = vector.broadcast %21 : vector<1x156xf32> to vector<64x156xf32>
    %23 = arith.addf %19, %22 : vector<64x156xf32>
    %c0_23 = arith.constant 0 : index
    %c0_24 = arith.constant 0 : index
    %24 = vector.load %arg7[%c0_23, %c0_24] : memref<64x156xf32, #tpu.memory_space<vmem>>, vector<64x156xf32>
    tpu.vector_store %arg7[%c0_23, %c0_24], %23 {strides = array<i32>} : memref<64x156xf32, #tpu.memory_space<vmem>>, vector<64x156xf32>,
    %c3 = arith.constant 3 : index
    %c0_25 = arith.constant 0 : index
    %c0_26 = arith.constant 0 : index
    %25 = vector.load %arg1[%c3, %c0_25, %c0_26] : memref<4x256x156xf32, #tpu.memory_space<vmem>>, vector<1x256x156xf32>
    %26 = vector.shape_cast %25 : vector<1x256x156xf32> to vector<256x156xf32>
    %cst_27 = arith.constant dense<0.000000e+00> : vector<64x156xf32>
    %27 = tpu.matmul %0, %26, %cst_27 {dimension_numbers = #tpu.dot_dimension_numbers<[1], [0], [0], [1], [0, 0, 1, 1], [], []>} : vector<64x256xf32>, vector<256x156xf32>, vector<64x156xf32> -> vector<64x156xf32>
    %c3_28 = arith.constant 3 : index
    %c0_29 = arith.constant 0 : index
    %c0_30 = arith.constant 0 : index
    %28 = vector.load %arg3[%c3_28, %c0_29, %c0_30] : memref<4x1x156xf32, #tpu.memory_space<vmem>>, vector<1x1x156xf32>
    %29 = vector.shape_cast %28 : vector<1x1x156xf32> to vector<1x156xf32>
    %30 = vector.broadcast %29 : vector<1x156xf32> to vector<64x156xf32>
    %31 = arith.addf %27, %30 : vector<64x156xf32>
    %c0_31 = arith.constant 0 : index
    %c0_32 = arith.constant 0 : index
    %32 = vector.load %arg8[%c0_31, %c0_32] : memref<64x156xf32, #tpu.memory_space<vmem>>, vector<64x156xf32>
    tpu.vector_store %arg8[%c0_31, %c0_32], %31 {strides = array<i32>} : memref<64x156xf32, #tpu.memory_space<vmem>>, vector<64x156xf32>,
    %c0_33 = arith.constant 0 : index
    %c0_34 = arith.constant 0 : index
    %c0_35 = arith.constant 0 : index
    %33 = vector.load %arg2[%c0_33, %c0_34, %c0_35] : memref<4x156x156xf32, #tpu.memory_space<vmem>>, vector<1x156x156xf32>
    %34 = vector.shape_cast %33 : vector<1x156x156xf32> to vector<156x156xf32>
    %c1_36 = arith.constant 1 : index
    %c0_37 = arith.constant 0 : index
    %c0_38 = arith.constant 0 : index
    %35 = vector.load %arg2[%c1_36, %c0_37, %c0_38] : memref<4x156x156xf32, #tpu.memory_space<vmem>>, vector<1x156x156xf32>
    %36 = vector.shape_cast %35 : vector<1x156x156xf32> to vector<156x156xf32>
    %c2_39 = arith.constant 2 : index
    %c0_40 = arith.constant 0 : index
    %c0_41 = arith.constant 0 : index
    %37 = vector.load %arg2[%c2_39, %c0_40, %c0_41] : memref<4x156x156xf32, #tpu.memory_space<vmem>>, vector<1x156x156xf32>
    %38 = vector.shape_cast %37 : vector<1x156x156xf32> to vector<156x156xf32>
    %c3_42 = arith.constant 3 : index
    %c0_43 = arith.constant 0 : index
    %c0_44 = arith.constant 0 : index
    %39 = vector.load %arg2[%c3_42, %c0_43, %c0_44] : memref<4x156x156xf32, #tpu.memory_space<vmem>>, vector<1x156x156xf32>
    %40 = vector.shape_cast %39 : vector<1x156x156xf32> to vector<156x156xf32>
    %cst_45 = arith.constant 0.000000e+00 : f32
    %41 = vector.broadcast %cst_45 : f32 to vector<8x156xf32>
    %cst_46 = arith.constant 0.000000e+00 : f32
    %42 = vector.broadcast %cst_46 : f32 to vector<8x156xf32>
    %c0_i32 = arith.constant 0 : i32
    %c8_i32 = arith.constant 8 : i32
    %43 = arith.muli %c0_i32, %c8_i32 : i32
    %44 = tpu.assume_multiple %43, 8 : i32
    %45 = arith.index_cast %44 : i32 to index
    %c0_47 = arith.constant 0 : index
    %46 = vector.load %arg5[%45, %c0_47] : memref<64x156xf32, #tpu.memory_space<vmem>>, vector<8x156xf32>
    %cst_48 = arith.constant dense<0.000000e+00> : vector<8x156xf32>
    %47 = tpu.matmul %41, %34, %cst_48 {dimension_numbers = #tpu.dot_dimension_numbers<[1], [0], [0], [1], [0, 0, 1, 1], [], []>} : vector<8x156xf32>, vector<156x156xf32>, vector<8x156xf32> -> vector<8x156xf32>
    %48 = arith.addf %46, %47 : vector<8x156xf32>
    %49 = arith.negf %48 : vector<8x156xf32>
    %50 = math.exp %49 : vector<8x156xf32>
    %cst_49 = arith.constant 1.000000e+00 : f32
    %51 = vector.broadcast %cst_49 : f32 to vector<8x156xf32>
    %52 = arith.addf %51, %50 : vector<8x156xf32>
    %53 = arith.divf %51, %52 : vector<8x156xf32>
    %54 = arith.index_cast %44 : i32 to index
    %c0_50 = arith.constant 0 : index
    %55 = vector.load %arg6[%54, %c0_50] : memref<64x156xf32, #tpu.memory_space<vmem>>, vector<8x156xf32>
    %cst_51 = arith.constant dense<0.000000e+00> : vector<8x156xf32>
    %56 = tpu.matmul %41, %36, %cst_51 {dimension_numbers = #tpu.dot_dimension_numbers<[1], [0], [0], [1], [0, 0, 1, 1], [], []>} : vector<8x156xf32>, vector<156x156xf32>, vector<8x156xf32> -> vector<8x156xf32>
    %57 = arith.addf %55, %56 : vector<8x156xf32>
    %58 = arith.negf %57 : vector<8x156xf32>
    %59 = math.exp %58 : vector<8x156xf32>
    %cst_52 = arith.constant 1.000000e+00 : f32
    %60 = vector.broadcast %cst_52 : f32 to vector<8x156xf32>
    %61 = arith.addf %60, %59 : vector<8x156xf32>
    %62 = arith.divf %60, %61 : vector<8x156xf32>
    %63 = arith.index_cast %44 : i32 to index
    %c0_53 = arith.constant 0 : index
    %64 = vector.load %arg7[%63, %c0_53] : memref<64x156xf32, #tpu.memory_space<vmem>>, vector<8x156xf32>
    %cst_54 = arith.constant dense<0.000000e+00> : vector<8x156xf32>
    %65 = tpu.matmul %41, %38, %cst_54 {dimension_numbers = #tpu.dot_dimension_numbers<[1], [0], [0], [1], [0, 0, 1, 1], [], []>} : vector<8x156xf32>, vector<156x156xf32>, vector<8x156xf32> -> vector<8x156xf32>
    %66 = arith.addf %64, %65 : vector<8x156xf32>
    %67 = math.tanh %66 : vector<8x156xf32>
    %68 = arith.index_cast %44 : i32 to index
    %c0_55 = arith.constant 0 : index
    %69 = vector.load %arg8[%68, %c0_55] : memref<64x156xf32, #tpu.memory_space<vmem>>, vector<8x156xf32>
    %cst_56 = arith.constant dense<0.000000e+00> : vector<8x156xf32>
    %70 = tpu.matmul %41, %40, %cst_56 {dimension_numbers = #tpu.dot_dimension_numbers<[1], [0], [0], [1], [0, 0, 1, 1], [], []>} : vector<8x156xf32>, vector<156x156xf32>, vector<8x156xf32> -> vector<8x156xf32>
    %71 = arith.addf %69, %70 : vector<8x156xf32>
    %72 = arith.negf %71 : vector<8x156xf32>
    %73 = math.exp %72 : vector<8x156xf32>
    %cst_57 = arith.constant 1.000000e+00 : f32
    %74 = vector.broadcast %cst_57 : f32 to vector<8x156xf32>
    %75 = arith.addf %74, %73 : vector<8x156xf32>
    %76 = arith.divf %74, %75 : vector<8x156xf32>
    %77 = arith.mulf %62, %42 : vector<8x156xf32>
    %78 = arith.mulf %53, %67 : vector<8x156xf32>
    %79 = arith.addf %77, %78 : vector<8x156xf32>
    %80 = math.tanh %79 : vector<8x156xf32>
    %81 = arith.mulf %76, %80 : vector<8x156xf32>
    %c1_i32 = arith.constant 1 : i32
    %c8_i32_58 = arith.constant 8 : i32
    %82 = arith.muli %c1_i32, %c8_i32_58 : i32
    %83 = tpu.assume_multiple %82, 8 : i32
    %84 = arith.index_cast %83 : i32 to index
    %c0_59 = arith.constant 0 : index
    %85 = vector.load %arg5[%84, %c0_59] : memref<64x156xf32, #tpu.memory_space<vmem>>, vector<8x156xf32>
    %cst_60 = arith.constant dense<0.000000e+00> : vector<8x156xf32>
    %86 = tpu.matmul %81, %34, %cst_60 {dimension_numbers = #tpu.dot_dimension_numbers<[1], [0], [0], [1], [0, 0, 1, 1], [], []>} : vector<8x156xf32>, vector<156x156xf32>, vector<8x156xf32> -> vector<8x156xf32>
    %87 = arith.addf %85, %86 : vector<8x156xf32>
    %88 = arith.negf %87 : vector<8x156xf32>
    %89 = math.exp %88 : vector<8x156xf32>
    %cst_61 = arith.constant 1.000000e+00 : f32
    %90 = vector.broadcast %cst_61 : f32 to vector<8x156xf32>
    %91 = arith.addf %90, %89 : vector<8x156xf32>
    %92 = arith.divf %90, %91 : vector<8x156xf32>
    %93 = arith.index_cast %83 : i32 to index
    %c0_62 = arith.constant 0 : index
    %94 = vector.load %arg6[%93, %c0_62] : memref<64x156xf32, #tpu.memory_space<vmem>>, vector<8x156xf32>
    %cst_63 = arith.constant dense<0.000000e+00> : vector<8x156xf32>
    %95 = tpu.matmul %81, %36, %cst_63 {dimension_numbers = #tpu.dot_dimension_numbers<[1], [0], [0], [1], [0, 0, 1, 1], [], []>} : vector<8x156xf32>, vector<156x156xf32>, vector<8x156xf32> -> vector<8x156xf32>
    %96 = arith.addf %94, %95 : vector<8x156xf32>
    %97 = arith.negf %96 : vector<8x156xf32>
    %98 = math.exp %97 : vector<8x156xf32>
    %cst_64 = arith.constant 1.000000e+00 : f32
    %99 = vector.broadcast %cst_64 : f32 to vector<8x156xf32>
    %100 = arith.addf %99, %98 : vector<8x156xf32>
    %101 = arith.divf %99, %100 : vector<8x156xf32>
    %102 = arith.index_cast %83 : i32 to index
    %c0_65 = arith.constant 0 : index
    %103 = vector.load %arg7[%102, %c0_65] : memref<64x156xf32, #tpu.memory_space<vmem>>, vector<8x156xf32>
    %cst_66 = arith.constant dense<0.000000e+00> : vector<8x156xf32>
    %104 = tpu.matmul %81, %38, %cst_66 {dimension_numbers = #tpu.dot_dimension_numbers<[1], [0], [0], [1], [0, 0, 1, 1], [], []>} : vector<8x156xf32>, vector<156x156xf32>, vector<8x156xf32> -> vector<8x156xf32>
    %105 = arith.addf %103, %104 : vector<8x156xf32>
    %106 = math.tanh %105 : vector<8x156xf32>
    %107 = arith.index_cast %83 : i32 to index
    %c0_67 = arith.constant 0 : index
    %108 = vector.load %arg8[%107, %c0_67] : memref<64x156xf32, #tpu.memory_space<vmem>>, vector<8x156xf32>
    %cst_68 = arith.constant dense<0.000000e+00> : vector<8x156xf32>
    %109 = tpu.matmul %81, %40, %cst_68 {dimension_numbers = #tpu.dot_dimension_numbers<[1], [0], [0], [1], [0, 0, 1, 1], [], []>} : vector<8x156xf32>, vector<156x156xf32>, vector<8x156xf32> -> vector<8x156xf32>
    %110 = arith.addf %108, %109 : vector<8x156xf32>
    %111 = arith.negf %110 : vector<8x156xf32>
    %112 = math.exp %111 : vector<8x156xf32>
    %cst_69 = arith.constant 1.000000e+00 : f32
    %113 = vector.broadcast %cst_69 : f32 to vector<8x156xf32>
    %114 = arith.addf %113, %112 : vector<8x156xf32>
    %115 = arith.divf %113, %114 : vector<8x156xf32>
    %116 = arith.mulf %101, %79 : vector<8x156xf32>
    %117 = arith.mulf %92, %106 : vector<8x156xf32>
    %118 = arith.addf %116, %117 : vector<8x156xf32>
    %119 = math.tanh %118 : vector<8x156xf32>
    %120 = arith.mulf %115, %119 : vector<8x156xf32>
    %c2_i32 = arith.constant 2 : i32
    %c8_i32_70 = arith.constant 8 : i32
    %121 = arith.muli %c2_i32, %c8_i32_70 : i32
    %122 = tpu.assume_multiple %121, 8 : i32
    %123 = arith.index_cast %122 : i32 to index
    %c0_71 = arith.constant 0 : index
    %124 = vector.load %arg5[%123, %c0_71] : memref<64x156xf32, #tpu.memory_space<vmem>>, vector<8x156xf32>
    %cst_72 = arith.constant dense<0.000000e+00> : vector<8x156xf32>
    %125 = tpu.matmul %120, %34, %cst_72 {dimension_numbers = #tpu.dot_dimension_numbers<[1], [0], [0], [1], [0, 0, 1, 1], [], []>} : vector<8x156xf32>, vector<156x156xf32>, vector<8x156xf32> -> vector<8x156xf32>
    %126 = arith.addf %124, %125 : vector<8x156xf32>
    %127 = arith.negf %126 : vector<8x156xf32>
    %128 = math.exp %127 : vector<8x156xf32>
    %cst_73 = arith.constant 1.000000e+00 : f32
    %129 = vector.broadcast %cst_73 : f32 to vector<8x156xf32>
    %130 = arith.addf %129, %128 : vector<8x156xf32>
    %131 = arith.divf %129, %130 : vector<8x156xf32>
    %132 = arith.index_cast %122 : i32 to index
    %c0_74 = arith.constant 0 : index
    %133 = vector.load %arg6[%132, %c0_74] : memref<64x156xf32, #tpu.memory_space<vmem>>, vector<8x156xf32>
    %cst_75 = arith.constant dense<0.000000e+00> : vector<8x156xf32>
    %134 = tpu.matmul %120, %36, %cst_75 {dimension_numbers = #tpu.dot_dimension_numbers<[1], [0], [0], [1], [0, 0, 1, 1], [], []>} : vector<8x156xf32>, vector<156x156xf32>, vector<8x156xf32> -> vector<8x156xf32>
    %135 = arith.addf %133, %134 : vector<8x156xf32>
    %136 = arith.negf %135 : vector<8x156xf32>
    %137 = math.exp %136 : vector<8x156xf32>
    %cst_76 = arith.constant 1.000000e+00 : f32
    %138 = vector.broadcast %cst_76 : f32 to vector<8x156xf32>
    %139 = arith.addf %138, %137 : vector<8x156xf32>
    %140 = arith.divf %138, %139 : vector<8x156xf32>
    %141 = arith.index_cast %122 : i32 to index
    %c0_77 = arith.constant 0 : index
    %142 = vector.load %arg7[%141, %c0_77] : memref<64x156xf32, #tpu.memory_space<vmem>>, vector<8x156xf32>
    %cst_78 = arith.constant dense<0.000000e+00> : vector<8x156xf32>
    %143 = tpu.matmul %120, %38, %cst_78 {dimension_numbers = #tpu.dot_dimension_numbers<[1], [0], [0], [1], [0, 0, 1, 1], [], []>} : vector<8x156xf32>, vector<156x156xf32>, vector<8x156xf32> -> vector<8x156xf32>
    %144 = arith.addf %142, %143 : vector<8x156xf32>
    %145 = math.tanh %144 : vector<8x156xf32>
    %146 = arith.index_cast %122 : i32 to index
    %c0_79 = arith.constant 0 : index
    %147 = vector.load %arg8[%146, %c0_79] : memref<64x156xf32, #tpu.memory_space<vmem>>, vector<8x156xf32>
    %cst_80 = arith.constant dense<0.000000e+00> : vector<8x156xf32>
    %148 = tpu.matmul %120, %40, %cst_80 {dimension_numbers = #tpu.dot_dimension_numbers<[1], [0], [0], [1], [0, 0, 1, 1], [], []>} : vector<8x156xf32>, vector<156x156xf32>, vector<8x156xf32> -> vector<8x156xf32>
    %149 = arith.addf %147, %148 : vector<8x156xf32>
    %150 = arith.negf %149 : vector<8x156xf32>
    %151 = math.exp %150 : vector<8x156xf32>
    %cst_81 = arith.constant 1.000000e+00 : f32
    %152 = vector.broadcast %cst_81 : f32 to vector<8x156xf32>
    %153 = arith.addf %152, %151 : vector<8x156xf32>
    %154 = arith.divf %152, %153 : vector<8x156xf32>
    %155 = arith.mulf %140, %118 : vector<8x156xf32>
    %156 = arith.mulf %131, %145 : vector<8x156xf32>
    %157 = arith.addf %155, %156 : vector<8x156xf32>
    %158 = math.tanh %157 : vector<8x156xf32>
    %159 = arith.mulf %154, %158 : vector<8x156xf32>
    %c3_i32 = arith.constant 3 : i32
    %c8_i32_82 = arith.constant 8 : i32
    %160 = arith.muli %c3_i32, %c8_i32_82 : i32
    %161 = tpu.assume_multiple %160, 8 : i32
    %162 = arith.index_cast %161 : i32 to index
    %c0_83 = arith.constant 0 : index
    %163 = vector.load %arg5[%162, %c0_83] : memref<64x156xf32, #tpu.memory_space<vmem>>, vector<8x156xf32>
    %cst_84 = arith.constant dense<0.000000e+00> : vector<8x156xf32>
    %164 = tpu.matmul %159, %34, %cst_84 {dimension_numbers = #tpu.dot_dimension_numbers<[1], [0], [0], [1], [0, 0, 1, 1], [], []>} : vector<8x156xf32>, vector<156x156xf32>, vector<8x156xf32> -> vector<8x156xf32>
    %165 = arith.addf %163, %164 : vector<8x156xf32>
    %166 = arith.negf %165 : vector<8x156xf32>
    %167 = math.exp %166 : vector<8x156xf32>
    %cst_85 = arith.constant 1.000000e+00 : f32
    %168 = vector.broadcast %cst_85 : f32 to vector<8x156xf32>
    %169 = arith.addf %168, %167 : vector<8x156xf32>
    %170 = arith.divf %168, %169 : vector<8x156xf32>
    %171 = arith.index_cast %161 : i32 to index
    %c0_86 = arith.constant 0 : index
    %172 = vector.load %arg6[%171, %c0_86] : memref<64x156xf32, #tpu.memory_space<vmem>>, vector<8x156xf32>
    %cst_87 = arith.constant dense<0.000000e+00> : vector<8x156xf32>
    %173 = tpu.matmul %159, %36, %cst_87 {dimension_numbers = #tpu.dot_dimension_numbers<[1], [0], [0], [1], [0, 0, 1, 1], [], []>} : vector<8x156xf32>, vector<156x156xf32>, vector<8x156xf32> -> vector<8x156xf32>
    %174 = arith.addf %172, %173 : vector<8x156xf32>
    %175 = arith.negf %174 : vector<8x156xf32>
    %176 = math.exp %175 : vector<8x156xf32>
    %cst_88 = arith.constant 1.000000e+00 : f32
    %177 = vector.broadcast %cst_88 : f32 to vector<8x156xf32>
    %178 = arith.addf %177, %176 : vector<8x156xf32>
    %179 = arith.divf %177, %178 : vector<8x156xf32>
    %180 = arith.index_cast %161 : i32 to index
    %c0_89 = arith.constant 0 : index
    %181 = vector.load %arg7[%180, %c0_89] : memref<64x156xf32, #tpu.memory_space<vmem>>, vector<8x156xf32>
    %cst_90 = arith.constant dense<0.000000e+00> : vector<8x156xf32>
    %182 = tpu.matmul %159, %38, %cst_90 {dimension_numbers = #tpu.dot_dimension_numbers<[1], [0], [0], [1], [0, 0, 1, 1], [], []>} : vector<8x156xf32>, vector<156x156xf32>, vector<8x156xf32> -> vector<8x156xf32>
    %183 = arith.addf %181, %182 : vector<8x156xf32>
    %184 = math.tanh %183 : vector<8x156xf32>
    %185 = arith.index_cast %161 : i32 to index
    %c0_91 = arith.constant 0 : index
    %186 = vector.load %arg8[%185, %c0_91] : memref<64x156xf32, #tpu.memory_space<vmem>>, vector<8x156xf32>
    %cst_92 = arith.constant dense<0.000000e+00> : vector<8x156xf32>
    %187 = tpu.matmul %159, %40, %cst_92 {dimension_numbers = #tpu.dot_dimension_numbers<[1], [0], [0], [1], [0, 0, 1, 1], [], []>} : vector<8x156xf32>, vector<156x156xf32>, vector<8x156xf32> -> vector<8x156xf32>
    %188 = arith.addf %186, %187 : vector<8x156xf32>
    %189 = arith.negf %188 : vector<8x156xf32>
    %190 = math.exp %189 : vector<8x156xf32>
    %cst_93 = arith.constant 1.000000e+00 : f32
    %191 = vector.broadcast %cst_93 : f32 to vector<8x156xf32>
    %192 = arith.addf %191, %190 : vector<8x156xf32>
    %193 = arith.divf %191, %192 : vector<8x156xf32>
    %194 = arith.mulf %179, %157 : vector<8x156xf32>
    %195 = arith.mulf %170, %184 : vector<8x156xf32>
    %196 = arith.addf %194, %195 : vector<8x156xf32>
    %197 = math.tanh %196 : vector<8x156xf32>
    %198 = arith.mulf %193, %197 : vector<8x156xf32>
    %c4_i32 = arith.constant 4 : i32
    %c8_i32_94 = arith.constant 8 : i32
    %199 = arith.muli %c4_i32, %c8_i32_94 : i32
    %200 = tpu.assume_multiple %199, 8 : i32
    %201 = arith.index_cast %200 : i32 to index
    %c0_95 = arith.constant 0 : index
    %202 = vector.load %arg5[%201, %c0_95] : memref<64x156xf32, #tpu.memory_space<vmem>>, vector<8x156xf32>
    %cst_96 = arith.constant dense<0.000000e+00> : vector<8x156xf32>
    %203 = tpu.matmul %198, %34, %cst_96 {dimension_numbers = #tpu.dot_dimension_numbers<[1], [0], [0], [1], [0, 0, 1, 1], [], []>} : vector<8x156xf32>, vector<156x156xf32>, vector<8x156xf32> -> vector<8x156xf32>
    %204 = arith.addf %202, %203 : vector<8x156xf32>
    %205 = arith.negf %204 : vector<8x156xf32>
    %206 = math.exp %205 : vector<8x156xf32>
    %cst_97 = arith.constant 1.000000e+00 : f32
    %207 = vector.broadcast %cst_97 : f32 to vector<8x156xf32>
    %208 = arith.addf %207, %206 : vector<8x156xf32>
    %209 = arith.divf %207, %208 : vector<8x156xf32>
    %210 = arith.index_cast %200 : i32 to index
    %c0_98 = arith.constant 0 : index
    %211 = vector.load %arg6[%210, %c0_98] : memref<64x156xf32, #tpu.memory_space<vmem>>, vector<8x156xf32>
    %cst_99 = arith.constant dense<0.000000e+00> : vector<8x156xf32>
    %212 = tpu.matmul %198, %36, %cst_99 {dimension_numbers = #tpu.dot_dimension_numbers<[1], [0], [0], [1], [0, 0, 1, 1], [], []>} : vector<8x156xf32>, vector<156x156xf32>, vector<8x156xf32> -> vector<8x156xf32>
    %213 = arith.addf %211, %212 : vector<8x156xf32>
    %214 = arith.negf %213 : vector<8x156xf32>
    %215 = math.exp %214 : vector<8x156xf32>
    %cst_100 = arith.constant 1.000000e+00 : f32
    %216 = vector.broadcast %cst_100 : f32 to vector<8x156xf32>
    %217 = arith.addf %216, %215 : vector<8x156xf32>
    %218 = arith.divf %216, %217 : vector<8x156xf32>
    %219 = arith.index_cast %200 : i32 to index
    %c0_101 = arith.constant 0 : index
    %220 = vector.load %arg7[%219, %c0_101] : memref<64x156xf32, #tpu.memory_space<vmem>>, vector<8x156xf32>
    %cst_102 = arith.constant dense<0.000000e+00> : vector<8x156xf32>
    %221 = tpu.matmul %198, %38, %cst_102 {dimension_numbers = #tpu.dot_dimension_numbers<[1], [0], [0], [1], [0, 0, 1, 1], [], []>} : vector<8x156xf32>, vector<156x156xf32>, vector<8x156xf32> -> vector<8x156xf32>
    %222 = arith.addf %220, %221 : vector<8x156xf32>
    %223 = math.tanh %222 : vector<8x156xf32>
    %224 = arith.index_cast %200 : i32 to index
    %c0_103 = arith.constant 0 : index
    %225 = vector.load %arg8[%224, %c0_103] : memref<64x156xf32, #tpu.memory_space<vmem>>, vector<8x156xf32>
    %cst_104 = arith.constant dense<0.000000e+00> : vector<8x156xf32>
    %226 = tpu.matmul %198, %40, %cst_104 {dimension_numbers = #tpu.dot_dimension_numbers<[1], [0], [0], [1], [0, 0, 1, 1], [], []>} : vector<8x156xf32>, vector<156x156xf32>, vector<8x156xf32> -> vector<8x156xf32>
    %227 = arith.addf %225, %226 : vector<8x156xf32>
    %228 = arith.negf %227 : vector<8x156xf32>
    %229 = math.exp %228 : vector<8x156xf32>
    %cst_105 = arith.constant 1.000000e+00 : f32
    %230 = vector.broadcast %cst_105 : f32 to vector<8x156xf32>
    %231 = arith.addf %230, %229 : vector<8x156xf32>
    %232 = arith.divf %230, %231 : vector<8x156xf32>
    %233 = arith.mulf %218, %196 : vector<8x156xf32>
    %234 = arith.mulf %209, %223 : vector<8x156xf32>
    %235 = arith.addf %233, %234 : vector<8x156xf32>
    %236 = math.tanh %235 : vector<8x156xf32>
    %237 = arith.mulf %232, %236 : vector<8x156xf32>
    %c5_i32 = arith.constant 5 : i32
    %c8_i32_106 = arith.constant 8 : i32
    %238 = arith.muli %c5_i32, %c8_i32_106 : i32
    %239 = tpu.assume_multiple %238, 8 : i32
    %240 = arith.index_cast %239 : i32 to index
    %c0_107 = arith.constant 0 : index
    %241 = vector.load %arg5[%240, %c0_107] : memref<64x156xf32, #tpu.memory_space<vmem>>, vector<8x156xf32>
    %cst_108 = arith.constant dense<0.000000e+00> : vector<8x156xf32>
    %242 = tpu.matmul %237, %34, %cst_108 {dimension_numbers = #tpu.dot_dimension_numbers<[1], [0], [0], [1], [0, 0, 1, 1], [], []>} : vector<8x156xf32>, vector<156x156xf32>, vector<8x156xf32> -> vector<8x156xf32>
    %243 = arith.addf %241, %242 : vector<8x156xf32>
    %244 = arith.negf %243 : vector<8x156xf32>
    %245 = math.exp %244 : vector<8x156xf32>
    %cst_109 = arith.constant 1.000000e+00 : f32
    %246 = vector.broadcast %cst_109 : f32 to vector<8x156xf32>
    %247 = arith.addf %246, %245 : vector<8x156xf32>
    %248 = arith.divf %246, %247 : vector<8x156xf32>
    %249 = arith.index_cast %239 : i32 to index
    %c0_110 = arith.constant 0 : index
    %250 = vector.load %arg6[%249, %c0_110] : memref<64x156xf32, #tpu.memory_space<vmem>>, vector<8x156xf32>
    %cst_111 = arith.constant dense<0.000000e+00> : vector<8x156xf32>
    %251 = tpu.matmul %237, %36, %cst_111 {dimension_numbers = #tpu.dot_dimension_numbers<[1], [0], [0], [1], [0, 0, 1, 1], [], []>} : vector<8x156xf32>, vector<156x156xf32>, vector<8x156xf32> -> vector<8x156xf32>
    %252 = arith.addf %250, %251 : vector<8x156xf32>
    %253 = arith.negf %252 : vector<8x156xf32>
    %254 = math.exp %253 : vector<8x156xf32>
    %cst_112 = arith.constant 1.000000e+00 : f32
    %255 = vector.broadcast %cst_112 : f32 to vector<8x156xf32>
    %256 = arith.addf %255, %254 : vector<8x156xf32>
    %257 = arith.divf %255, %256 : vector<8x156xf32>
    %258 = arith.index_cast %239 : i32 to index
    %c0_113 = arith.constant 0 : index
    %259 = vector.load %arg7[%258, %c0_113] : memref<64x156xf32, #tpu.memory_space<vmem>>, vector<8x156xf32>
    %cst_114 = arith.constant dense<0.000000e+00> : vector<8x156xf32>
    %260 = tpu.matmul %237, %38, %cst_114 {dimension_numbers = #tpu.dot_dimension_numbers<[1], [0], [0], [1], [0, 0, 1, 1], [], []>} : vector<8x156xf32>, vector<156x156xf32>, vector<8x156xf32> -> vector<8x156xf32>
    %261 = arith.addf %259, %260 : vector<8x156xf32>
    %262 = math.tanh %261 : vector<8x156xf32>
    %263 = arith.index_cast %239 : i32 to index
    %c0_115 = arith.constant 0 : index
    %264 = vector.load %arg8[%263, %c0_115] : memref<64x156xf32, #tpu.memory_space<vmem>>, vector<8x156xf32>
    %cst_116 = arith.constant dense<0.000000e+00> : vector<8x156xf32>
    %265 = tpu.matmul %237, %40, %cst_116 {dimension_numbers = #tpu.dot_dimension_numbers<[1], [0], [0], [1], [0, 0, 1, 1], [], []>} : vector<8x156xf32>, vector<156x156xf32>, vector<8x156xf32> -> vector<8x156xf32>
    %266 = arith.addf %264, %265 : vector<8x156xf32>
    %267 = arith.negf %266 : vector<8x156xf32>
    %268 = math.exp %267 : vector<8x156xf32>
    %cst_117 = arith.constant 1.000000e+00 : f32
    %269 = vector.broadcast %cst_117 : f32 to vector<8x156xf32>
    %270 = arith.addf %269, %268 : vector<8x156xf32>
    %271 = arith.divf %269, %270 : vector<8x156xf32>
    %272 = arith.mulf %257, %235 : vector<8x156xf32>
    %273 = arith.mulf %248, %262 : vector<8x156xf32>
    %274 = arith.addf %272, %273 : vector<8x156xf32>
    %275 = math.tanh %274 : vector<8x156xf32>
    %276 = arith.mulf %271, %275 : vector<8x156xf32>
    %c6_i32 = arith.constant 6 : i32
    %c8_i32_118 = arith.constant 8 : i32
    %277 = arith.muli %c6_i32, %c8_i32_118 : i32
    %278 = tpu.assume_multiple %277, 8 : i32
    %279 = arith.index_cast %278 : i32 to index
    %c0_119 = arith.constant 0 : index
    %280 = vector.load %arg5[%279, %c0_119] : memref<64x156xf32, #tpu.memory_space<vmem>>, vector<8x156xf32>
    %cst_120 = arith.constant dense<0.000000e+00> : vector<8x156xf32>
    %281 = tpu.matmul %276, %34, %cst_120 {dimension_numbers = #tpu.dot_dimension_numbers<[1], [0], [0], [1], [0, 0, 1, 1], [], []>} : vector<8x156xf32>, vector<156x156xf32>, vector<8x156xf32> -> vector<8x156xf32>
    %282 = arith.addf %280, %281 : vector<8x156xf32>
    %283 = arith.negf %282 : vector<8x156xf32>
    %284 = math.exp %283 : vector<8x156xf32>
    %cst_121 = arith.constant 1.000000e+00 : f32
    %285 = vector.broadcast %cst_121 : f32 to vector<8x156xf32>
    %286 = arith.addf %285, %284 : vector<8x156xf32>
    %287 = arith.divf %285, %286 : vector<8x156xf32>
    %288 = arith.index_cast %278 : i32 to index
    %c0_122 = arith.constant 0 : index
    %289 = vector.load %arg6[%288, %c0_122] : memref<64x156xf32, #tpu.memory_space<vmem>>, vector<8x156xf32>
    %cst_123 = arith.constant dense<0.000000e+00> : vector<8x156xf32>
    %290 = tpu.matmul %276, %36, %cst_123 {dimension_numbers = #tpu.dot_dimension_numbers<[1], [0], [0], [1], [0, 0, 1, 1], [], []>} : vector<8x156xf32>, vector<156x156xf32>, vector<8x156xf32> -> vector<8x156xf32>
    %291 = arith.addf %289, %290 : vector<8x156xf32>
    %292 = arith.negf %291 : vector<8x156xf32>
    %293 = math.exp %292 : vector<8x156xf32>
    %cst_124 = arith.constant 1.000000e+00 : f32
    %294 = vector.broadcast %cst_124 : f32 to vector<8x156xf32>
    %295 = arith.addf %294, %293 : vector<8x156xf32>
    %296 = arith.divf %294, %295 : vector<8x156xf32>
    %297 = arith.index_cast %278 : i32 to index
    %c0_125 = arith.constant 0 : index
    %298 = vector.load %arg7[%297, %c0_125] : memref<64x156xf32, #tpu.memory_space<vmem>>, vector<8x156xf32>
    %cst_126 = arith.constant dense<0.000000e+00> : vector<8x156xf32>
    %299 = tpu.matmul %276, %38, %cst_126 {dimension_numbers = #tpu.dot_dimension_numbers<[1], [0], [0], [1], [0, 0, 1, 1], [], []>} : vector<8x156xf32>, vector<156x156xf32>, vector<8x156xf32> -> vector<8x156xf32>
    %300 = arith.addf %298, %299 : vector<8x156xf32>
    %301 = math.tanh %300 : vector<8x156xf32>
    %302 = arith.index_cast %278 : i32 to index
    %c0_127 = arith.constant 0 : index
    %303 = vector.load %arg8[%302, %c0_127] : memref<64x156xf32, #tpu.memory_space<vmem>>, vector<8x156xf32>
    %cst_128 = arith.constant dense<0.000000e+00> : vector<8x156xf32>
    %304 = tpu.matmul %276, %40, %cst_128 {dimension_numbers = #tpu.dot_dimension_numbers<[1], [0], [0], [1], [0, 0, 1, 1], [], []>} : vector<8x156xf32>, vector<156x156xf32>, vector<8x156xf32> -> vector<8x156xf32>
    %305 = arith.addf %303, %304 : vector<8x156xf32>
    %306 = arith.negf %305 : vector<8x156xf32>
    %307 = math.exp %306 : vector<8x156xf32>
    %cst_129 = arith.constant 1.000000e+00 : f32
    %308 = vector.broadcast %cst_129 : f32 to vector<8x156xf32>
    %309 = arith.addf %308, %307 : vector<8x156xf32>
    %310 = arith.divf %308, %309 : vector<8x156xf32>
    %311 = arith.mulf %296, %274 : vector<8x156xf32>
    %312 = arith.mulf %287, %301 : vector<8x156xf32>
    %313 = arith.addf %311, %312 : vector<8x156xf32>
    %314 = math.tanh %313 : vector<8x156xf32>
    %315 = arith.mulf %310, %314 : vector<8x156xf32>
    %c7_i32 = arith.constant 7 : i32
    %c8_i32_130 = arith.constant 8 : i32
    %316 = arith.muli %c7_i32, %c8_i32_130 : i32
    %317 = tpu.assume_multiple %316, 8 : i32
    %318 = arith.index_cast %317 : i32 to index
    %c0_131 = arith.constant 0 : index
    %319 = vector.load %arg5[%318, %c0_131] : memref<64x156xf32, #tpu.memory_space<vmem>>, vector<8x156xf32>
    %cst_132 = arith.constant dense<0.000000e+00> : vector<8x156xf32>
    %320 = tpu.matmul %315, %34, %cst_132 {dimension_numbers = #tpu.dot_dimension_numbers<[1], [0], [0], [1], [0, 0, 1, 1], [], []>} : vector<8x156xf32>, vector<156x156xf32>, vector<8x156xf32> -> vector<8x156xf32>
    %321 = arith.addf %319, %320 : vector<8x156xf32>
    %322 = arith.negf %321 : vector<8x156xf32>
    %323 = math.exp %322 : vector<8x156xf32>
    %cst_133 = arith.constant 1.000000e+00 : f32
    %324 = vector.broadcast %cst_133 : f32 to vector<8x156xf32>
    %325 = arith.addf %324, %323 : vector<8x156xf32>
    %326 = arith.divf %324, %325 : vector<8x156xf32>
    %327 = arith.index_cast %317 : i32 to index
    %c0_134 = arith.constant 0 : index
    %328 = vector.load %arg6[%327, %c0_134] : memref<64x156xf32, #tpu.memory_space<vmem>>, vector<8x156xf32>
    %cst_135 = arith.constant dense<0.000000e+00> : vector<8x156xf32>
    %329 = tpu.matmul %315, %36, %cst_135 {dimension_numbers = #tpu.dot_dimension_numbers<[1], [0], [0], [1], [0, 0, 1, 1], [], []>} : vector<8x156xf32>, vector<156x156xf32>, vector<8x156xf32> -> vector<8x156xf32>
    %330 = arith.addf %328, %329 : vector<8x156xf32>
    %331 = arith.negf %330 : vector<8x156xf32>
    %332 = math.exp %331 : vector<8x156xf32>
    %cst_136 = arith.constant 1.000000e+00 : f32
    %333 = vector.broadcast %cst_136 : f32 to vector<8x156xf32>
    %334 = arith.addf %333, %332 : vector<8x156xf32>
    %335 = arith.divf %333, %334 : vector<8x156xf32>
    %336 = arith.index_cast %317 : i32 to index
    %c0_137 = arith.constant 0 : index
    %337 = vector.load %arg7[%336, %c0_137] : memref<64x156xf32, #tpu.memory_space<vmem>>, vector<8x156xf32>
    %cst_138 = arith.constant dense<0.000000e+00> : vector<8x156xf32>
    %338 = tpu.matmul %315, %38, %cst_138 {dimension_numbers = #tpu.dot_dimension_numbers<[1], [0], [0], [1], [0, 0, 1, 1], [], []>} : vector<8x156xf32>, vector<156x156xf32>, vector<8x156xf32> -> vector<8x156xf32>
    %339 = arith.addf %337, %338 : vector<8x156xf32>
    %340 = math.tanh %339 : vector<8x156xf32>
    %341 = arith.index_cast %317 : i32 to index
    %c0_139 = arith.constant 0 : index
    %342 = vector.load %arg8[%341, %c0_139] : memref<64x156xf32, #tpu.memory_space<vmem>>, vector<8x156xf32>
    %cst_140 = arith.constant dense<0.000000e+00> : vector<8x156xf32>
    %343 = tpu.matmul %315, %40, %cst_140 {dimension_numbers = #tpu.dot_dimension_numbers<[1], [0], [0], [1], [0, 0, 1, 1], [], []>} : vector<8x156xf32>, vector<156x156xf32>, vector<8x156xf32> -> vector<8x156xf32>
    %344 = arith.addf %342, %343 : vector<8x156xf32>
    %345 = arith.negf %344 : vector<8x156xf32>
    %346 = math.exp %345 : vector<8x156xf32>
    %cst_141 = arith.constant 1.000000e+00 : f32
    %347 = vector.broadcast %cst_141 : f32 to vector<8x156xf32>
    %348 = arith.addf %347, %346 : vector<8x156xf32>
    %349 = arith.divf %347, %348 : vector<8x156xf32>
    %350 = arith.mulf %335, %313 : vector<8x156xf32>
    %351 = arith.mulf %326, %340 : vector<8x156xf32>
    %352 = arith.addf %350, %351 : vector<8x156xf32>
    %353 = math.tanh %352 : vector<8x156xf32>
    %354 = arith.mulf %349, %353 : vector<8x156xf32>
    %c8_i32_142 = arith.constant 8 : i32
    %c0_143 = arith.constant 0 : index
    %c0_144 = arith.constant 0 : index
    %355 = vector.load %arg4[%c0_143, %c0_144] : memref<8x156xf32, #tpu.memory_space<vmem>>, vector<8x156xf32>
    tpu.vector_store %arg4[%c0_143, %c0_144], %354 {strides = array<i32>} : memref<8x156xf32, #tpu.memory_space<vmem>>, vector<8x156xf32>,
    return
  }
}

</mosaic_0001>

<llo_original>
// kernel: lstm_classifier_forward.1
$region0: #{lstm_classifier_forward.1}
  #allocation0 [shape = 'u32[]', space=smem, size = 0x4, offset = 0x4, fixed_abs, tag = 'smem constant byte address 0x4 - core index']
  #allocation1 [shape = 'u32[144,128]{1,0:T(1,128)}', space=vmem, size = 0x12000, scoped, tag = 'internal scratch']
  #allocation2 [shape = 'f32[64,156]{1,0:T(8,128)}', space=vmem, size = 0x10000, scoped, tag = 'scratch operand']
  #allocation3 [shape = 'f32[64,156]{1,0:T(8,128)}', space=vmem, size = 0x10000, scoped, tag = 'scratch operand']
  #allocation4 [shape = 'f32[64,156]{1,0:T(8,128)}', space=vmem, size = 0x10000, scoped, tag = 'scratch operand']
  #allocation5 [shape = 'f32[64,156]{1,0:T(8,128)}', space=vmem, size = 0x10000, scoped, tag = 'scratch operand']
  %s0 = inlined_call_operand.vmem [shape: f32[64,256], index: 0, kind: input, shape index: {}]
  %s1 = inlined_call_operand.vmem [shape: f32[4,256,156], index: 1, kind: input, shape index: {}]
  %s2 = inlined_call_operand.vmem [shape: f32[4,156,156], index: 2, kind: input, shape index: {}]
  %s3 = inlined_call_operand.vmem [shape: f32[4,1,156], index: 3, kind: input, shape index: {}]
  %s4 = inlined_call_operand.vmem [shape: f32[8,156], index: 4, kind: output, shape index: {}]
  %s5 = sld [smem:[#allocation0]]
  $region26: #{lstm_classifier_forward.1} parent=0
    _
  %s7 = ssub.s32 1, %s5
  %s8 = scalar_select 0, %s7, %s5
  // Predicated region
  $region2: #{lstm_classifier_forward.1} parent=0 // pred_check
    _
  $region3: #{lstm_classifier_forward.1} parent=0 // pred_check_branch
    %10 = sbr.rel (0) target = $region5
  $region4: #{lstm_classifier_forward.1} parent=0 // pred_region
    _
  $region5: #{lstm_classifier_forward.1} parent=0 // pred_fallthru
    _
  // Predicated region
  $region6: #{lstm_classifier_forward.1} parent=0 // pred_check
    _
  $region7: #{lstm_classifier_forward.1} parent=0 // pred_check_branch
    %12 = sbr.rel (0) target = $region9
  $region8: #{lstm_classifier_forward.1} parent=0 // pred_region
    _
  $region9: #{lstm_classifier_forward.1} parent=0 // pred_fallthru
    _
  // Predicated region
  $region10: #{lstm_classifier_forward.1} parent=0 // pred_check
    _
  $region11: #{lstm_classifier_forward.1} parent=0 // pred_check_branch
    %14 = sbr.rel (0) target = $region13
  $region12: #{lstm_classifier_forward.1} parent=0 // pred_region
    _
  $region13: #{lstm_classifier_forward.1} parent=0 // pred_fallthru
    _
  // Predicated region
  $region14: #{lstm_classifier_forward.1} parent=0 // pred_check
    _
  $region15: #{lstm_classifier_forward.1} parent=0 // pred_check_branch
    %16 = sbr.rel (0) target = $region17
  $region16: #{lstm_classifier_forward.1} parent=0 // pred_region
    _
  $region17: #{lstm_classifier_forward.1} parent=0 // pred_fallthru
    _
  %v17 = vld [vmem:[%s0] sm:$0xff]
  %v18 = vld [vmem:[%s0 + $0x8] sm:$0xff]
  %v19 = vld [vmem:[%s0 + $0x10] sm:$0xff]
  %v20 = vld [vmem:[%s0 + $0x18] sm:$0xff]
  %v21 = vld [vmem:[%s0 + $0x20] sm:$0xff]
  %v22 = vld [vmem:[%s0 + $0x28] sm:$0xff]
  %v23 = vld [vmem:[%s0 + $0x30] sm:$0xff]
  %v24 = vld [vmem:[%s0 + $0x38] sm:$0xff]
  %v25 = vld [vmem:[%s0 + $0x40] sm:$0xff]
  %v26 = vld [vmem:[%s0 + $0x48] sm:$0xff]
  %v27 = vld [vmem:[%s0 + $0x50] sm:$0xff]
  %v28 = vld [vmem:[%s0 + $0x58] sm:$0xff]
  %v29 = vld [vmem:[%s0 + $0x60] sm:$0xff]
  %v30 = vld [vmem:[%s0 + $0x68] sm:$0xff]
  %v31 = vld [vmem:[%s0 + $0x70] sm:$0xff]
  %v32 = vld [vmem:[%s0 + $0x78] sm:$0xff]
  %v33 = vld [vmem:[%s1] sm:$0xff]
  %v34 = vld [vmem:[%s1 + $0x8] sm:$0xff]
  %v35 = vld [vmem:[%s1 + $0x10] sm:$0xff]
  %v36 = vld [vmem:[%s1 + $0x18] sm:$0xff]
  %v37 = vld [vmem:[%s1 + $0x20] sm:$0xff]
  %v38 = vld [vmem:[%s1 + $0x28] sm:$0xff]
  %v39 = vld [vmem:[%s1 + $0x30] sm:$0xff]
  %v40 = vld [vmem:[%s1 + $0x38] sm:$0xff]
  %v41 = vld [vmem:[%s1 + $0x40] sm:$0xff]
  %v42 = vld [vmem:[%s1 + $0x48] sm:$0xff]
  %v43 = vld [vmem:[%s1 + $0x50] sm:$0xff]
  %v44 = vld [vmem:[%s1 + $0x58] sm:$0xff]
  %v45 = vld [vmem:[%s1 + $0x60] sm:$0xff]
  %v46 = vld [vmem:[%s1 + $0x68] sm:$0xff]
  %v47 = vld [vmem:[%s1 + $0x70] sm:$0xff]
  %v48 = vld [vmem:[%s1 + $0x78] sm:$0xff]
  %v49 = vld [vmem:[%s1 + $0x80] sm:$0xff]
  %v50 = vld [vmem:[%s1 + $0x88] sm:$0xff]
  %v51 = vld [vmem:[%s1 + $0x90] sm:$0xff]
  %v52 = vld [vmem:[%s1 + $0x98] sm:$0xff]
  %v53 = vld [vmem:[%s1 + $0xa0] sm:$0xff]
  %v54 = vld [vmem:[%s1 + $0xa8] sm:$0xff]
  %v55 = vld [vmem:[%s1 + $0xb0] sm:$0xff]
  %v56 = vld [vmem:[%s1 + $0xb8] sm:$0xff]
  %v57 = vld [vmem:[%s1 + $0xc0] sm:$0xff]
  %v58 = vld [vmem:[%s1 + $0xc8] sm:$0xff]
  %v59 = vld [vmem:[%s1 + $0xd0] sm:$0xff]
  %v60 = vld [vmem:[%s1 + $0xd8] sm:$0xff]
  %v61 = vld [vmem:[%s1 + $0xe0] sm:$0xff]
  %v62 = vld [vmem:[%s1 + $0xe8] sm:$0xff]
  %v63 = vld [vmem:[%s1 + $0xf0] sm:$0xff]
  %v64 = vld [vmem:[%s1 + $0xf8] sm:$0xff]
  %v65 = vld [vmem:[%s1 + $0x100] sm:$0xff]
  %v66 = vld [vmem:[%s1 + $0x108] sm:$0xff]
  %v67 = vld [vmem:[%s1 + $0x110] sm:$0xff]
  %v68 = vld [vmem:[%s1 + $0x118] sm:$0xff]
  %v69 = vld [vmem:[%s1 + $0x120] sm:$0xff]
  %v70 = vld [vmem:[%s1 + $0x128] sm:$0xff]
  %v71 = vld [vmem:[%s1 + $0x130] sm:$0xff]
  %v72 = vld [vmem:[%s1 + $0x138] sm:$0xff]
  %v73 = vld [vmem:[%s1 + $0x140] sm:$0xff]
  %v74 = vld [vmem:[%s1 + $0x148] sm:$0xff]
  %v75 = vld [vmem:[%s1 + $0x150] sm:$0xff]
  %v76 = vld [vmem:[%s1 + $0x158] sm:$0xff]
  %v77 = vld [vmem:[%s1 + $0x160] sm:$0xff]
  %v78 = vld [vmem:[%s1 + $0x168] sm:$0xff]
  %v79 = vld [vmem:[%s1 + $0x170] sm:$0xff]
  %v80 = vld [vmem:[%s1 + $0x178] sm:$0xff]
  %v81 = vld [vmem:[%s1 + $0x180] sm:$0xff]
  %v82 = vld [vmem:[%s1 + $0x188] sm:$0xff]
  %v83 = vld [vmem:[%s1 + $0x190] sm:$0xff]
  %v84 = vld [vmem:[%s1 + $0x198] sm:$0xff]
  %v85 = vld [vmem:[%s1 + $0x1a0] sm:$0xff]
  %v86 = vld [vmem:[%s1 + $0x1a8] sm:$0xff]
  %v87 = vld [vmem:[%s1 + $0x1b0] sm:$0xff]
  %v88 = vld [vmem:[%s1 + $0x1b8] sm:$0xff]
  %v89 = vld [vmem:[%s1 + $0x1c0] sm:$0xff]
  %v90 = vld [vmem:[%s1 + $0x1c8] sm:$0xff]
  %v91 = vld [vmem:[%s1 + $0x1d0] sm:$0xff]
  %v92 = vld [vmem:[%s1 + $0x1d8] sm:$0xff]
  %v93 = vld [vmem:[%s1 + $0x1e0] sm:$0xff]
  %v94 = vld [vmem:[%s1 + $0x1e8] sm:$0xff]
  %v95 = vld [vmem:[%s1 + $0x1f0] sm:$0xff]
  %v96 = vld [vmem:[%s1 + $0x1f8] sm:$0xff]
  %v97 = vld [vmem:[%s3] sm:$0x3]
  %v99 = vlaneseq
  %v100 = vshrl.u32 %v99, 7
  %v101 = vsub.s32 0, %v100
  %v102 = vrot.slane %v97, %v101
  %v103 = vlaneseq
  %v104 = vshrl.u32 %v103, 7
  %v105 = vsub.s32 1, %v104
  %v106 = vrot.slane %v97, %v105
  %109 = vmatprep.subr.mxu0 %v34
  %110 = vmatpush1.msra.mxu0 %v33
  %111 = vmatprep.subr.mxu0 %v36
  %112 = vmatpush1.msra.mxu0 %v35
  %113 = vmatprep.subr.mxu0 %v38
  %114 = vmatpush1.msra.mxu0 %v37
  %115 = vmatprep.subr.mxu0 %v40
  %116 = vmatpush1.msra.mxu0 %v39
  %117 = vmatprep.subr.mxu0 %v42
  %118 = vmatpush1.msra.mxu0 %v41
  %119 = vmatprep.subr.mxu0 %v44
  %120 = vmatpush1.msra.mxu0 %v43
  %121 = vmatprep.subr.mxu0 %v46
  %122 = vmatpush1.msra.mxu0 %v45
  %123 = vmatprep.subr.mxu0 %v48
  %124 = vmatpush1.msra.mxu0 %v47
  %125 = vmatprep.subr.mxu0 %v50
  %126 = vmatpush1.msra.mxu0 %v49
  %127 = vmatprep.subr.mxu0 %v52
  %128 = vmatpush1.msra.mxu0 %v51
  %129 = vmatprep.subr.mxu0 %v54
  %130 = vmatpush1.msra.mxu0 %v53
  %131 = vmatprep.subr.mxu0 %v56
  %132 = vmatpush1.msra.mxu0 %v55
  %133 = vmatprep.subr.mxu0 %v58
  %134 = vmatpush1.msra.mxu0 %v57
  %135 = vmatprep.subr.mxu0 %v60
  %136 = vmatpush1.msra.mxu0 %v59
  %137 = vmatprep.subr.mxu0 %v62
  %138 = vmatpush1.msra.mxu0 %v61
  %139 = vmatprep.subr.mxu0 %v64
  %140 = vmatpush1.msra.mxu0 %v63
  %141 = vmatprep.subr.mxu0 %v66
  %142 = vmatpush1.msra.mxu0 %v65
  %143 = vmatprep.subr.mxu0 %v68
  %144 = vmatpush1.msra.mxu0 %v67
  %145 = vmatprep.subr.mxu0 %v70
  %146 = vmatpush1.msra.mxu0 %v69
  %147 = vmatprep.subr.mxu0 %v72
  %148 = vmatpush1.msra.mxu0 %v71
  %149 = vmatprep.subr.mxu0 %v74
  %150 = vmatpush1.msra.mxu0 %v73
  %151 = vmatprep.subr.mxu0 %v76
  %152 = vmatpush1.msra.mxu0 %v75
  %153 = vmatprep.subr.mxu0 %v78
  %154 = vmatpush1.msra.mxu0 %v77
  %155 = vmatprep.subr.mxu0 %v80
  %156 = vmatpush1.msra.mxu0 %v79
  %157 = vmatprep.subr.mxu0 %v82
  %158 = vmatpush1.msra.mxu0 %v81
  %159 = vmatprep.subr.mxu0 %v84
  %160 = vmatpush1.msra.mxu0 %v83
  %161 = vmatprep.subr.mxu0 %v86
  %162 = vmatpush1.msra.mxu0 %v85
  %163 = vmatprep.subr.mxu0 %v88
  %164 = vmatpush1.msra.mxu0 %v87
  %165 = vmatprep.subr.mxu0 %v90
  %166 = vmatpush1.msra.mxu0 %v89
  %167 = vmatprep.subr.mxu0 %v92
  %168 = vmatpush1.msra.mxu0 %v91
  %169 = vmatprep.subr.mxu0 %v94
  %170 = vmatpush1.msra.mxu0 %v93
  %171 = vmatprep.subr.mxu0 %v96
  %172 = vmatpush1.msra.mxu0 %v95
  %173 = vmatprep.mubr.f32.mxu0 %v18
  %174 = vmatmul.mubr.f32.gmra.mrb[0].mxu0 %v17
  %v175 = vpop.f32.mrb[0].mxu0
  %v176 = vadd.f32 %v102, %v175
  %v177 = vpop.f32.mrb[0].mxu0
  %v178 = vadd.f32 %v106, %v177
  %179 = vmatprep.mubr.f32.mxu0 %v20
  %180 = vmatmul.mubr.f32.gmra.mrb[0].mxu0 %v19
  %v181 = vpop.f32.mrb[0].mxu0
  %v182 = vadd.f32 %v102, %v181
  %v183 = vpop.f32.mrb[0].mxu0
  %v184 = vadd.f32 %v106, %v183
  %185 = vmatprep.mubr.f32.mxu0 %v22
  %186 = vmatmul.mubr.f32.gmra.mrb[0].mxu0 %v21
  %v187 = vpop.f32.mrb[0].mxu0
  %v188 = vadd.f32 %v102, %v187
  %v189 = vpop.f32.mrb[0].mxu0
  %v190 = vadd.f32 %v106, %v189
  %191 = vmatprep.mubr.f32.mxu0 %v24
  %192 = vmatmul.mubr.f32.gmra.mrb[0].mxu0 %v23
  %v193 = vpop.f32.mrb[0].mxu0
  %v194 = vadd.f32 %v102, %v193
  %v195 = vpop.f32.mrb[0].mxu0
  %v196 = vadd.f32 %v106, %v195
  %197 = vmatprep.mubr.f32.mxu0 %v26
  %198 = vmatmul.mubr.f32.gmra.mrb[0].mxu0 %v25
  %v199 = vpop.f32.mrb[0].mxu0
  %v200 = vadd.f32 %v102, %v199
  %v201 = vpop.f32.mrb[0].mxu0
  %v202 = vadd.f32 %v106, %v201
  %203 = vmatprep.mubr.f32.mxu0 %v28
  %204 = vmatmul.mubr.f32.gmra.mrb[0].mxu0 %v27
  %v205 = vpop.f32.mrb[0].mxu0
  %v206 = vadd.f32 %v102, %v205
  %v207 = vpop.f32.mrb[0].mxu0
  %v208 = vadd.f32 %v106, %v207
  %209 = vmatprep.mubr.f32.mxu0 %v30
  %210 = vmatmul.mubr.f32.gmra.mrb[0].mxu0 %v29
  %v211 = vpop.f32.mrb[0].mxu0
  %v212 = vadd.f32 %v102, %v211
  %v213 = vpop.f32.mrb[0].mxu0
  %v214 = vadd.f32 %v106, %v213
  %215 = vmatprep.mubr.f32.mxu0 %v32
  %216 = vmatmul.mubr.f32.gmra.mrb[0].mxu0 %v31
  %v217 = vpop.f32.mrb[0].mxu0
  %v218 = vadd.f32 %v102, %v217
  %v219 = vpop.f32.mrb[0].mxu0
  %v220 = vadd.f32 %v106, %v219
  %221 = vdwg.mxu0
  %222 = vst [vmem:[#allocation2] sm:$0xff] %v176
  %vm223 = vcmask 228352
  %224 = vst.msk [vmem:[#allocation2 + $0x8] sm:$0xff] %vm223, %v178
  %225 = vst [vmem:[#allocation2 + $0x10] sm:$0xff] %v182
  %226 = vst.msk [vmem:[#allocation2 + $0x18] sm:$0xff] %vm223, %v184
  %227 = vst [vmem:[#allocation2 + $0x20] sm:$0xff] %v188
  %228 = vst.msk [vmem:[#allocation2 + $0x28] sm:$0xff] %vm223, %v190
  %229 = vst [vmem:[#allocation2 + $0x30] sm:$0xff] %v194
  %230 = vst.msk [vmem:[#allocation2 + $0x38] sm:$0xff] %vm223, %v196
  %231 = vst [vmem:[#allocation2 + $0x40] sm:$0xff] %v200
  %232 = vst.msk [vmem:[#allocation2 + $0x48] sm:$0xff] %vm223, %v202
  %233 = vst [vmem:[#allocation2 + $0x50] sm:$0xff] %v206
  %234 = vst.msk [vmem:[#allocation2 + $0x58] sm:$0xff] %vm223, %v208
  %235 = vst [vmem:[#allocation2 + $0x60] sm:$0xff] %v212
  %236 = vst.msk [vmem:[#allocation2 + $0x68] sm:$0xff] %vm223, %v214
  %237 = vst [vmem:[#allocation2 + $0x70] sm:$0xff] %v218
  %238 = vst.msk [vmem:[#allocation2 + $0x78] sm:$0xff] %vm223, %v220
  %s239 = scalar_lea.vmem %s1, 512
  %v240 = vld [vmem:[%s239] sm:$0xff]
  %v241 = vld [vmem:[%s239 + $0x8] sm:$0xff]
  %v242 = vld [vmem:[%s239 + $0x10] sm:$0xff]
  %v243 = vld [vmem:[%s239 + $0x18] sm:$0xff]
  %v244 = vld [vmem:[%s239 + $0x20] sm:$0xff]
  %v245 = vld [vmem:[%s239 + $0x28] sm:$0xff]
  %v246 = vld [vmem:[%s239 + $0x30] sm:$0xff]
  %v247 = vld [vmem:[%s239 + $0x38] sm:$0xff]
  %v248 = vld [vmem:[%s239 + $0x40] sm:$0xff]
  %v249 = vld [vmem:[%s239 + $0x48] sm:$0xff]
  %v250 = vld [vmem:[%s239 + $0x50] sm:$0xff]
  %v251 = vld [vmem:[%s239 + $0x58] sm:$0xff]
  %v252 = vld [vmem:[%s239 + $0x60] sm:$0xff]
  %v253 = vld [vmem:[%s239 + $0x68] sm:$0xff]
  %v254 = vld [vmem:[%s239 + $0x70] sm:$0xff]
  %v255 = vld [vmem:[%s239 + $0x78] sm:$0xff]
  %v256 = vld [vmem:[%s239 + $0x80] sm:$0xff]
  %v257 = vld [vmem:[%s239 + $0x88] sm:$0xff]
  %v258 = vld [vmem:[%s239 + $0x90] sm:$0xff]
  %v259 = vld [vmem:[%s239 + $0x98] sm:$0xff]
  %v260 = vld [vmem:[%s239 + $0xa0] sm:$0xff]
  %v261 = vld [vmem:[%s239 + $0xa8] sm:$0xff]
  %v262 = vld [vmem:[%s239 + $0xb0] sm:$0xff]
  %v263 = vld [vmem:[%s239 + $0xb8] sm:$0xff]
  %v264 = vld [vmem:[%s239 + $0xc0] sm:$0xff]
  %v265 = vld [vmem:[%s239 + $0xc8] sm:$0xff]
  %v266 = vld [vmem:[%s239 + $0xd0] sm:$0xff]
  %v267 = vld [vmem:[%s239 + $0xd8] sm:$0xff]
  %v268 = vld [vmem:[%s239 + $0xe0] sm:$0xff]
  %v269 = vld [vmem:[%s239 + $0xe8] sm:$0xff]
  %v270 = vld [vmem:[%s239 + $0xf0] sm:$0xff]
  %v271 = vld [vmem:[%s239 + $0xf8] sm:$0xff]
  %v272 = vld [vmem:[%s239 + $0x100] sm:$0xff]
  %v273 = vld [vmem:[%s239 + $0x108] sm:$0xff]
  %v274 = vld [vmem:[%s239 + $0x110] sm:$0xff]
  %v275 = vld [vmem:[%s239 + $0x118] sm:$0xff]
  %v276 = vld [vmem:[%s239 + $0x120] sm:$0xff]
  %v277 = vld [vmem:[%s239 + $0x128] sm:$0xff]
  %v278 = vld [vmem:[%s239 + $0x130] sm:$0xff]
  %v279 = vld [vmem:[%s239 + $0x138] sm:$0xff]
  %v280 = vld [vmem:[%s239 + $0x140] sm:$0xff]
  %v281 = vld [vmem:[%s239 + $0x148] sm:$0xff]
  %v282 = vld [vmem:[%s239 + $0x150] sm:$0xff]
  %v283 = vld [vmem:[%s239 + $0x158] sm:$0xff]
  %v284 = vld [vmem:[%s239 + $0x160] sm:$0xff]
  %v285 = vld [vmem:[%s239 + $0x168] sm:$0xff]
  %v286 = vld [vmem:[%s239 + $0x170] sm:$0xff]
  %v287 = vld [vmem:[%s239 + $0x178] sm:$0xff]
  %v288 = vld [vmem:[%s239 + $0x180] sm:$0xff]
  %v289 = vld [vmem:[%s239 + $0x188] sm:$0xff]
  %v290 = vld [vmem:[%s239 + $0x190] sm:$0xff]
  %v291 = vld [vmem:[%s239 + $0x198] sm:$0xff]
  %v292 = vld [vmem:[%s239 + $0x1a0] sm:$0xff]
  %v293 = vld [vmem:[%s239 + $0x1a8] sm:$0xff]
  %v294 = vld [vmem:[%s239 + $0x1b0] sm:$0xff]
  %v295 = vld [vmem:[%s239 + $0x1b8] sm:$0xff]
  %v296 = vld [vmem:[%s239 + $0x1c0] sm:$0xff]
  %v297 = vld [vmem:[%s239 + $0x1c8] sm:$0xff]
  %v298 = vld [vmem:[%s239 + $0x1d0] sm:$0xff]
  %v299 = vld [vmem:[%s239 + $0x1d8] sm:$0xff]
  %v300 = vld [vmem:[%s239 + $0x1e0] sm:$0xff]
  %v301 = vld [vmem:[%s239 + $0x1e8] sm:$0xff]
  %v302 = vld [vmem:[%s239 + $0x1f0] sm:$0xff]
  %v303 = vld [vmem:[%s239 + $0x1f8] sm:$0xff]
  %s304 = scalar_lea.vmem %s3, 2
  %v305 = vld [vmem:[%s304] sm:$0x3]
  %v307 = vlaneseq
  %v308 = vshrl.u32 %v307, 7
  %v309 = vsub.s32 0, %v308
  %v310 = vrot.slane %v305, %v309
  %v311 = vlaneseq
  %v312 = vshrl.u32 %v311, 7
  %v313 = vsub.s32 1, %v312
  %v314 = vrot.slane %v305, %v313
  %317 = vmatprep.subr.mxu0 %v241
  %318 = vmatpush1.msra.mxu0 %v240
  %319 = vmatprep.subr.mxu0 %v243
  %320 = vmatpush1.msra.mxu0 %v242
  %321 = vmatprep.subr.mxu0 %v245
  %322 = vmatpush1.msra.mxu0 %v244
  %323 = vmatprep.subr.mxu0 %v247
  %324 = vmatpush1.msra.mxu0 %v246
  %325 = vmatprep.subr.mxu0 %v249
  %326 = vmatpush1.msra.mxu0 %v248
  %327 = vmatprep.subr.mxu0 %v251
  %328 = vmatpush1.msra.mxu0 %v250
  %329 = vmatprep.subr.mxu0 %v253
  %330 = vmatpush1.msra.mxu0 %v252
  %331 = vmatprep.subr.mxu0 %v255
  %332 = vmatpush1.msra.mxu0 %v254
  %333 = vmatprep.subr.mxu0 %v257
  %334 = vmatpush1.msra.mxu0 %v256
  %335 = vmatprep.subr.mxu0 %v259
  %336 = vmatpush1.msra.mxu0 %v258
  %337 = vmatprep.subr.mxu0 %v261
  %338 = vmatpush1.msra.mxu0 %v260
  %339 = vmatprep.subr.mxu0 %v263
  %340 = vmatpush1.msra.mxu0 %v262
  %341 = vmatprep.subr.mxu0 %v265
  %342 = vmatpush1.msra.mxu0 %v264
  %343 = vmatprep.subr.mxu0 %v267
  %344 = vmatpush1.msra.mxu0 %v266
  %345 = vmatprep.subr.mxu0 %v269
  %346 = vmatpush1.msra.mxu0 %v268
  %347 = vmatprep.subr.mxu0 %v271
  %348 = vmatpush1.msra.mxu0 %v270
  %349 = vmatprep.subr.mxu0 %v273
  %350 = vmatpush1.msra.mxu0 %v272
  %351 = vmatprep.subr.mxu0 %v275
  %352 = vmatpush1.msra.mxu0 %v274
  %353 = vmatprep.subr.mxu0 %v277
  %354 = vmatpush1.msra.mxu0 %v276
  %355 = vmatprep.subr.mxu0 %v279
  %356 = vmatpush1.msra.mxu0 %v278
  %357 = vmatprep.subr.mxu0 %v281
  %358 = vmatpush1.msra.mxu0 %v280
  %359 = vmatprep.subr.mxu0 %v283
  %360 = vmatpush1.msra.mxu0 %v282
  %361 = vmatprep.subr.mxu0 %v285
  %362 = vmatpush1.msra.mxu0 %v284
  %363 = vmatprep.subr.mxu0 %v287
  %364 = vmatpush1.msra.mxu0 %v286
  %365 = vmatprep.subr.mxu0 %v289
  %366 = vmatpush1.msra.mxu0 %v288
  %367 = vmatprep.subr.mxu0 %v291
  %368 = vmatpush1.msra.mxu0 %v290
  %369 = vmatprep.subr.mxu0 %v293
  %370 = vmatpush1.msra.mxu0 %v292
  %371 = vmatprep.subr.mxu0 %v295
  %372 = vmatpush1.msra.mxu0 %v294
  %373 = vmatprep.subr.mxu0 %v297
  %374 = vmatpush1.msra.mxu0 %v296
  %375 = vmatprep.subr.mxu0 %v299
  %376 = vmatpush1.msra.mxu0 %v298
  %377 = vmatprep.subr.mxu0 %v301
  %378 = vmatpush1.msra.mxu0 %v300
  %379 = vmatprep.subr.mxu0 %v303
  %380 = vmatpush1.msra.mxu0 %v302
  %381 = vmatprep.mubr.f32.mxu0 %v18
  %382 = vmatmul.mubr.f32.gmra.mrb[0].mxu0 %v17
  %v383 = vpop.f32.mrb[0].mxu0
  %v384 = vadd.f32 %v310, %v383
  %v385 = vpop.f32.mrb[0].mxu0
  %v386 = vadd.f32 %v314, %v385
  %387 = vmatprep.mubr.f32.mxu0 %v20
  %388 = vmatmul.mubr.f32.gmra.mrb[0].mxu0 %v19
  %v389 = vpop.f32.mrb[0].mxu0
  %v390 = vadd.f32 %v310, %v389
  %v391 = vpop.f32.mrb[0].mxu0
  %v392 = vadd.f32 %v314, %v391
  %393 = vmatprep.mubr.f32.mxu0 %v22
  %394 = vmatmul.mubr.f32.gmra.mrb[0].mxu0 %v21
  %v395 = vpop.f32.mrb[0].mxu0
  %v396 = vadd.f32 %v310, %v395
  %v397 = vpop.f32.mrb[0].mxu0
  %v398 = vadd.f32 %v314, %v397
  %399 = vmatprep.mubr.f32.mxu0 %v24
  %400 = vmatmul.mubr.f32.gmra.mrb[0].mxu0 %v23
  %v401 = vpop.f32.mrb[0].mxu0
  %v402 = vadd.f32 %v310, %v401
  %v403 = vpop.f32.mrb[0].mxu0
  %v404 = vadd.f32 %v314, %v403
  %405 = vmatprep.mubr.f32.mxu0 %v26
  %406 = vmatmul.mubr.f32.gmra.mrb[0].mxu0 %v25
  %v407 = vpop.f32.mrb[0].mxu0
  %v408 = vadd.f32 %v310, %v407
  %v409 = vpop.f32.mrb[0].mxu0
  %v410 = vadd.f32 %v314, %v409
  %411 = vmatprep.mubr.f32.mxu0 %v28
  %412 = vmatmul.mubr.f32.gmra.mrb[0].mxu0 %v27
  %v413 = vpop.f32.mrb[0].mxu0
  %v414 = vadd.f32 %v310, %v413
  %v415 = vpop.f32.mrb[0].mxu0
  %v416 = vadd.f32 %v314, %v415
  %417 = vmatprep.mubr.f32.mxu0 %v30
  %418 = vmatmul.mubr.f32.gmra.mrb[0].mxu0 %v29
  %v419 = vpop.f32.mrb[0].mxu0
  %v420 = vadd.f32 %v310, %v419
  %v421 = vpop.f32.mrb[0].mxu0
  %v422 = vadd.f32 %v314, %v421
  %423 = vmatprep.mubr.f32.mxu0 %v32
  %424 = vmatmul.mubr.f32.gmra.mrb[0].mxu0 %v31
  %v425 = vpop.f32.mrb[0].mxu0
  %v426 = vadd.f32 %v310, %v425
  %v427 = vpop.f32.mrb[0].mxu0
  %v428 = vadd.f32 %v314, %v427
  %429 = vdwg.mxu0
  %430 = vst [vmem:[#allocation3] sm:$0xff] %v384
  %431 = vst.msk [vmem:[#allocation3 + $0x8] sm:$0xff] %vm223, %v386
  %432 = vst [vmem:[#allocation3 + $0x10] sm:$0xff] %v390
  %433 = vst.msk [vmem:[#allocation3 + $0x18] sm:$0xff] %vm223, %v392
  %434 = vst [vmem:[#allocation3 + $0x20] sm:$0xff] %v396
  %435 = vst.msk [vmem:[#allocation3 + $0x28] sm:$0xff] %vm223, %v398
  %436 = vst [vmem:[#allocation3 + $0x30] sm:$0xff] %v402
  %437 = vst.msk [vmem:[#allocation3 + $0x38] sm:$0xff] %vm223, %v404
  %438 = vst [vmem:[#allocation3 + $0x40] sm:$0xff] %v408
  %439 = vst.msk [vmem:[#allocation3 + $0x48] sm:$0xff] %vm223, %v410
  %440 = vst [vmem:[#allocation3 + $0x50] sm:$0xff] %v414
  %441 = vst.msk [vmem:[#allocation3 + $0x58] sm:$0xff] %vm223, %v416
  %442 = vst [vmem:[#allocation3 + $0x60] sm:$0xff] %v420
  %443 = vst.msk [vmem:[#allocation3 + $0x68] sm:$0xff] %vm223, %v422
  %444 = vst [vmem:[#allocation3 + $0x70] sm:$0xff] %v426
  %445 = vst.msk [vmem:[#allocation3 + $0x78] sm:$0xff] %vm223, %v428
  %s446 = scalar_lea.vmem %s1, 1024
  %v447 = vld [vmem:[%s446] sm:$0xff]
  %v448 = vld [vmem:[%s446 + $0x8] sm:$0xff]
  %v449 = vld [vmem:[%s446 + $0x10] sm:$0xff]
  %v450 = vld [vmem:[%s446 + $0x18] sm:$0xff]
  %v451 = vld [vmem:[%s446 + $0x20] sm:$0xff]
  %v452 = vld [vmem:[%s446 + $0x28] sm:$0xff]
  %v453 = vld [vmem:[%s446 + $0x30] sm:$0xff]
  %v454 = vld [vmem:[%s446 + $0x38] sm:$0xff]
  %v455 = vld [vmem:[%s446 + $0x40] sm:$0xff]
  %v456 = vld [vmem:[%s446 + $0x48] sm:$0xff]
  %v457 = vld [vmem:[%s446 + $0x50] sm:$0xff]
  %v458 = vld [vmem:[%s446 + $0x58] sm:$0xff]
  %v459 = vld [vmem:[%s446 + $0x60] sm:$0xff]
  %v460 = vld [vmem:[%s446 + $0x68] sm:$0xff]
  %v461 = vld [vmem:[%s446 + $0x70] sm:$0xff]
  %v462 = vld [vmem:[%s446 + $0x78] sm:$0xff]
  %v463 = vld [vmem:[%s446 + $0x80] sm:$0xff]
  %v464 = vld [vmem:[%s446 + $0x88] sm:$0xff]
  %v465 = vld [vmem:[%s446 + $0x90] sm:$0xff]
  %v466 = vld [vmem:[%s446 + $0x98] sm:$0xff]
  %v467 = vld [vmem:[%s446 + $0xa0] sm:$0xff]
  %v468 = vld [vmem:[%s446 + $0xa8] sm:$0xff]
  %v469 = vld [vmem:[%s446 + $0xb0] sm:$0xff]
  %v470 = vld [vmem:[%s446 + $0xb8] sm:$0xff]
  %v471 = vld [vmem:[%s446 + $0xc0] sm:$0xff]
  %v472 = vld [vmem:[%s446 + $0xc8] sm:$0xff]
  %v473 = vld [vmem:[%s446 + $0xd0] sm:$0xff]
  %v474 = vld [vmem:[%s446 + $0xd8] sm:$0xff]
  %v475 = vld [vmem:[%s446 + $0xe0] sm:$0xff]
  %v476 = vld [vmem:[%s446 + $0xe8] sm:$0xff]
  %v477 = vld [vmem:[%s446 + $0xf0] sm:$0xff]
  %v478 = vld [vmem:[%s446 + $0xf8] sm:$0xff]
  %v479 = vld [vmem:[%s446 + $0x100] sm:$0xff]
  %v480 = vld [vmem:[%s446 + $0x108] sm:$0xff]
  %v481 = vld [vmem:[%s446 + $0x110] sm:$0xff]
  %v482 = vld [vmem:[%s446 + $0x118] sm:$0xff]
  %v483 = vld [vmem:[%s446 + $0x120] sm:$0xff]
  %v484 = vld [vmem:[%s446 + $0x128] sm:$0xff]
  %v485 = vld [vmem:[%s446 + $0x130] sm:$0xff]
  %v486 = vld [vmem:[%s446 + $0x138] sm:$0xff]
  %v487 = vld [vmem:[%s446 + $0x140] sm:$0xff]
  %v488 = vld [vmem:[%s446 + $0x148] sm:$0xff]
  %v489 = vld [vmem:[%s446 + $0x150] sm:$0xff]
  %v490 = vld [vmem:[%s446 + $0x158] sm:$0xff]
  %v491 = vld [vmem:[%s446 + $0x160] sm:$0xff]
  %v492 = vld [vmem:[%s446 + $0x168] sm:$0xff]
  %v493 = vld [vmem:[%s446 + $0x170] sm:$0xff]
  %v494 = vld [vmem:[%s446 + $0x178] sm:$0xff]
  %v495 = vld [vmem:[%s446 + $0x180] sm:$0xff]
  %v496 = vld [vmem:[%s446 + $0x188] sm:$0xff]
  %v497 = vld [vmem:[%s446 + $0x190] sm:$0xff]
  %v498 = vld [vmem:[%s446 + $0x198] sm:$0xff]
  %v499 = vld [vmem:[%s446 + $0x1a0] sm:$0xff]
  %v500 = vld [vmem:[%s446 + $0x1a8] sm:$0xff]
  %v501 = vld [vmem:[%s446 + $0x1b0] sm:$0xff]
  %v502 = vld [vmem:[%s446 + $0x1b8] sm:$0xff]
  %v503 = vld [vmem:[%s446 + $0x1c0] sm:$0xff]
  %v504 = vld [vmem:[%s446 + $0x1c8] sm:$0xff]
  %v505 = vld [vmem:[%s446 + $0x1d0] sm:$0xff]
  %v506 = vld [vmem:[%s446 + $0x1d8] sm:$0xff]
  %v507 = vld [vmem:[%s446 + $0x1e0] sm:$0xff]
  %v508 = vld [vmem:[%s446 + $0x1e8] sm:$0xff]
  %v509 = vld [vmem:[%s446 + $0x1f0] sm:$0xff]
  %v510 = vld [vmem:[%s446 + $0x1f8] sm:$0xff]
  %s511 = scalar_lea.vmem %s3, 4
  %v512 = vld [vmem:[%s511] sm:$0x3]
  %v514 = vlaneseq
  %v515 = vshrl.u32 %v514, 7
  %v516 = vsub.s32 0, %v515
  %v517 = vrot.slane %v512, %v516
  %v518 = vlaneseq
  %v519 = vshrl.u32 %v518, 7
  %v520 = vsub.s32 1, %v519
  %v521 = vrot.slane %v512, %v520
  %524 = vmatprep.subr.mxu0 %v448
  %525 = vmatpush1.msra.mxu0 %v447
  %526 = vmatprep.subr.mxu0 %v450
  %527 = vmatpush1.msra.mxu0 %v449
  %528 = vmatprep.subr.mxu0 %v452
  %529 = vmatpush1.msra.mxu0 %v451
  %530 = vmatprep.subr.mxu0 %v454
  %531 = vmatpush1.msra.mxu0 %v453
  %532 = vmatprep.subr.mxu0 %v456
  %533 = vmatpush1.msra.mxu0 %v455
  %534 = vmatprep.subr.mxu0 %v458
  %535 = vmatpush1.msra.mxu0 %v457
  %536 = vmatprep.subr.mxu0 %v460
  %537 = vmatpush1.msra.mxu0 %v459
  %538 = vmatprep.subr.mxu0 %v462
  %539 = vmatpush1.msra.mxu0 %v461
  %540 = vmatprep.subr.mxu0 %v464
  %541 = vmatpush1.msra.mxu0 %v463
  %542 = vmatprep.subr.mxu0 %v466
  %543 = vmatpush1.msra.mxu0 %v465
  %544 = vmatprep.subr.mxu0 %v468
  %545 = vmatpush1.msra.mxu0 %v467
  %546 = vmatprep.subr.mxu0 %v470
  %547 = vmatpush1.msra.mxu0 %v469
  %548 = vmatprep.subr.mxu0 %v472
  %549 = vmatpush1.msra.mxu0 %v471
  %550 = vmatprep.subr.mxu0 %v474
  %551 = vmatpush1.msra.mxu0 %v473
  %552 = vmatprep.subr.mxu0 %v476
  %553 = vmatpush1.msra.mxu0 %v475
  %554 = vmatprep.subr.mxu0 %v478
  %555 = vmatpush1.msra.mxu0 %v477
  %556 = vmatprep.subr.mxu0 %v480
  %557 = vmatpush1.msra.mxu0 %v479
  %558 = vmatprep.subr.mxu0 %v482
  %559 = vmatpush1.msra.mxu0 %v481
  %560 = vmatprep.subr.mxu0 %v484
  %561 = vmatpush1.msra.mxu0 %v483
  %562 = vmatprep.subr.mxu0 %v486
  %563 = vmatpush1.msra.mxu0 %v485
  %564 = vmatprep.subr.mxu0 %v488
  %565 = vmatpush1.msra.mxu0 %v487
  %566 = vmatprep.subr.mxu0 %v490
  %567 = vmatpush1.msra.mxu0 %v489
  %568 = vmatprep.subr.mxu0 %v492
  %569 = vmatpush1.msra.mxu0 %v491
  %570 = vmatprep.subr.mxu0 %v494
  %571 = vmatpush1.msra.mxu0 %v493
  %572 = vmatprep.subr.mxu0 %v496
  %573 = vmatpush1.msra.mxu0 %v495
  %574 = vmatprep.subr.mxu0 %v498
  %575 = vmatpush1.msra.mxu0 %v497
  %576 = vmatprep.subr.mxu0 %v500
  %577 = vmatpush1.msra.mxu0 %v499
  %578 = vmatprep.subr.mxu0 %v502
  %579 = vmatpush1.msra.mxu0 %v501
  %580 = vmatprep.subr.mxu0 %v504
  %581 = vmatpush1.msra.mxu0 %v503
  %582 = vmatprep.subr.mxu0 %v506
  %583 = vmatpush1.msra.mxu0 %v505
  %584 = vmatprep.subr.mxu0 %v508
  %585 = vmatpush1.msra.mxu0 %v507
  %586 = vmatprep.subr.mxu0 %v510
  %587 = vmatpush1.msra.mxu0 %v509
  %588 = vmatprep.mubr.f32.mxu0 %v18
  %589 = vmatmul.mubr.f32.gmra.mrb[0].mxu0 %v17
  %v590 = vpop.f32.mrb[0].mxu0
  %v591 = vadd.f32 %v517, %v590
  %v592 = vpop.f32.mrb[0].mxu0
  %v593 = vadd.f32 %v521, %v592
  %594 = vmatprep.mubr.f32.mxu0 %v20
  %595 = vmatmul.mubr.f32.gmra.mrb[0].mxu0 %v19
  %v596 = vpop.f32.mrb[0].mxu0
  %v597 = vadd.f32 %v517, %v596
  %v598 = vpop.f32.mrb[0].mxu0
  %v599 = vadd.f32 %v521, %v598
  %600 = vmatprep.mubr.f32.mxu0 %v22
  %601 = vmatmul.mubr.f32.gmra.mrb[0].mxu0 %v21
  %v602 = vpop.f32.mrb[0].mxu0
  %v603 = vadd.f32 %v517, %v602
  %v604 = vpop.f32.mrb[0].mxu0
  %v605 = vadd.f32 %v521, %v604
  %606 = vmatprep.mubr.f32.mxu0 %v24
  %607 = vmatmul.mubr.f32.gmra.mrb[0].mxu0 %v23
  %v608 = vpop.f32.mrb[0].mxu0
  %v609 = vadd.f32 %v517, %v608
  %v610 = vpop.f32.mrb[0].mxu0
  %v611 = vadd.f32 %v521, %v610
  %612 = vmatprep.mubr.f32.mxu0 %v26
  %613 = vmatmul.mubr.f32.gmra.mrb[0].mxu0 %v25
  %v614 = vpop.f32.mrb[0].mxu0
  %v615 = vadd.f32 %v517, %v614
  %v616 = vpop.f32.mrb[0].mxu0
  %v617 = vadd.f32 %v521, %v616
  %618 = vmatprep.mubr.f32.mxu0 %v28
  %619 = vmatmul.mubr.f32.gmra.mrb[0].mxu0 %v27
  %v620 = vpop.f32.mrb[0].mxu0
  %v621 = vadd.f32 %v517, %v620
  %v622 = vpop.f32.mrb[0].mxu0
  %v623 = vadd.f32 %v521, %v622
  %624 = vmatprep.mubr.f32.mxu0 %v30
  %625 = vmatmul.mubr.f32.gmra.mrb[0].mxu0 %v29
  %v626 = vpop.f32.mrb[0].mxu0
  %v627 = vadd.f32 %v517, %v626
  %v628 = vpop.f32.mrb[0].mxu0
  %v629 = vadd.f32 %v521, %v628
  %630 = vmatprep.mubr.f32.mxu0 %v32
  %631 = vmatmul.mubr.f32.gmra.mrb[0].mxu0 %v31
  %v632 = vpop.f32.mrb[0].mxu0
  %v633 = vadd.f32 %v517, %v632
  %v634 = vpop.f32.mrb[0].mxu0
  %v635 = vadd.f32 %v521, %v634
  %636 = vdwg.mxu0
  %637 = vst [vmem:[#allocation4] sm:$0xff] %v591
  %638 = vst.msk [vmem:[#allocation4 + $0x8] sm:$0xff] %vm223, %v593
  %639 = vst [vmem:[#allocation4 + $0x10] sm:$0xff] %v597
  %640 = vst.msk [vmem:[#allocation4 + $0x18] sm:$0xff] %vm223, %v599
  %641 = vst [vmem:[#allocation4 + $0x20] sm:$0xff] %v603
  %642 = vst.msk [vmem:[#allocation4 + $0x28] sm:$0xff] %vm223, %v605
  %643 = vst [vmem:[#allocation4 + $0x30] sm:$0xff] %v609
  %644 = vst.msk [vmem:[#allocation4 + $0x38] sm:$0xff] %vm223, %v611
  %645 = vst [vmem:[#allocation4 + $0x40] sm:$0xff] %v615
  %646 = vst.msk [vmem:[#allocation4 + $0x48] sm:$0xff] %vm223, %v617
  %647 = vst [vmem:[#allocation4 + $0x50] sm:$0xff] %v621
  %648 = vst.msk [vmem:[#allocation4 + $0x58] sm:$0xff] %vm223, %v623
  %649 = vst [vmem:[#allocation4 + $0x60] sm:$0xff] %v627
  %650 = vst.msk [vmem:[#allocation4 + $0x68] sm:$0xff] %vm223, %v629
  %651 = vst [vmem:[#allocation4 + $0x70] sm:$0xff] %v633
  %652 = vst.msk [vmem:[#allocation4 + $0x78] sm:$0xff] %vm223, %v635
  %s653 = scalar_lea.vmem %s1, 1536
  %v654 = vld [vmem:[%s653] sm:$0xff]
  %v655 = vld [vmem:[%s653 + $0x8] sm:$0xff]
  %v656 = vld [vmem:[%s653 + $0x10] sm:$0xff]
  %v657 = vld [vmem:[%s653 + $0x18] sm:$0xff]
  %v658 = vld [vmem:[%s653 + $0x20] sm:$0xff]
  %v659 = vld [vmem:[%s653 + $0x28] sm:$0xff]
  %v660 = vld [vmem:[%s653 + $0x30] sm:$0xff]
  %v661 = vld [vmem:[%s653 + $0x38] sm:$0xff]
  %v662 = vld [vmem:[%s653 + $0x40] sm:$0xff]
  %v663 = vld [vmem:[%s653 + $0x48] sm:$0xff]
  %v664 = vld [vmem:[%s653 + $0x50] sm:$0xff]
  %v665 = vld [vmem:[%s653 + $0x58] sm:$0xff]
  %v666 = vld [vmem:[%s653 + $0x60] sm:$0xff]
  %v667 = vld [vmem:[%s653 + $0x68] sm:$0xff]
  %v668 = vld [vmem:[%s653 + $0x70] sm:$0xff]
  %v669 = vld [vmem:[%s653 + $0x78] sm:$0xff]
  %v670 = vld [vmem:[%s653 + $0x80] sm:$0xff]
  %v671 = vld [vmem:[%s653 + $0x88] sm:$0xff]
  %v672 = vld [vmem:[%s653 + $0x90] sm:$0xff]
  %v673 = vld [vmem:[%s653 + $0x98] sm:$0xff]
  %v674 = vld [vmem:[%s653 + $0xa0] sm:$0xff]
  %v675 = vld [vmem:[%s653 + $0xa8] sm:$0xff]
  %v676 = vld [vmem:[%s653 + $0xb0] sm:$0xff]
  %v677 = vld [vmem:[%s653 + $0xb8] sm:$0xff]
  %v678 = vld [vmem:[%s653 + $0xc0] sm:$0xff]
  %v679 = vld [vmem:[%s653 + $0xc8] sm:$0xff]
  %v680 = vld [vmem:[%s653 + $0xd0] sm:$0xff]
  %v681 = vld [vmem:[%s653 + $0xd8] sm:$0xff]
  %v682 = vld [vmem:[%s653 + $0xe0] sm:$0xff]
  %v683 = vld [vmem:[%s653 + $0xe8] sm:$0xff]
  %v684 = vld [vmem:[%s653 + $0xf0] sm:$0xff]
  %v685 = vld [vmem:[%s653 + $0xf8] sm:$0xff]
  %v686 = vld [vmem:[%s653 + $0x100] sm:$0xff]
  %v687 = vld [vmem:[%s653 + $0x108] sm:$0xff]
  %v688 = vld [vmem:[%s653 + $0x110] sm:$0xff]
  %v689 = vld [vmem:[%s653 + $0x118] sm:$0xff]
  %v690 = vld [vmem:[%s653 + $0x120] sm:$0xff]
  %v691 = vld [vmem:[%s653 + $0x128] sm:$0xff]
  %v692 = vld [vmem:[%s653 + $0x130] sm:$0xff]
  %v693 = vld [vmem:[%s653 + $0x138] sm:$0xff]
  %v694 = vld [vmem:[%s653 + $0x140] sm:$0xff]
  %v695 = vld [vmem:[%s653 + $0x148] sm:$0xff]
  %v696 = vld [vmem:[%s653 + $0x150] sm:$0xff]
  %v697 = vld [vmem:[%s653 + $0x158] sm:$0xff]
  %v698 = vld [vmem:[%s653 + $0x160] sm:$0xff]
  %v699 = vld [vmem:[%s653 + $0x168] sm:$0xff]
  %v700 = vld [vmem:[%s653 + $0x170] sm:$0xff]
  %v701 = vld [vmem:[%s653 + $0x178] sm:$0xff]
  %v702 = vld [vmem:[%s653 + $0x180] sm:$0xff]
  %v703 = vld [vmem:[%s653 + $0x188] sm:$0xff]
  %v704 = vld [vmem:[%s653 + $0x190] sm:$0xff]
  %v705 = vld [vmem:[%s653 + $0x198] sm:$0xff]
  %v706 = vld [vmem:[%s653 + $0x1a0] sm:$0xff]
  %v707 = vld [vmem:[%s653 + $0x1a8] sm:$0xff]
  %v708 = vld [vmem:[%s653 + $0x1b0] sm:$0xff]
  %v709 = vld [vmem:[%s653 + $0x1b8] sm:$0xff]
  %v710 = vld [vmem:[%s653 + $0x1c0] sm:$0xff]
  %v711 = vld [vmem:[%s653 + $0x1c8] sm:$0xff]
  %v712 = vld [vmem:[%s653 + $0x1d0] sm:$0xff]
  %v713 = vld [vmem:[%s653 + $0x1d8] sm:$0xff]
  %v714 = vld [vmem:[%s653 + $0x1e0] sm:$0xff]
  %v715 = vld [vmem:[%s653 + $0x1e8] sm:$0xff]
  %v716 = vld [vmem:[%s653 + $0x1f0] sm:$0xff]
  %v717 = vld [vmem:[%s653 + $0x1f8] sm:$0xff]
  %s718 = scalar_lea.vmem %s3, 6
  %v719 = vld [vmem:[%s718] sm:$0x3]
  %v721 = vlaneseq
  %v722 = vshrl.u32 %v721, 7
  %v723 = vsub.s32 0, %v722
  %v724 = vrot.slane %v719, %v723
  %v725 = vlaneseq
  %v726 = vshrl.u32 %v725, 7
  %v727 = vsub.s32 1, %v726
  %v728 = vrot.slane %v719, %v727
  %731 = vmatprep.subr.mxu0 %v655
  %732 = vmatpush1.msra.mxu0 %v654
  %733 = vmatprep.subr.mxu0 %v657
  %734 = vmatpush1.msra.mxu0 %v656
  %735 = vmatprep.subr.mxu0 %v659
  %736 = vmatpush1.msra.mxu0 %v658
  %737 = vmatprep.subr.mxu0 %v661
  %738 = vmatpush1.msra.mxu0 %v660
  %739 = vmatprep.subr.mxu0 %v663
  %740 = vmatpush1.msra.mxu0 %v662
  %741 = vmatprep.subr.mxu0 %v665
  %742 = vmatpush1.msra.mxu0 %v664
  %743 = vmatprep.subr.mxu0 %v667
  %744 = vmatpush1.msra.mxu0 %v666
  %745 = vmatprep.subr.mxu0 %v669
  %746 = vmatpush1.msra.mxu0 %v668
  %747 = vmatprep.subr.mxu0 %v671
  %748 = vmatpush1.msra.mxu0 %v670
  %749 = vmatprep.subr.mxu0 %v673
  %750 = vmatpush1.msra.mxu0 %v672
  %751 = vmatprep.subr.mxu0 %v675
  %752 = vmatpush1.msra.mxu0 %v674
  %753 = vmatprep.subr.mxu0 %v677
  %754 = vmatpush1.msra.mxu0 %v676
  %755 = vmatprep.subr.mxu0 %v679
  %756 = vmatpush1.msra.mxu0 %v678
  %757 = vmatprep.subr.mxu0 %v681
  %758 = vmatpush1.msra.mxu0 %v680
  %759 = vmatprep.subr.mxu0 %v683
  %760 = vmatpush1.msra.mxu0 %v682
  %761 = vmatprep.subr.mxu0 %v685
  %762 = vmatpush1.msra.mxu0 %v684
  %763 = vmatprep.subr.mxu0 %v687
  %764 = vmatpush1.msra.mxu0 %v686
  %765 = vmatprep.subr.mxu0 %v689
  %766 = vmatpush1.msra.mxu0 %v688
  %767 = vmatprep.subr.mxu0 %v691
  %768 = vmatpush1.msra.mxu0 %v690
  %769 = vmatprep.subr.mxu0 %v693
  %770 = vmatpush1.msra.mxu0 %v692
  %771 = vmatprep.subr.mxu0 %v695
  %772 = vmatpush1.msra.mxu0 %v694
  %773 = vmatprep.subr.mxu0 %v697
  %774 = vmatpush1.msra.mxu0 %v696
  %775 = vmatprep.subr.mxu0 %v699
  %776 = vmatpush1.msra.mxu0 %v698
  %777 = vmatprep.subr.mxu0 %v701
  %778 = vmatpush1.msra.mxu0 %v700
  %779 = vmatprep.subr.mxu0 %v703
  %780 = vmatpush1.msra.mxu0 %v702
  %781 = vmatprep.subr.mxu0 %v705
  %782 = vmatpush1.msra.mxu0 %v704
  %783 = vmatprep.subr.mxu0 %v707
  %784 = vmatpush1.msra.mxu0 %v706
  %785 = vmatprep.subr.mxu0 %v709
  %786 = vmatpush1.msra.mxu0 %v708
  %787 = vmatprep.subr.mxu0 %v711
  %788 = vmatpush1.msra.mxu0 %v710
  %789 = vmatprep.subr.mxu0 %v713
  %790 = vmatpush1.msra.mxu0 %v712
  %791 = vmatprep.subr.mxu0 %v715
  %792 = vmatpush1.msra.mxu0 %v714
  %793 = vmatprep.subr.mxu0 %v717
  %794 = vmatpush1.msra.mxu0 %v716
  %795 = vmatprep.mubr.f32.mxu0 %v18
  %796 = vmatmul.mubr.f32.gmra.mrb[0].mxu0 %v17
  %v797 = vpop.f32.mrb[0].mxu0
  %v798 = vadd.f32 %v724, %v797
  %v799 = vpop.f32.mrb[0].mxu0
  %v800 = vadd.f32 %v728, %v799
  %801 = vmatprep.mubr.f32.mxu0 %v20
  %802 = vmatmul.mubr.f32.gmra.mrb[0].mxu0 %v19
  %v803 = vpop.f32.mrb[0].mxu0
  %v804 = vadd.f32 %v724, %v803
  %v805 = vpop.f32.mrb[0].mxu0
  %v806 = vadd.f32 %v728, %v805
  %807 = vmatprep.mubr.f32.mxu0 %v22
  %808 = vmatmul.mubr.f32.gmra.mrb[0].mxu0 %v21
  %v809 = vpop.f32.mrb[0].mxu0
  %v810 = vadd.f32 %v724, %v809
  %v811 = vpop.f32.mrb[0].mxu0
  %v812 = vadd.f32 %v728, %v811
  %813 = vmatprep.mubr.f32.mxu0 %v24
  %814 = vmatmul.mubr.f32.gmra.mrb[0].mxu0 %v23
  %v815 = vpop.f32.mrb[0].mxu0
  %v816 = vadd.f32 %v724, %v815
  %v817 = vpop.f32.mrb[0].mxu0
  %v818 = vadd.f32 %v728, %v817
  %819 = vmatprep.mubr.f32.mxu0 %v26
  %820 = vmatmul.mubr.f32.gmra.mrb[0].mxu0 %v25
  %v821 = vpop.f32.mrb[0].mxu0
  %v822 = vadd.f32 %v724, %v821
  %v823 = vpop.f32.mrb[0].mxu0
  %v824 = vadd.f32 %v728, %v823
  %825 = vmatprep.mubr.f32.mxu0 %v28
  %826 = vmatmul.mubr.f32.gmra.mrb[0].mxu0 %v27
  %v827 = vpop.f32.mrb[0].mxu0
  %v828 = vadd.f32 %v724, %v827
  %v829 = vpop.f32.mrb[0].mxu0
  %v830 = vadd.f32 %v728, %v829
  %831 = vmatprep.mubr.f32.mxu0 %v30
  %832 = vmatmul.mubr.f32.gmra.mrb[0].mxu0 %v29
  %v833 = vpop.f32.mrb[0].mxu0
  %v834 = vadd.f32 %v724, %v833
  %v835 = vpop.f32.mrb[0].mxu0
  %v836 = vadd.f32 %v728, %v835
  %837 = vmatprep.mubr.f32.mxu0 %v32
  %838 = vmatmul.mubr.f32.gmra.mrb[0].mxu0 %v31
  %v839 = vpop.f32.mrb[0].mxu0
  %v840 = vadd.f32 %v724, %v839
  %v841 = vpop.f32.mrb[0].mxu0
  %v842 = vadd.f32 %v728, %v841
  %843 = vdwg.mxu0
  %844 = vst [vmem:[#allocation5] sm:$0xff] %v798
  %845 = vst.msk [vmem:[#allocation5 + $0x8] sm:$0xff] %vm223, %v800
  %846 = vst [vmem:[#allocation5 + $0x10] sm:$0xff] %v804
  %847 = vst.msk [vmem:[#allocation5 + $0x18] sm:$0xff] %vm223, %v806
  %848 = vst [vmem:[#allocation5 + $0x20] sm:$0xff] %v810
  %849 = vst.msk [vmem:[#allocation5 + $0x28] sm:$0xff] %vm223, %v812
  %850 = vst [vmem:[#allocation5 + $0x30] sm:$0xff] %v816
  %851 = vst.msk [vmem:[#allocation5 + $0x38] sm:$0xff] %vm223, %v818
  %852 = vst [vmem:[#allocation5 + $0x40] sm:$0xff] %v822
  %853 = vst.msk [vmem:[#allocation5 + $0x48] sm:$0xff] %vm223, %v824
  %854 = vst [vmem:[#allocation5 + $0x50] sm:$0xff] %v828
  %855 = vst.msk [vmem:[#allocation5 + $0x58] sm:$0xff] %vm223, %v830
  %856 = vst [vmem:[#allocation5 + $0x60] sm:$0xff] %v834
  %857 = vst.msk [vmem:[#allocation5 + $0x68] sm:$0xff] %vm223, %v836
  %858 = vst [vmem:[#allocation5 + $0x70] sm:$0xff] %v840
  %859 = vst.msk [vmem:[#allocation5 + $0x78] sm:$0xff] %vm223, %v842
  %v860 = vld [vmem:[%s2] sm:$0xff]
  %v861 = vld [vmem:[%s2 + $0x8] sm:$0xff]
  %v862 = vld [vmem:[%s2 + $0x10] sm:$0xff]
  %v863 = vld [vmem:[%s2 + $0x18] sm:$0xff]
  %v864 = vld [vmem:[%s2 + $0x20] sm:$0xff]
  %v865 = vld [vmem:[%s2 + $0x28] sm:$0xff]
  %v866 = vld [vmem:[%s2 + $0x30] sm:$0xff]
  %v867 = vld [vmem:[%s2 + $0x38] sm:$0xff]
  %v868 = vld [vmem:[%s2 + $0x40] sm:$0xff]
  %v869 = vld [vmem:[%s2 + $0x48] sm:$0xff]
  %v870 = vld [vmem:[%s2 + $0x50] sm:$0xff]
  %v871 = vld [vmem:[%s2 + $0x58] sm:$0xff]
  %v872 = vld [vmem:[%s2 + $0x60] sm:$0xff]
  %v873 = vld [vmem:[%s2 + $0x68] sm:$0xff]
  %v874 = vld [vmem:[%s2 + $0x70] sm:$0xff]
  %v875 = vld [vmem:[%s2 + $0x78] sm:$0xff]
  %v876 = vld [vmem:[%s2 + $0x80] sm:$0xff]
  %v877 = vld [vmem:[%s2 + $0x88] sm:$0xff]
  %v878 = vld [vmem:[%s2 + $0x90] sm:$0xff]
  %v879 = vld [vmem:[%s2 + $0x98] sm:$0xff]
  %v880 = vld [vmem:[%s2 + $0xa0] sm:$0xff]
  %v881 = vld [vmem:[%s2 + $0xa8] sm:$0xff]
  %v882 = vld [vmem:[%s2 + $0xb0] sm:$0xff]
  %v883 = vld [vmem:[%s2 + $0xb8] sm:$0xff]
  %v884 = vld [vmem:[%s2 + $0xc0] sm:$0xff]
  %v885 = vld [vmem:[%s2 + $0xc8] sm:$0xff]
  %v886 = vld [vmem:[%s2 + $0xd0] sm:$0xff]
  %v887 = vld [vmem:[%s2 + $0xd8] sm:$0xff]
  %v888 = vld [vmem:[%s2 + $0xe0] sm:$0xff]
  %v889 = vld [vmem:[%s2 + $0xe8] sm:$0xff]
  %v890 = vld [vmem:[%s2 + $0xf0] sm:$0xff]
  %v891 = vld [vmem:[%s2 + $0xf8] sm:$0xff]
  %v892 = vld [vmem:[%s2 + $0x100] sm:$0xff]
  %v893 = vld [vmem:[%s2 + $0x108] sm:$0xff]
  %v894 = vld [vmem:[%s2 + $0x110] sm:$0xff]
  %v895 = vld [vmem:[%s2 + $0x118] sm:$0xff]
  %v896 = vld [vmem:[%s2 + $0x120] sm:$0xff]
  %v897 = vld [vmem:[%s2 + $0x128] sm:$0xff]
  %v898 = vld [vmem:[%s2 + $0x130] sm:$0xf]
  %v899 = vld [vmem:[%s2 + $0x138] sm:$0xf]
  %s900 = scalar_lea.vmem %s2, 320
  %v901 = vld [vmem:[%s900] sm:$0xff]
  %v902 = vld [vmem:[%s900 + $0x8] sm:$0xff]
  %v903 = vld [vmem:[%s900 + $0x10] sm:$0xff]
  %v904 = vld [vmem:[%s900 + $0x18] sm:$0xff]
  %v905 = vld [vmem:[%s900 + $0x20] sm:$0xff]
  %v906 = vld [vmem:[%s900 + $0x28] sm:$0xff]
  %v907 = vld [vmem:[%s900 + $0x30] sm:$0xff]
  %v908 = vld [vmem:[%s900 + $0x38] sm:$0xff]
  %v909 = vld [vmem:[%s900 + $0x40] sm:$0xff]
  %v910 = vld [vmem:[%s900 + $0x48] sm:$0xff]
  %v911 = vld [vmem:[%s900 + $0x50] sm:$0xff]
  %v912 = vld [vmem:[%s900 + $0x58] sm:$0xff]
  %v913 = vld [vmem:[%s900 + $0x60] sm:$0xff]
  %v914 = vld [vmem:[%s900 + $0x68] sm:$0xff]
  %v915 = vld [vmem:[%s900 + $0x70] sm:$0xff]
  %v916 = vld [vmem:[%s900 + $0x78] sm:$0xff]
  %v917 = vld [vmem:[%s900 + $0x80] sm:$0xff]
  %v918 = vld [vmem:[%s900 + $0x88] sm:$0xff]
  %v919 = vld [vmem:[%s900 + $0x90] sm:$0xff]
  %v920 = vld [vmem:[%s900 + $0x98] sm:$0xff]
  %v921 = vld [vmem:[%s900 + $0xa0] sm:$0xff]
  %v922 = vld [vmem:[%s900 + $0xa8] sm:$0xff]
  %v923 = vld [vmem:[%s900 + $0xb0] sm:$0xff]
  %v924 = vld [vmem:[%s900 + $0xb8] sm:$0xff]
  %v925 = vld [vmem:[%s900 + $0xc0] sm:$0xff]
  %v926 = vld [vmem:[%s900 + $0xc8] sm:$0xff]
  %v927 = vld [vmem:[%s900 + $0xd0] sm:$0xff]
  %v928 = vld [vmem:[%s900 + $0xd8] sm:$0xff]
  %v929 = vld [vmem:[%s900 + $0xe0] sm:$0xff]
  %v930 = vld [vmem:[%s900 + $0xe8] sm:$0xff]
  %v931 = vld [vmem:[%s900 + $0xf0] sm:$0xff]
  %v932 = vld [vmem:[%s900 + $0xf8] sm:$0xff]
  %v933 = vld [vmem:[%s900 + $0x100] sm:$0xff]
  %v934 = vld [vmem:[%s900 + $0x108] sm:$0xff]
  %v935 = vld [vmem:[%s900 + $0x110] sm:$0xff]
  %v936 = vld [vmem:[%s900 + $0x118] sm:$0xff]
  %v937 = vld [vmem:[%s900 + $0x120] sm:$0xff]
  %v938 = vld [vmem:[%s900 + $0x128] sm:$0xff]
  %v939 = vld [vmem:[%s900 + $0x130] sm:$0xf]
  %v940 = vld [vmem:[%s900 + $0x138] sm:$0xf]
  %s941 = scalar_lea.vmem %s2, 640
  %v942 = vld [vmem:[%s941] sm:$0xff]
  %v943 = vld [vmem:[%s941 + $0x8] sm:$0xff]
  %v944 = vld [vmem:[%s941 + $0x10] sm:$0xff]
  %v945 = vld [vmem:[%s941 + $0x18] sm:$0xff]
  %v946 = vld [vmem:[%s941 + $0x20] sm:$0xff]
  %v947 = vld [vmem:[%s941 + $0x28] sm:$0xff]
  %v948 = vld [vmem:[%s941 + $0x30] sm:$0xff]
  %v949 = vld [vmem:[%s941 + $0x38] sm:$0xff]
  %v950 = vld [vmem:[%s941 + $0x40] sm:$0xff]
  %v951 = vld [vmem:[%s941 + $0x48] sm:$0xff]
  %v952 = vld [vmem:[%s941 + $0x50] sm:$0xff]
  %v953 = vld [vmem:[%s941 + $0x58] sm:$0xff]
  %v954 = vld [vmem:[%s941 + $0x60] sm:$0xff]
  %v955 = vld [vmem:[%s941 + $0x68] sm:$0xff]
  %v956 = vld [vmem:[%s941 + $0x70] sm:$0xff]
  %v957 = vld [vmem:[%s941 + $0x78] sm:$0xff]
  %v958 = vld [vmem:[%s941 + $0x80] sm:$0xff]
  %v959 = vld [vmem:[%s941 + $0x88] sm:$0xff]
  %v960 = vld [vmem:[%s941 + $0x90] sm:$0xff]
  %v961 = vld [vmem:[%s941 + $0x98] sm:$0xff]
  %v962 = vld [vmem:[%s941 + $0xa0] sm:$0xff]
  %v963 = vld [vmem:[%s941 + $0xa8] sm:$0xff]
  %v964 = vld [vmem:[%s941 + $0xb0] sm:$0xff]
  %v965 = vld [vmem:[%s941 + $0xb8] sm:$0xff]
  %v966 = vld [vmem:[%s941 + $0xc0] sm:$0xff]
  %v967 = vld [vmem:[%s941 + $0xc8] sm:$0xff]
  %v968 = vld [vmem:[%s941 + $0xd0] sm:$0xff]
  %v969 = vld [vmem:[%s941 + $0xd8] sm:$0xff]
  %v970 = vld [vmem:[%s941 + $0xe0] sm:$0xff]
  %v971 = vld [vmem:[%s941 + $0xe8] sm:$0xff]
  %v972 = vld [vmem:[%s941 + $0xf0] sm:$0xff]
  %v973 = vld [vmem:[%s941 + $0xf8] sm:$0xff]
  %v974 = vld [vmem:[%s941 + $0x100] sm:$0xff]
  %v975 = vld [vmem:[%s941 + $0x108] sm:$0xff]
  %v976 = vld [vmem:[%s941 + $0x110] sm:$0xff]
  %v977 = vld [vmem:[%s941 + $0x118] sm:$0xff]
  %v978 = vld [vmem:[%s941 + $0x120] sm:$0xff]
  %v979 = vld [vmem:[%s941 + $0x128] sm:$0xff]
  %v980 = vld [vmem:[%s941 + $0x130] sm:$0xf]
  %v981 = vld [vmem:[%s941 + $0x138] sm:$0xf]
  %s982 = scalar_lea.vmem %s2, 960
  %v983 = vld [vmem:[%s982] sm:$0xff]
  %v984 = vld [vmem:[%s982 + $0x8] sm:$0xff]
  %v985 = vld [vmem:[%s982 + $0x10] sm:$0xff]
  %v986 = vld [vmem:[%s982 + $0x18] sm:$0xff]
  %v987 = vld [vmem:[%s982 + $0x20] sm:$0xff]
  %v988 = vld [vmem:[%s982 + $0x28] sm:$0xff]
  %v989 = vld [vmem:[%s982 + $0x30] sm:$0xff]
  %v990 = vld [vmem:[%s982 + $0x38] sm:$0xff]
  %v991 = vld [vmem:[%s982 + $0x40] sm:$0xff]
  %v992 = vld [vmem:[%s982 + $0x48] sm:$0xff]
  %v993 = vld [vmem:[%s982 + $0x50] sm:$0xff]
  %v994 = vld [vmem:[%s982 + $0x58] sm:$0xff]
  %v995 = vld [vmem:[%s982 + $0x60] sm:$0xff]
  %v996 = vld [vmem:[%s982 + $0x68] sm:$0xff]
  %v997 = vld [vmem:[%s982 + $0x70] sm:$0xff]
  %v998 = vld [vmem:[%s982 + $0x78] sm:$0xff]
  %v999 = vld [vmem:[%s982 + $0x80] sm:$0xff]
  %v1000 = vld [vmem:[%s982 + $0x88] sm:$0xff]
  %v1001 = vld [vmem:[%s982 + $0x90] sm:$0xff]
  %v1002 = vld [vmem:[%s982 + $0x98] sm:$0xff]
  %v1003 = vld [vmem:[%s982 + $0xa0] sm:$0xff]
  %v1004 = vld [vmem:[%s982 + $0xa8] sm:$0xff]
  %v1005 = vld [vmem:[%s982 + $0xb0] sm:$0xff]
  %v1006 = vld [vmem:[%s982 + $0xb8] sm:$0xff]
  %v1007 = vld [vmem:[%s982 + $0xc0] sm:$0xff]
  %v1008 = vld [vmem:[%s982 + $0xc8] sm:$0xff]
  %v1009 = vld [vmem:[%s982 + $0xd0] sm:$0xff]
  %v1010 = vld [vmem:[%s982 + $0xd8] sm:$0xff]
  %v1011 = vld [vmem:[%s982 + $0xe0] sm:$0xff]
  %v1012 = vld [vmem:[%s982 + $0xe8] sm:$0xff]
  %v1013 = vld [vmem:[%s982 + $0xf0] sm:$0xff]
  %v1014 = vld [vmem:[%s982 + $0xf8] sm:$0xff]
  %v1015 = vld [vmem:[%s982 + $0x100] sm:$0xff]
  %v1016 = vld [vmem:[%s982 + $0x108] sm:$0xff]
  %v1017 = vld [vmem:[%s982 + $0x110] sm:$0xff]
  %v1018 = vld [vmem:[%s982 + $0x118] sm:$0xff]
  %v1019 = vld [vmem:[%s982 + $0x120] sm:$0xff]
  %v1020 = vld [vmem:[%s982 + $0x128] sm:$0xff]
  %v1021 = vld [vmem:[%s982 + $0x130] sm:$0xf]
  %v1022 = vld [vmem:[%s982 + $0x138] sm:$0xf]
  %s1023 = smul.u32 0, 2
  %s1024 = smul.addr %s1023, 8
  %s1025 = scalar_lea.vmem [#allocation2], %s1024
  %v1026 = vld [vmem:[%s1025] sm:$0xff]
  %v1027 = vld [vmem:[%s1025 + $0x8] sm:$0xff]
  %v1029 = vsel %vm223, 0.0, 0
  %vm1031 = vcmask 1043456
  %v1033 = vsel %vm1031, %v898, 0
  %v1036 = vsel %vm1031, %v899, 0
  %1038 = vmatprep.subr.mxu0 %v861
  %1039 = vmatpush1.msra.mxu0 %v860
  %1040 = vmatprep.subr.mxu0 %v863
  %1041 = vmatpush1.msra.mxu0 %v862
  %1042 = vmatprep.subr.mxu0 %v865
  %1043 = vmatpush1.msra.mxu0 %v864
  %1044 = vmatprep.subr.mxu0 %v867
  %1045 = vmatpush1.msra.mxu0 %v866
  %1046 = vmatprep.subr.mxu0 %v869
  %1047 = vmatpush1.msra.mxu0 %v868
  %1048 = vmatprep.subr.mxu0 %v871
  %1049 = vmatpush1.msra.mxu0 %v870
  %1050 = vmatprep.subr.mxu0 %v873
  %1051 = vmatpush1.msra.mxu0 %v872
  %1052 = vmatprep.subr.mxu0 %v875
  %1053 = vmatpush1.msra.mxu0 %v874
  %1054 = vmatprep.subr.mxu0 %v877
  %1055 = vmatpush1.msra.mxu0 %v876
  %1056 = vmatprep.subr.mxu0 %v879
  %1057 = vmatpush1.msra.mxu0 %v878
  %1058 = vmatprep.subr.mxu0 %v881
  %1059 = vmatpush1.msra.mxu0 %v880
  %1060 = vmatprep.subr.mxu0 %v883
  %1061 = vmatpush1.msra.mxu0 %v882
  %1062 = vmatprep.subr.mxu0 %v885
  %1063 = vmatpush1.msra.mxu0 %v884
  %1064 = vmatprep.subr.mxu0 %v887
  %1065 = vmatpush1.msra.mxu0 %v886
  %1066 = vmatprep.subr.mxu0 %v889
  %1067 = vmatpush1.msra.mxu0 %v888
  %1068 = vmatprep.subr.mxu0 %v891
  %1069 = vmatpush1.msra.mxu0 %v890
  %1070 = vmatprep.subr.mxu0 %v893
  %1071 = vmatpush1.msra.mxu0 %v892
  %1072 = vmatprep.subr.mxu0 %v895
  %1073 = vmatpush1.msra.mxu0 %v894
  %1074 = vmatprep.subr.mxu0 %v897
  %1075 = vmatpush1.msra.mxu0 %v896
  %1076 = vmatprep.subr.mxu0 %v1036
  %1077 = vmatpush1.msra.mxu0 %v1033
  %1078 = vmatprep.subr.mxu0 0.0
  %1079 = vmatpush1.msra.mxu0 0.0
  %1080 = vmatprep.subr.mxu0 0.0
  %1081 = vmatpush1.msra.mxu0 0.0
  %1082 = vmatprep.subr.mxu0 0.0
  %1083 = vmatpush1.msra.mxu0 0.0
  %1084 = vmatprep.subr.mxu0 0.0
  %1085 = vmatpush1.msra.mxu0 0.0
  %1086 = vmatprep.subr.mxu0 0.0
  %1087 = vmatpush1.msra.mxu0 0.0
  %1088 = vmatprep.subr.mxu0 0.0
  %1089 = vmatpush1.msra.mxu0 0.0
  %1090 = vmatprep.subr.mxu0 0.0
  %1091 = vmatpush1.msra.mxu0 0.0
  %1092 = vmatprep.subr.mxu0 0.0
  %1093 = vmatpush1.msra.mxu0 0.0
  %1094 = vmatprep.subr.mxu0 0.0
  %1095 = vmatpush1.msra.mxu0 0.0
  %1096 = vmatprep.subr.mxu0 0.0
  %1097 = vmatpush1.msra.mxu0 0.0
  %1098 = vmatprep.subr.mxu0 0.0
  %1099 = vmatpush1.msra.mxu0 0.0
  %1100 = vmatprep.subr.mxu0 0.0
  %1101 = vmatpush1.msra.mxu0 0.0
  %1102 = vmatprep.mubr.f32.mxu0 %v1029
  %1103 = vmatmul.mubr.f32.gmra.mrb[0].mxu0 0.0
  %v1104 = vpop.f32.mrb[0].mxu0
  %v1105 = vadd.f32 0.0, %v1104
  %v1106 = vpop.f32.mrb[0].mxu0
  %v1107 = vadd.f32 0.0, %v1106
  %1108 = vdwg.mxu0
  %v1109 = vadd.f32 %v1026, %v1105
  %v1110 = vadd.f32 %v1027, %v1107
  %v1111 = vxor.u32 %v1109, 2147483648
  %v1112 = vxor.u32 %v1110, 2147483648
  %v1113 = vmul.f32 %v1111, 1.442695
  %v1114 = vpow.pop %v1113
  %v1115 = vmul.f32 %v1112, 1.442695
  %v1116 = vpow.pop %v1115
  %v1117 = vadd.f32 %v1114, 1.0
  %v1118 = vadd.f32 %v1116, 1.0
  %v1119 = vrcp.pop %v1117
  %v1120 = vmul.f32 1.0, %v1119
  %v1121 = vrcp.pop %v1118
  %v1122 = vmul.f32 1.0, %v1121
  %s1123 = smul.addr %s1023, 8
  %s1124 = scalar_lea.vmem [#allocation3], %s1123
  %v1125 = vld [vmem:[%s1124] sm:$0xff]
  %v1126 = vld [vmem:[%s1124 + $0x8] sm:$0xff]
  %v1128 = vsel %vm1031, %v939, 0
  %v1131 = vsel %vm1031, %v940, 0
  %1133 = vmatprep.subr.mxu0 %v902
  %1134 = vmatpush1.msra.mxu0 %v901
  %1135 = vmatprep.subr.mxu0 %v904
  %1136 = vmatpush1.msra.mxu0 %v903
  %1137 = vmatprep.subr.mxu0 %v906
  %1138 = vmatpush1.msra.mxu0 %v905
  %1139 = vmatprep.subr.mxu0 %v908
  %1140 = vmatpush1.msra.mxu0 %v907
  %1141 = vmatprep.subr.mxu0 %v910
  %1142 = vmatpush1.msra.mxu0 %v909
  %1143 = vmatprep.subr.mxu0 %v912
  %1144 = vmatpush1.msra.mxu0 %v911
  %1145 = vmatprep.subr.mxu0 %v914
  %1146 = vmatpush1.msra.mxu0 %v913
  %1147 = vmatprep.subr.mxu0 %v916
  %1148 = vmatpush1.msra.mxu0 %v915
  %1149 = vmatprep.subr.mxu0 %v918
  %1150 = vmatpush1.msra.mxu0 %v917
  %1151 = vmatprep.subr.mxu0 %v920
  %1152 = vmatpush1.msra.mxu0 %v919
  %1153 = vmatprep.subr.mxu0 %v922
  %1154 = vmatpush1.msra.mxu0 %v921
  %1155 = vmatprep.subr.mxu0 %v924
  %1156 = vmatpush1.msra.mxu0 %v923
  %1157 = vmatprep.subr.mxu0 %v926
  %1158 = vmatpush1.msra.mxu0 %v925
  %1159 = vmatprep.subr.mxu0 %v928
  %1160 = vmatpush1.msra.mxu0 %v927
  %1161 = vmatprep.subr.mxu0 %v930
  %1162 = vmatpush1.msra.mxu0 %v929
  %1163 = vmatprep.subr.mxu0 %v932
  %1164 = vmatpush1.msra.mxu0 %v931
  %1165 = vmatprep.subr.mxu0 %v934
  %1166 = vmatpush1.msra.mxu0 %v933
  %1167 = vmatprep.subr.mxu0 %v936
  %1168 = vmatpush1.msra.mxu0 %v935
  %1169 = vmatprep.subr.mxu0 %v938
  %1170 = vmatpush1.msra.mxu0 %v937
  %1171 = vmatprep.subr.mxu0 %v1131
  %1172 = vmatpush1.msra.mxu0 %v1128
  %1173 = vmatprep.subr.mxu0 0.0
  %1174 = vmatpush1.msra.mxu0 0.0
  %1175 = vmatprep.subr.mxu0 0.0
  %1176 = vmatpush1.msra.mxu0 0.0
  %1177 = vmatprep.subr.mxu0 0.0
  %1178 = vmatpush1.msra.mxu0 0.0
  %1179 = vmatprep.subr.mxu0 0.0
  %1180 = vmatpush1.msra.mxu0 0.0
  %1181 = vmatprep.subr.mxu0 0.0
  %1182 = vmatpush1.msra.mxu0 0.0
  %1183 = vmatprep.subr.mxu0 0.0
  %1184 = vmatpush1.msra.mxu0 0.0
  %1185 = vmatprep.subr.mxu0 0.0
  %1186 = vmatpush1.msra.mxu0 0.0
  %1187 = vmatprep.subr.mxu0 0.0
  %1188 = vmatpush1.msra.mxu0 0.0
  %1189 = vmatprep.subr.mxu0 0.0
  %1190 = vmatpush1.msra.mxu0 0.0
  %1191 = vmatprep.subr.mxu0 0.0
  %1192 = vmatpush1.msra.mxu0 0.0
  %1193 = vmatprep.subr.mxu0 0.0
  %1194 = vmatpush1.msra.mxu0 0.0
  %1195 = vmatprep.subr.mxu0 0.0
  %1196 = vmatpush1.msra.mxu0 0.0
  %1197 = vmatprep.mubr.f32.mxu0 %v1029
  %1198 = vmatmul.mubr.f32.gmra.mrb[0].mxu0 0.0
  %v1199 = vpop.f32.mrb[0].mxu0
  %v1200 = vadd.f32 0.0, %v1199
  %v1201 = vpop.f32.mrb[0].mxu0
  %v1202 = vadd.f32 0.0, %v1201
  %1203 = vdwg.mxu0
  %v1204 = vadd.f32 %v1125, %v1200
  %v1205 = vadd.f32 %v1126, %v1202
  %v1206 = vxor.u32 %v1204, 2147483648
  %v1207 = vxor.u32 %v1205, 2147483648
  %v1208 = vmul.f32 %v1206, 1.442695
  %v1209 = vpow.pop %v1208
  %v1210 = vmul.f32 %v1207, 1.442695
  %v1211 = vpow.pop %v1210
  %v1212 = vadd.f32 %v1209, 1.0
  %v1213 = vadd.f32 %v1211, 1.0
  %v1214 = vrcp.pop %v1212
  %v1215 = vmul.f32 1.0, %v1214
  %v1216 = vrcp.pop %v1213
  %v1217 = vmul.f32 1.0, %v1216
  %s1218 = smul.addr %s1023, 8
  %s1219 = scalar_lea.vmem [#allocation4], %s1218
  %v1220 = vld [vmem:[%s1219] sm:$0xff]
  %v1221 = vld [vmem:[%s1219 + $0x8] sm:$0xff]
  %v1223 = vsel %vm1031, %v980, 0
  %v1226 = vsel %vm1031, %v981, 0
  %1228 = vmatprep.subr.mxu0 %v943
  %1229 = vmatpush1.msra.mxu0 %v942
  %1230 = vmatprep.subr.mxu0 %v945
  %1231 = vmatpush1.msra.mxu0 %v944
  %1232 = vmatprep.subr.mxu0 %v947
  %1233 = vmatpush1.msra.mxu0 %v946
  %1234 = vmatprep.subr.mxu0 %v949
  %1235 = vmatpush1.msra.mxu0 %v948
  %1236 = vmatprep.subr.mxu0 %v951
  %1237 = vmatpush1.msra.mxu0 %v950
  %1238 = vmatprep.subr.mxu0 %v953
  %1239 = vmatpush1.msra.mxu0 %v952
  %1240 = vmatprep.subr.mxu0 %v955
  %1241 = vmatpush1.msra.mxu0 %v954
  %1242 = vmatprep.subr.mxu0 %v957
  %1243 = vmatpush1.msra.mxu0 %v956
  %1244 = vmatprep.subr.mxu0 %v959
  %1245 = vmatpush1.msra.mxu0 %v958
  %1246 = vmatprep.subr.mxu0 %v961
  %1247 = vmatpush1.msra.mxu0 %v960
  %1248 = vmatprep.subr.mxu0 %v963
  %1249 = vmatpush1.msra.mxu0 %v962
  %1250 = vmatprep.subr.mxu0 %v965
  %1251 = vmatpush1.msra.mxu0 %v964
  %1252 = vmatprep.subr.mxu0 %v967
  %1253 = vmatpush1.msra.mxu0 %v966
  %1254 = vmatprep.subr.mxu0 %v969
  %1255 = vmatpush1.msra.mxu0 %v968
  %1256 = vmatprep.subr.mxu0 %v971
  %1257 = vmatpush1.msra.mxu0 %v970
  %1258 = vmatprep.subr.mxu0 %v973
  %1259 = vmatpush1.msra.mxu0 %v972
  %1260 = vmatprep.subr.mxu0 %v975
  %1261 = vmatpush1.msra.mxu0 %v974
  %1262 = vmatprep.subr.mxu0 %v977
  %1263 = vmatpush1.msra.mxu0 %v976
  %1264 = vmatprep.subr.mxu0 %v979
  %1265 = vmatpush1.msra.mxu0 %v978
  %1266 = vmatprep.subr.mxu0 %v1226
  %1267 = vmatpush1.msra.mxu0 %v1223
  %1268 = vmatprep.subr.mxu0 0.0
  %1269 = vmatpush1.msra.mxu0 0.0
  %1270 = vmatprep.subr.mxu0 0.0
  %1271 = vmatpush1.msra.mxu0 0.0
  %1272 = vmatprep.subr.mxu0 0.0
  %1273 = vmatpush1.msra.mxu0 0.0
  %1274 = vmatprep.subr.mxu0 0.0
  %1275 = vmatpush1.msra.mxu0 0.0
  %1276 = vmatprep.subr.mxu0 0.0
  %1277 = vmatpush1.msra.mxu0 0.0
  %1278 = vmatprep.subr.mxu0 0.0
  %1279 = vmatpush1.msra.mxu0 0.0
  %1280 = vmatprep.subr.mxu0 0.0
  %1281 = vmatpush1.msra.mxu0 0.0
  %1282 = vmatprep.subr.mxu0 0.0
  %1283 = vmatpush1.msra.mxu0 0.0
  %1284 = vmatprep.subr.mxu0 0.0
  %1285 = vmatpush1.msra.mxu0 0.0
  %1286 = vmatprep.subr.mxu0 0.0
  %1287 = vmatpush1.msra.mxu0 0.0
  %1288 = vmatprep.subr.mxu0 0.0
  %1289 = vmatpush1.msra.mxu0 0.0
  %1290 = vmatprep.subr.mxu0 0.0
  %1291 = vmatpush1.msra.mxu0 0.0
  %1292 = vmatprep.mubr.f32.mxu0 %v1029
  %1293 = vmatmul.mubr.f32.gmra.mrb[0].mxu0 0.0
  %v1294 = vpop.f32.mrb[0].mxu0
  %v1295 = vadd.f32 0.0, %v1294
  %v1296 = vpop.f32.mrb[0].mxu0
  %v1297 = vadd.f32 0.0, %v1296
  %1298 = vdwg.mxu0
  %v1299 = vadd.f32 %v1220, %v1295
  %v1300 = vadd.f32 %v1221, %v1297
  %v1301 = vtanh.pop %v1299
  %v1302 = vtanh.pop %v1300
  %s1303 = smul.addr %s1023, 8
  %s1304 = scalar_lea.vmem [#allocation5], %s1303
  %v1305 = vld [vmem:[%s1304] sm:$0xff]
  %v1306 = vld [vmem:[%s1304 + $0x8] sm:$0xff]
  %v1308 = vsel %vm1031, %v1021, 0
  %v1311 = vsel %vm1031, %v1022, 0
  %1313 = vmatprep.subr.mxu0 %v984
  %1314 = vmatpush1.msra.mxu0 %v983
  %1315 = vmatprep.subr.mxu0 %v986
  %1316 = vmatpush1.msra.mxu0 %v985
  %1317 = vmatprep.subr.mxu0 %v988
  %1318 = vmatpush1.msra.mxu0 %v987
  %1319 = vmatprep.subr.mxu0 %v990
  %1320 = vmatpush1.msra.mxu0 %v989
  %1321 = vmatprep.subr.mxu0 %v992
  %1322 = vmatpush1.msra.mxu0 %v991
  %1323 = vmatprep.subr.mxu0 %v994
  %1324 = vmatpush1.msra.mxu0 %v993
  %1325 = vmatprep.subr.mxu0 %v996
  %1326 = vmatpush1.msra.mxu0 %v995
  %1327 = vmatprep.subr.mxu0 %v998
  %1328 = vmatpush1.msra.mxu0 %v997
  %1329 = vmatprep.subr.mxu0 %v1000
  %1330 = vmatpush1.msra.mxu0 %v999
  %1331 = vmatprep.subr.mxu0 %v1002
  %1332 = vmatpush1.msra.mxu0 %v1001
  %1333 = vmatprep.subr.mxu0 %v1004
  %1334 = vmatpush1.msra.mxu0 %v1003
  %1335 = vmatprep.subr.mxu0 %v1006
  %1336 = vmatpush1.msra.mxu0 %v1005
  %1337 = vmatprep.subr.mxu0 %v1008
  %1338 = vmatpush1.msra.mxu0 %v1007
  %1339 = vmatprep.subr.mxu0 %v1010
  %1340 = vmatpush1.msra.mxu0 %v1009
  %1341 = vmatprep.subr.mxu0 %v1012
  %1342 = vmatpush1.msra.mxu0 %v1011
  %1343 = vmatprep.subr.mxu0 %v1014
  %1344 = vmatpush1.msra.mxu0 %v1013
  %1345 = vmatprep.subr.mxu0 %v1016
  %1346 = vmatpush1.msra.mxu0 %v1015
  %1347 = vmatprep.subr.mxu0 %v1018
  %1348 = vmatpush1.msra.mxu0 %v1017
  %1349 = vmatprep.subr.mxu0 %v1020
  %1350 = vmatpush1.msra.mxu0 %v1019
  %1351 = vmatprep.subr.mxu0 %v1311
  %1352 = vmatpush1.msra.mxu0 %v1308
  %1353 = vmatprep.subr.mxu0 0.0
  %1354 = vmatpush1.msra.mxu0 0.0
  %1355 = vmatprep.subr.mxu0 0.0
  %1356 = vmatpush1.msra.mxu0 0.0
  %1357 = vmatprep.subr.mxu0 0.0
  %1358 = vmatpush1.msra.mxu0 0.0
  %1359 = vmatprep.subr.mxu0 0.0
  %1360 = vmatpush1.msra.mxu0 0.0
  %1361 = vmatprep.subr.mxu0 0.0
  %1362 = vmatpush1.msra.mxu0 0.0
  %1363 = vmatprep.subr.mxu0 0.0
  %1364 = vmatpush1.msra.mxu0 0.0
  %1365 = vmatprep.subr.mxu0 0.0
  %1366 = vmatpush1.msra.mxu0 0.0
  %1367 = vmatprep.subr.mxu0 0.0
  %1368 = vmatpush1.msra.mxu0 0.0
  %1369 = vmatprep.subr.mxu0 0.0
  %1370 = vmatpush1.msra.mxu0 0.0
  %1371 = vmatprep.subr.mxu0 0.0
  %1372 = vmatpush1.msra.mxu0 0.0
  %1373 = vmatprep.subr.mxu0 0.0
  %1374 = vmatpush1.msra.mxu0 0.0
  %1375 = vmatprep.subr.mxu0 0.0
  %1376 = vmatpush1.msra.mxu0 0.0
  %1377 = vmatprep.mubr.f32.mxu0 %v1029
  %1378 = vmatmul.mubr.f32.gmra.mrb[0].mxu0 0.0
  %v1379 = vpop.f32.mrb[0].mxu0
  %v1380 = vadd.f32 0.0, %v1379
  %v1381 = vpop.f32.mrb[0].mxu0
  %v1382 = vadd.f32 0.0, %v1381
  %1383 = vdwg.mxu0
  %v1384 = vadd.f32 %v1305, %v1380
  %v1385 = vadd.f32 %v1306, %v1382
  %v1386 = vxor.u32 %v1384, 2147483648
  %v1387 = vxor.u32 %v1385, 2147483648
  %v1388 = vmul.f32 %v1386, 1.442695
  %v1389 = vpow.pop %v1388
  %v1390 = vmul.f32 %v1387, 1.442695
  %v1391 = vpow.pop %v1390
  %v1392 = vadd.f32 %v1389, 1.0
  %v1393 = vadd.f32 %v1391, 1.0
  %v1394 = vrcp.pop %v1392
  %v1395 = vmul.f32 1.0, %v1394
  %v1396 = vrcp.pop %v1393
  %v1397 = vmul.f32 1.0, %v1396
  %v1398 = vmul.f32 %v1215, 0.0
  %v1399 = vmul.f32 %v1217, 0.0
  %v1400 = vmul.f32 %v1120, %v1301
  %v1401 = vmul.f32 %v1122, %v1302
  %v1402 = vadd.f32 %v1398, %v1400
  %v1403 = vadd.f32 %v1399, %v1401
  %v1404 = vtanh.pop %v1402
  %v1405 = vtanh.pop %v1403
  %v1406 = vmul.f32 %v1395, %v1404
  %v1407 = vmul.f32 %v1397, %v1405
  %s1408 = smul.u32 1, 2
  %s1409 = smul.addr %s1408, 8
  %s1410 = scalar_lea.vmem [#allocation2], %s1409
  %v1411 = vld [vmem:[%s1410] sm:$0xff]
  %v1412 = vld [vmem:[%s1410 + $0x8] sm:$0xff]
  %v1414 = vsel %vm223, %v1407, 0
  %1416 = vmatprep.subr.mxu0 %v861
  %1417 = vmatpush1.msra.mxu0 %v860
  %1418 = vmatprep.subr.mxu0 %v863
  %1419 = vmatpush1.msra.mxu0 %v862
  %1420 = vmatprep.subr.mxu0 %v865
  %1421 = vmatpush1.msra.mxu0 %v864
  %1422 = vmatprep.subr.mxu0 %v867
  %1423 = vmatpush1.msra.mxu0 %v866
  %1424 = vmatprep.subr.mxu0 %v869
  %1425 = vmatpush1.msra.mxu0 %v868
  %1426 = vmatprep.subr.mxu0 %v871
  %1427 = vmatpush1.msra.mxu0 %v870
  %1428 = vmatprep.subr.mxu0 %v873
  %1429 = vmatpush1.msra.mxu0 %v872
  %1430 = vmatprep.subr.mxu0 %v875
  %1431 = vmatpush1.msra.mxu0 %v874
  %1432 = vmatprep.subr.mxu0 %v877
  %1433 = vmatpush1.msra.mxu0 %v876
  %1434 = vmatprep.subr.mxu0 %v879
  %1435 = vmatpush1.msra.mxu0 %v878
  %1436 = vmatprep.subr.mxu0 %v881
  %1437 = vmatpush1.msra.mxu0 %v880
  %1438 = vmatprep.subr.mxu0 %v883
  %1439 = vmatpush1.msra.mxu0 %v882
  %1440 = vmatprep.subr.mxu0 %v885
  %1441 = vmatpush1.msra.mxu0 %v884
  %1442 = vmatprep.subr.mxu0 %v887
  %1443 = vmatpush1.msra.mxu0 %v886
  %1444 = vmatprep.subr.mxu0 %v889
  %1445 = vmatpush1.msra.mxu0 %v888
  %1446 = vmatprep.subr.mxu0 %v891
  %1447 = vmatpush1.msra.mxu0 %v890
  %1448 = vmatprep.subr.mxu0 %v893
  %1449 = vmatpush1.msra.mxu0 %v892
  %1450 = vmatprep.subr.mxu0 %v895
  %1451 = vmatpush1.msra.mxu0 %v894
  %1452 = vmatprep.subr.mxu0 %v897
  %1453 = vmatpush1.msra.mxu0 %v896
  %1454 = vmatprep.subr.mxu0 %v1036
  %1455 = vmatpush1.msra.mxu0 %v1033
  %1456 = vmatprep.subr.mxu0 0.0
  %1457 = vmatpush1.msra.mxu0 0.0
  %1458 = vmatprep.subr.mxu0 0.0
  %1459 = vmatpush1.msra.mxu0 0.0
  %1460 = vmatprep.subr.mxu0 0.0
  %1461 = vmatpush1.msra.mxu0 0.0
  %1462 = vmatprep.subr.mxu0 0.0
  %1463 = vmatpush1.msra.mxu0 0.0
  %1464 = vmatprep.subr.mxu0 0.0
  %1465 = vmatpush1.msra.mxu0 0.0
  %1466 = vmatprep.subr.mxu0 0.0
  %1467 = vmatpush1.msra.mxu0 0.0
  %1468 = vmatprep.subr.mxu0 0.0
  %1469 = vmatpush1.msra.mxu0 0.0
  %1470 = vmatprep.subr.mxu0 0.0
  %1471 = vmatpush1.msra.mxu0 0.0
  %1472 = vmatprep.subr.mxu0 0.0
  %1473 = vmatpush1.msra.mxu0 0.0
  %1474 = vmatprep.subr.mxu0 0.0
  %1475 = vmatpush1.msra.mxu0 0.0
  %1476 = vmatprep.subr.mxu0 0.0
  %1477 = vmatpush1.msra.mxu0 0.0
  %1478 = vmatprep.subr.mxu0 0.0
  %1479 = vmatpush1.msra.mxu0 0.0
  %1480 = vmatprep.mubr.f32.mxu0 %v1414
  %1481 = vmatmul.mubr.f32.gmra.mrb[0].mxu0 %v1406
  %v1482 = vpop.f32.mrb[0].mxu0
  %v1483 = vadd.f32 0.0, %v1482
  %v1484 = vpop.f32.mrb[0].mxu0
  %v1485 = vadd.f32 0.0, %v1484
  %1486 = vdwg.mxu0
  %v1487 = vadd.f32 %v1411, %v1483
  %v1488 = vadd.f32 %v1412, %v1485
  %v1489 = vxor.u32 %v1487, 2147483648
  %v1490 = vxor.u32 %v1488, 2147483648
  %v1491 = vmul.f32 %v1489, 1.442695
  %v1492 = vpow.pop %v1491
  %v1493 = vmul.f32 %v1490, 1.442695
  %v1494 = vpow.pop %v1493
  %v1495 = vadd.f32 %v1492, 1.0
  %v1496 = vadd.f32 %v1494, 1.0
  %v1497 = vrcp.pop %v1495
  %v1498 = vmul.f32 1.0, %v1497
  %v1499 = vrcp.pop %v1496
  %v1500 = vmul.f32 1.0, %v1499
  %s1501 = smul.addr %s1408, 8
  %s1502 = scalar_lea.vmem [#allocation3], %s1501
  %v1503 = vld [vmem:[%s1502] sm:$0xff]
  %v1504 = vld [vmem:[%s1502 + $0x8] sm:$0xff]
  %1505 = vmatprep.subr.mxu0 %v902
  %1506 = vmatpush1.msra.mxu0 %v901
  %1507 = vmatprep.subr.mxu0 %v904
  %1508 = vmatpush1.msra.mxu0 %v903
  %1509 = vmatprep.subr.mxu0 %v906
  %1510 = vmatpush1.msra.mxu0 %v905
  %1511 = vmatprep.subr.mxu0 %v908
  %1512 = vmatpush1.msra.mxu0 %v907
  %1513 = vmatprep.subr.mxu0 %v910
  %1514 = vmatpush1.msra.mxu0 %v909
  %1515 = vmatprep.subr.mxu0 %v912
  %1516 = vmatpush1.msra.mxu0 %v911
  %1517 = vmatprep.subr.mxu0 %v914
  %1518 = vmatpush1.msra.mxu0 %v913
  %1519 = vmatprep.subr.mxu0 %v916
  %1520 = vmatpush1.msra.mxu0 %v915
  %1521 = vmatprep.subr.mxu0 %v918
  %1522 = vmatpush1.msra.mxu0 %v917
  %1523 = vmatprep.subr.mxu0 %v920
  %1524 = vmatpush1.msra.mxu0 %v919
  %1525 = vmatprep.subr.mxu0 %v922
  %1526 = vmatpush1.msra.mxu0 %v921
  %1527 = vmatprep.subr.mxu0 %v924
  %1528 = vmatpush1.msra.mxu0 %v923
  %1529 = vmatprep.subr.mxu0 %v926
  %1530 = vmatpush1.msra.mxu0 %v925
  %1531 = vmatprep.subr.mxu0 %v928
  %1532 = vmatpush1.msra.mxu0 %v927
  %1533 = vmatprep.subr.mxu0 %v930
  %1534 = vmatpush1.msra.mxu0 %v929
  %1535 = vmatprep.subr.mxu0 %v932
  %1536 = vmatpush1.msra.mxu0 %v931
  %1537 = vmatprep.subr.mxu0 %v934
  %1538 = vmatpush1.msra.mxu0 %v933
  %1539 = vmatprep.subr.mxu0 %v936
  %1540 = vmatpush1.msra.mxu0 %v935
  %1541 = vmatprep.subr.mxu0 %v938
  %1542 = vmatpush1.msra.mxu0 %v937
  %1543 = vmatprep.subr.mxu0 %v1131
  %1544 = vmatpush1.msra.mxu0 %v1128
  %1545 = vmatprep.subr.mxu0 0.0
  %1546 = vmatpush1.msra.mxu0 0.0
  %1547 = vmatprep.subr.mxu0 0.0
  %1548 = vmatpush1.msra.mxu0 0.0
  %1549 = vmatprep.subr.mxu0 0.0
  %1550 = vmatpush1.msra.mxu0 0.0
  %1551 = vmatprep.subr.mxu0 0.0
  %1552 = vmatpush1.msra.mxu0 0.0
  %1553 = vmatprep.subr.mxu0 0.0
  %1554 = vmatpush1.msra.mxu0 0.0
  %1555 = vmatprep.subr.mxu0 0.0
  %1556 = vmatpush1.msra.mxu0 0.0
  %1557 = vmatprep.subr.mxu0 0.0
  %1558 = vmatpush1.msra.mxu0 0.0
  %1559 = vmatprep.subr.mxu0 0.0
  %1560 = vmatpush1.msra.mxu0 0.0
  %1561 = vmatprep.subr.mxu0 0.0
  %1562 = vmatpush1.msra.mxu0 0.0
  %1563 = vmatprep.subr.mxu0 0.0
  %1564 = vmatpush1.msra.mxu0 0.0
  %1565 = vmatprep.subr.mxu0 0.0
  %1566 = vmatpush1.msra.mxu0 0.0
  %1567 = vmatprep.subr.mxu0 0.0
  %1568 = vmatpush1.msra.mxu0 0.0
  %1569 = vmatprep.mubr.f32.mxu0 %v1414
  %1570 = vmatmul.mubr.f32.gmra.mrb[0].mxu0 %v1406
  %v1571 = vpop.f32.mrb[0].mxu0
  %v1572 = vadd.f32 0.0, %v1571
  %v1573 = vpop.f32.mrb[0].mxu0
  %v1574 = vadd.f32 0.0, %v1573
  %1575 = vdwg.mxu0
  %v1576 = vadd.f32 %v1503, %v1572
  %v1577 = vadd.f32 %v1504, %v1574
  %v1578 = vxor.u32 %v1576, 2147483648
  %v1579 = vxor.u32 %v1577, 2147483648
  %v1580 = vmul.f32 %v1578, 1.442695
  %v1581 = vpow.pop %v1580
  %v1582 = vmul.f32 %v1579, 1.442695
  %v1583 = vpow.pop %v1582
  %v1584 = vadd.f32 %v1581, 1.0
  %v1585 = vadd.f32 %v1583, 1.0
  %v1586 = vrcp.pop %v1584
  %v1587 = vmul.f32 1.0, %v1586
  %v1588 = vrcp.pop %v1585
  %v1589 = vmul.f32 1.0, %v1588
  %s1590 = smul.addr %s1408, 8
  %s1591 = scalar_lea.vmem [#allocation4], %s1590
  %v1592 = vld [vmem:[%s1591] sm:$0xff]
  %v1593 = vld [vmem:[%s1591 + $0x8] sm:$0xff]
  %1594 = vmatprep.subr.mxu0 %v943
  %1595 = vmatpush1.msra.mxu0 %v942
  %1596 = vmatprep.subr.mxu0 %v945
  %1597 = vmatpush1.msra.mxu0 %v944
  %1598 = vmatprep.subr.mxu0 %v947
  %1599 = vmatpush1.msra.mxu0 %v946
  %1600 = vmatprep.subr.mxu0 %v949
  %1601 = vmatpush1.msra.mxu0 %v948
  %1602 = vmatprep.subr.mxu0 %v951
  %1603 = vmatpush1.msra.mxu0 %v950
  %1604 = vmatprep.subr.mxu0 %v953
  %1605 = vmatpush1.msra.mxu0 %v952
  %1606 = vmatprep.subr.mxu0 %v955
  %1607 = vmatpush1.msra.mxu0 %v954
  %1608 = vmatprep.subr.mxu0 %v957
  %1609 = vmatpush1.msra.mxu0 %v956
  %1610 = vmatprep.subr.mxu0 %v959
  %1611 = vmatpush1.msra.mxu0 %v958
  %1612 = vmatprep.subr.mxu0 %v961
  %1613 = vmatpush1.msra.mxu0 %v960
  %1614 = vmatprep.subr.mxu0 %v963
  %1615 = vmatpush1.msra.mxu0 %v962
  %1616 = vmatprep.subr.mxu0 %v965
  %1617 = vmatpush1.msra.mxu0 %v964
  %1618 = vmatprep.subr.mxu0 %v967
  %1619 = vmatpush1.msra.mxu0 %v966
  %1620 = vmatprep.subr.mxu0 %v969
  %1621 = vmatpush1.msra.mxu0 %v968
  %1622 = vmatprep.subr.mxu0 %v971
  %1623 = vmatpush1.msra.mxu0 %v970
  %1624 = vmatprep.subr.mxu0 %v973
  %1625 = vmatpush1.msra.mxu0 %v972
  %1626 = vmatprep.subr.mxu0 %v975
  %1627 = vmatpush1.msra.mxu0 %v974
  %1628 = vmatprep.subr.mxu0 %v977
  %1629 = vmatpush1.msra.mxu0 %v976
  %1630 = vmatprep.subr.mxu0 %v979
  %1631 = vmatpush1.msra.mxu0 %v978
  %1632 = vmatprep.subr.mxu0 %v1226
  %1633 = vmatpush1.msra.mxu0 %v1223
  %1634 = vmatprep.subr.mxu0 0.0
  %1635 = vmatpush1.msra.mxu0 0.0
  %1636 = vmatprep.subr.mxu0 0.0
  %1637 = vmatpush1.msra.mxu0 0.0
  %1638 = vmatprep.subr.mxu0 0.0
  %1639 = vmatpush1.msra.mxu0 0.0
  %1640 = vmatprep.subr.mxu0 0.0
  %1641 = vmatpush1.msra.mxu0 0.0
  %1642 = vmatprep.subr.mxu0 0.0
  %1643 = vmatpush1.msra.mxu0 0.0
  %1644 = vmatprep.subr.mxu0 0.0
  %1645 = vmatpush1.msra.mxu0 0.0
  %1646 = vmatprep.subr.mxu0 0.0
  %1647 = vmatpush1.msra.mxu0 0.0
  %1648 = vmatprep.subr.mxu0 0.0
  %1649 = vmatpush1.msra.mxu0 0.0
  %1650 = vmatprep.subr.mxu0 0.0
  %1651 = vmatpush1.msra.mxu0 0.0
  %1652 = vmatprep.subr.mxu0 0.0
  %1653 = vmatpush1.msra.mxu0 0.0
  %1654 = vmatprep.subr.mxu0 0.0
  %1655 = vmatpush1.msra.mxu0 0.0
  %1656 = vmatprep.subr.mxu0 0.0
  %1657 = vmatpush1.msra.mxu0 0.0
  %1658 = vmatprep.mubr.f32.mxu0 %v1414
  %1659 = vmatmul.mubr.f32.gmra.mrb[0].mxu0 %v1406
  %v1660 = vpop.f32.mrb[0].mxu0
  %v1661 = vadd.f32 0.0, %v1660
  %v1662 = vpop.f32.mrb[0].mxu0
  %v1663 = vadd.f32 0.0, %v1662
  %1664 = vdwg.mxu0
  %v1665 = vadd.f32 %v1592, %v1661
  %v1666 = vadd.f32 %v1593, %v1663
  %v1667 = vtanh.pop %v1665
  %v1668 = vtanh.pop %v1666
  %s1669 = smul.addr %s1408, 8
  %s1670 = scalar_lea.vmem [#allocation5], %s1669
  %v1671 = vld [vmem:[%s1670] sm:$0xff]
  %v1672 = vld [vmem:[%s1670 + $0x8] sm:$0xff]
  %1673 = vmatprep.subr.mxu0 %v984
  %1674 = vmatpush1.msra.mxu0 %v983
  %1675 = vmatprep.subr.mxu0 %v986
  %1676 = vmatpush1.msra.mxu0 %v985
  %1677 = vmatprep.subr.mxu0 %v988
  %1678 = vmatpush1.msra.mxu0 %v987
  %1679 = vmatprep.subr.mxu0 %v990
  %1680 = vmatpush1.msra.mxu0 %v989
  %1681 = vmatprep.subr.mxu0 %v992
  %1682 = vmatpush1.msra.mxu0 %v991
  %1683 = vmatprep.subr.mxu0 %v994
  %1684 = vmatpush1.msra.mxu0 %v993
  %1685 = vmatprep.subr.mxu0 %v996
  %1686 = vmatpush1.msra.mxu0 %v995
  %1687 = vmatprep.subr.mxu0 %v998
  %1688 = vmatpush1.msra.mxu0 %v997
  %1689 = vmatprep.subr.mxu0 %v1000
  %1690 = vmatpush1.msra.mxu0 %v999
  %1691 = vmatprep.subr.mxu0 %v1002
  %1692 = vmatpush1.msra.mxu0 %v1001
  %1693 = vmatprep.subr.mxu0 %v1004
  %1694 = vmatpush1.msra.mxu0 %v1003
  %1695 = vmatprep.subr.mxu0 %v1006
  %1696 = vmatpush1.msra.mxu0 %v1005
  %1697 = vmatprep.subr.mxu0 %v1008
  %1698 = vmatpush1.msra.mxu0 %v1007
  %1699 = vmatprep.subr.mxu0 %v1010
  %1700 = vmatpush1.msra.mxu0 %v1009
  %1701 = vmatprep.subr.mxu0 %v1012
  %1702 = vmatpush1.msra.mxu0 %v1011
  %1703 = vmatprep.subr.mxu0 %v1014
  %1704 = vmatpush1.msra.mxu0 %v1013
  %1705 = vmatprep.subr.mxu0 %v1016
  %1706 = vmatpush1.msra.mxu0 %v1015
  %1707 = vmatprep.subr.mxu0 %v1018
  %1708 = vmatpush1.msra.mxu0 %v1017
  %1709 = vmatprep.subr.mxu0 %v1020
  %1710 = vmatpush1.msra.mxu0 %v1019
  %1711 = vmatprep.subr.mxu0 %v1311
  %1712 = vmatpush1.msra.mxu0 %v1308
  %1713 = vmatprep.subr.mxu0 0.0
  %1714 = vmatpush1.msra.mxu0 0.0
  %1715 = vmatprep.subr.mxu0 0.0
  %1716 = vmatpush1.msra.mxu0 0.0
  %1717 = vmatprep.subr.mxu0 0.0
  %1718 = vmatpush1.msra.mxu0 0.0
  %1719 = vmatprep.subr.mxu0 0.0
  %1720 = vmatpush1.msra.mxu0 0.0
  %1721 = vmatprep.subr.mxu0 0.0
  %1722 = vmatpush1.msra.mxu0 0.0
  %1723 = vmatprep.subr.mxu0 0.0
  %1724 = vmatpush1.msra.mxu0 0.0
  %1725 = vmatprep.subr.mxu0 0.0
  %1726 = vmatpush1.msra.mxu0 0.0
  %1727 = vmatprep.subr.mxu0 0.0
  %1728 = vmatpush1.msra.mxu0 0.0
  %1729 = vmatprep.subr.mxu0 0.0
  %1730 = vmatpush1.msra.mxu0 0.0
  %1731 = vmatprep.subr.mxu0 0.0
  %1732 = vmatpush1.msra.mxu0 0.0
  %1733 = vmatprep.subr.mxu0 0.0
  %1734 = vmatpush1.msra.mxu0 0.0
  %1735 = vmatprep.subr.mxu0 0.0
  %1736 = vmatpush1.msra.mxu0 0.0
  %1737 = vmatprep.mubr.f32.mxu0 %v1414
  %1738 = vmatmul.mubr.f32.gmra.mrb[0].mxu0 %v1406
  %v1739 = vpop.f32.mrb[0].mxu0
  %v1740 = vadd.f32 0.0, %v1739
  %v1741 = vpop.f32.mrb[0].mxu0
  %v1742 = vadd.f32 0.0, %v1741
  %1743 = vdwg.mxu0
  %v1744 = vadd.f32 %v1671, %v1740
  %v1745 = vadd.f32 %v1672, %v1742
  %v1746 = vxor.u32 %v1744, 2147483648
  %v1747 = vxor.u32 %v1745, 2147483648
  %v1748 = vmul.f32 %v1746, 1.442695
  %v1749 = vpow.pop %v1748
  %v1750 = vmul.f32 %v1747, 1.442695
  %v1751 = vpow.pop %v1750
  %v1752 = vadd.f32 %v1749, 1.0
  %v1753 = vadd.f32 %v1751, 1.0
  %v1754 = vrcp.pop %v1752
  %v1755 = vmul.f32 1.0, %v1754
  %v1756 = vrcp.pop %v1753
  %v1757 = vmul.f32 1.0, %v1756
  %v1758 = vmul.f32 %v1587, %v1402
  %v1759 = vmul.f32 %v1589, %v1403
  %v1760 = vmul.f32 %v1498, %v1667
  %v1761 = vmul.f32 %v1500, %v1668
  %v1762 = vadd.f32 %v1758, %v1760
  %v1763 = vadd.f32 %v1759, %v1761
  %v1764 = vtanh.pop %v1762
  %v1765 = vtanh.pop %v1763
  %v1766 = vmul.f32 %v1755, %v1764
  %v1767 = vmul.f32 %v1757, %v1765
  %s1768 = smul.u32 2, 2
  %s1769 = smul.addr %s1768, 8
  %s1770 = scalar_lea.vmem [#allocation2], %s1769
  %v1771 = vld [vmem:[%s1770] sm:$0xff]
  %v1772 = vld [vmem:[%s1770 + $0x8] sm:$0xff]
  %v1774 = vsel %vm223, %v1767, 0
  %1776 = vmatprep.subr.mxu0 %v861
  %1777 = vmatpush1.msra.mxu0 %v860
  %1778 = vmatprep.subr.mxu0 %v863
  %1779 = vmatpush1.msra.mxu0 %v862
  %1780 = vmatprep.subr.mxu0 %v865
  %1781 = vmatpush1.msra.mxu0 %v864
  %1782 = vmatprep.subr.mxu0 %v867
  %1783 = vmatpush1.msra.mxu0 %v866
  %1784 = vmatprep.subr.mxu0 %v869
  %1785 = vmatpush1.msra.mxu0 %v868
  %1786 = vmatprep.subr.mxu0 %v871
  %1787 = vmatpush1.msra.mxu0 %v870
  %1788 = vmatprep.subr.mxu0 %v873
  %1789 = vmatpush1.msra.mxu0 %v872
  %1790 = vmatprep.subr.mxu0 %v875
  %1791 = vmatpush1.msra.mxu0 %v874
  %1792 = vmatprep.subr.mxu0 %v877
  %1793 = vmatpush1.msra.mxu0 %v876
  %1794 = vmatprep.subr.mxu0 %v879
  %1795 = vmatpush1.msra.mxu0 %v878
  %1796 = vmatprep.subr.mxu0 %v881
  %1797 = vmatpush1.msra.mxu0 %v880
  %1798 = vmatprep.subr.mxu0 %v883
  %1799 = vmatpush1.msra.mxu0 %v882
  %1800 = vmatprep.subr.mxu0 %v885
  %1801 = vmatpush1.msra.mxu0 %v884
  %1802 = vmatprep.subr.mxu0 %v887
  %1803 = vmatpush1.msra.mxu0 %v886
  %1804 = vmatprep.subr.mxu0 %v889
  %1805 = vmatpush1.msra.mxu0 %v888
  %1806 = vmatprep.subr.mxu0 %v891
  %1807 = vmatpush1.msra.mxu0 %v890
  %1808 = vmatprep.subr.mxu0 %v893
  %1809 = vmatpush1.msra.mxu0 %v892
  %1810 = vmatprep.subr.mxu0 %v895
  %1811 = vmatpush1.msra.mxu0 %v894
  %1812 = vmatprep.subr.mxu0 %v897
  %1813 = vmatpush1.msra.mxu0 %v896
  %1814 = vmatprep.subr.mxu0 %v1036
  %1815 = vmatpush1.msra.mxu0 %v1033
  %1816 = vmatprep.subr.mxu0 0.0
  %1817 = vmatpush1.msra.mxu0 0.0
  %1818 = vmatprep.subr.mxu0 0.0
  %1819 = vmatpush1.msra.mxu0 0.0
  %1820 = vmatprep.subr.mxu0 0.0
  %1821 = vmatpush1.msra.mxu0 0.0
  %1822 = vmatprep.subr.mxu0 0.0
  %1823 = vmatpush1.msra.mxu0 0.0
  %1824 = vmatprep.subr.mxu0 0.0
  %1825 = vmatpush1.msra.mxu0 0.0
  %1826 = vmatprep.subr.mxu0 0.0
  %1827 = vmatpush1.msra.mxu0 0.0
  %1828 = vmatprep.subr.mxu0 0.0
  %1829 = vmatpush1.msra.mxu0 0.0
  %1830 = vmatprep.subr.mxu0 0.0
  %1831 = vmatpush1.msra.mxu0 0.0
  %1832 = vmatprep.subr.mxu0 0.0
  %1833 = vmatpush1.msra.mxu0 0.0
  %1834 = vmatprep.subr.mxu0 0.0
  %1835 = vmatpush1.msra.mxu0 0.0
  %1836 = vmatprep.subr.mxu0 0.0
  %1837 = vmatpush1.msra.mxu0 0.0
  %1838 = vmatprep.subr.mxu0 0.0
  %1839 = vmatpush1.msra.mxu0 0.0
  %1840 = vmatprep.mubr.f32.mxu0 %v1774
  %1841 = vmatmul.mubr.f32.gmra.mrb[0].mxu0 %v1766
  %v1842 = vpop.f32.mrb[0].mxu0
  %v1843 = vadd.f32 0.0, %v1842
  %v1844 = vpop.f32.mrb[0].mxu0
  %v1845 = vadd.f32 0.0, %v1844
  %1846 = vdwg.mxu0
  %v1847 = vadd.f32 %v1771, %v1843
  %v1848 = vadd.f32 %v1772, %v1845
  %v1849 = vxor.u32 %v1847, 2147483648
  %v1850 = vxor.u32 %v1848, 2147483648
  %v1851 = vmul.f32 %v1849, 1.442695
  %v1852 = vpow.pop %v1851
  %v1853 = vmul.f32 %v1850, 1.442695
  %v1854 = vpow.pop %v1853
  %v1855 = vadd.f32 %v1852, 1.0
  %v1856 = vadd.f32 %v1854, 1.0
  %v1857 = vrcp.pop %v1855
  %v1858 = vmul.f32 1.0, %v1857
  %v1859 = vrcp.pop %v1856
  %v1860 = vmul.f32 1.0, %v1859
  %s1861 = smul.addr %s1768, 8
  %s1862 = scalar_lea.vmem [#allocation3], %s1861
  %v1863 = vld [vmem:[%s1862] sm:$0xff]
  %v1864 = vld [vmem:[%s1862 + $0x8] sm:$0xff]
  %1865 = vmatprep.subr.mxu0 %v902
  %1866 = vmatpush1.msra.mxu0 %v901
  %1867 = vmatprep.subr.mxu0 %v904
  %1868 = vmatpush1.msra.mxu0 %v903
  %1869 = vmatprep.subr.mxu0 %v906
  %1870 = vmatpush1.msra.mxu0 %v905
  %1871 = vmatprep.subr.mxu0 %v908
  %1872 = vmatpush1.msra.mxu0 %v907
  %1873 = vmatprep.subr.mxu0 %v910
  %1874 = vmatpush1.msra.mxu0 %v909
  %1875 = vmatprep.subr.mxu0 %v912
  %1876 = vmatpush1.msra.mxu0 %v911
  %1877 = vmatprep.subr.mxu0 %v914
  %1878 = vmatpush1.msra.mxu0 %v913
  %1879 = vmatprep.subr.mxu0 %v916
  %1880 = vmatpush1.msra.mxu0 %v915
  %1881 = vmatprep.subr.mxu0 %v918
  %1882 = vmatpush1.msra.mxu0 %v917
  %1883 = vmatprep.subr.mxu0 %v920
  %1884 = vmatpush1.msra.mxu0 %v919
  %1885 = vmatprep.subr.mxu0 %v922
  %1886 = vmatpush1.msra.mxu0 %v921
  %1887 = vmatprep.subr.mxu0 %v924
  %1888 = vmatpush1.msra.mxu0 %v923
  %1889 = vmatprep.subr.mxu0 %v926
  %1890 = vmatpush1.msra.mxu0 %v925
  %1891 = vmatprep.subr.mxu0 %v928
  %1892 = vmatpush1.msra.mxu0 %v927
  %1893 = vmatprep.subr.mxu0 %v930
  %1894 = vmatpush1.msra.mxu0 %v929
  %1895 = vmatprep.subr.mxu0 %v932
  %1896 = vmatpush1.msra.mxu0 %v931
  %1897 = vmatprep.subr.mxu0 %v934
  %1898 = vmatpush1.msra.mxu0 %v933
  %1899 = vmatprep.subr.mxu0 %v936
  %1900 = vmatpush1.msra.mxu0 %v935
  %1901 = vmatprep.subr.mxu0 %v938
  %1902 = vmatpush1.msra.mxu0 %v937
  %1903 = vmatprep.subr.mxu0 %v1131
  %1904 = vmatpush1.msra.mxu0 %v1128
  %1905 = vmatprep.subr.mxu0 0.0
  %1906 = vmatpush1.msra.mxu0 0.0
  %1907 = vmatprep.subr.mxu0 0.0
  %1908 = vmatpush1.msra.mxu0 0.0
  %1909 = vmatprep.subr.mxu0 0.0
  %1910 = vmatpush1.msra.mxu0 0.0
  %1911 = vmatprep.subr.mxu0 0.0
  %1912 = vmatpush1.msra.mxu0 0.0
  %1913 = vmatprep.subr.mxu0 0.0
  %1914 = vmatpush1.msra.mxu0 0.0
  %1915 = vmatprep.subr.mxu0 0.0
  %1916 = vmatpush1.msra.mxu0 0.0
  %1917 = vmatprep.subr.mxu0 0.0
  %1918 = vmatpush1.msra.mxu0 0.0
  %1919 = vmatprep.subr.mxu0 0.0
  %1920 = vmatpush1.msra.mxu0 0.0
  %1921 = vmatprep.subr.mxu0 0.0
  %1922 = vmatpush1.msra.mxu0 0.0
  %1923 = vmatprep.subr.mxu0 0.0
  %1924 = vmatpush1.msra.mxu0 0.0
  %1925 = vmatprep.subr.mxu0 0.0
  %1926 = vmatpush1.msra.mxu0 0.0
  %1927 = vmatprep.subr.mxu0 0.0
  %1928 = vmatpush1.msra.mxu0 0.0
  %1929 = vmatprep.mubr.f32.mxu0 %v1774
  %1930 = vmatmul.mubr.f32.gmra.mrb[0].mxu0 %v1766
  %v1931 = vpop.f32.mrb[0].mxu0
  %v1932 = vadd.f32 0.0, %v1931
  %v1933 = vpop.f32.mrb[0].mxu0
  %v1934 = vadd.f32 0.0, %v1933
  %1935 = vdwg.mxu0
  %v1936 = vadd.f32 %v1863, %v1932
  %v1937 = vadd.f32 %v1864, %v1934
  %v1938 = vxor.u32 %v1936, 2147483648
  %v1939 = vxor.u32 %v1937, 2147483648
  %v1940 = vmul.f32 %v1938, 1.442695
  %v1941 = vpow.pop %v1940
  %v1942 = vmul.f32 %v1939, 1.442695
  %v1943 = vpow.pop %v1942
  %v1944 = vadd.f32 %v1941, 1.0
  %v1945 = vadd.f32 %v1943, 1.0
  %v1946 = vrcp.pop %v1944
  %v1947 = vmul.f32 1.0, %v1946
  %v1948 = vrcp.pop %v1945
  %v1949 = vmul.f32 1.0, %v1948
  %s1950 = smul.addr %s1768, 8
  %s1951 = scalar_lea.vmem [#allocation4], %s1950
  %v1952 = vld [vmem:[%s1951] sm:$0xff]
  %v1953 = vld [vmem:[%s1951 + $0x8] sm:$0xff]
  %1954 = vmatprep.subr.mxu0 %v943
  %1955 = vmatpush1.msra.mxu0 %v942
  %1956 = vmatprep.subr.mxu0 %v945
  %1957 = vmatpush1.msra.mxu0 %v944
  %1958 = vmatprep.subr.mxu0 %v947
  %1959 = vmatpush1.msra.mxu0 %v946
  %1960 = vmatprep.subr.mxu0 %v949
  %1961 = vmatpush1.msra.mxu0 %v948
  %1962 = vmatprep.subr.mxu0 %v951
  %1963 = vmatpush1.msra.mxu0 %v950
  %1964 = vmatprep.subr.mxu0 %v953
  %1965 = vmatpush1.msra.mxu0 %v952
  %1966 = vmatprep.subr.mxu0 %v955
  %1967 = vmatpush1.msra.mxu0 %v954
  %1968 = vmatprep.subr.mxu0 %v957
  %1969 = vmatpush1.msra.mxu0 %v956
  %1970 = vmatprep.subr.mxu0 %v959
  %1971 = vmatpush1.msra.mxu0 %v958
  %1972 = vmatprep.subr.mxu0 %v961
  %1973 = vmatpush1.msra.mxu0 %v960
  %1974 = vmatprep.subr.mxu0 %v963
  %1975 = vmatpush1.msra.mxu0 %v962
  %1976 = vmatprep.subr.mxu0 %v965
  %1977 = vmatpush1.msra.mxu0 %v964
  %1978 = vmatprep.subr.mxu0 %v967
  %1979 = vmatpush1.msra.mxu0 %v966
  %1980 = vmatprep.subr.mxu0 %v969
  %1981 = vmatpush1.msra.mxu0 %v968
  %1982 = vmatprep.subr.mxu0 %v971
  %1983 = vmatpush1.msra.mxu0 %v970
  %1984 = vmatprep.subr.mxu0 %v973
  %1985 = vmatpush1.msra.mxu0 %v972
  %1986 = vmatprep.subr.mxu0 %v975
  %1987 = vmatpush1.msra.mxu0 %v974
  %1988 = vmatprep.subr.mxu0 %v977
  %1989 = vmatpush1.msra.mxu0 %v976
  %1990 = vmatprep.subr.mxu0 %v979
  %1991 = vmatpush1.msra.mxu0 %v978
  %1992 = vmatprep.subr.mxu0 %v1226
  %1993 = vmatpush1.msra.mxu0 %v1223
  %1994 = vmatprep.subr.mxu0 0.0
  %1995 = vmatpush1.msra.mxu0 0.0
  %1996 = vmatprep.subr.mxu0 0.0
  %1997 = vmatpush1.msra.mxu0 0.0
  %1998 = vmatprep.subr.mxu0 0.0
  %1999 = vmatpush1.msra.mxu0 0.0
  %2000 = vmatprep.subr.mxu0 0.0
  %2001 = vmatpush1.msra.mxu0 0.0
  %2002 = vmatprep.subr.mxu0 0.0
  %2003 = vmatpush1.msra.mxu0 0.0
  %2004 = vmatprep.subr.mxu0 0.0
  %2005 = vmatpush1.msra.mxu0 0.0
  %2006 = vmatprep.subr.mxu0 0.0
  %2007 = vmatpush1.msra.mxu0 0.0
  %2008 = vmatprep.subr.mxu0 0.0
  %2009 = vmatpush1.msra.mxu0 0.0
  %2010 = vmatprep.subr.mxu0 0.0
  %2011 = vmatpush1.msra.mxu0 0.0
  %2012 = vmatprep.subr.mxu0 0.0
  %2013 = vmatpush1.msra.mxu0 0.0
  %2014 = vmatprep.subr.mxu0 0.0
  %2015 = vmatpush1.msra.mxu0 0.0
  %2016 = vmatprep.subr.mxu0 0.0
  %2017 = vmatpush1.msra.mxu0 0.0
  %2018 = vmatprep.mubr.f32.mxu0 %v1774
  %2019 = vmatmul.mubr.f32.gmra.mrb[0].mxu0 %v1766
  %v2020 = vpop.f32.mrb[0].mxu0
  %v2021 = vadd.f32 0.0, %v2020
  %v2022 = vpop.f32.mrb[0].mxu0
  %v2023 = vadd.f32 0.0, %v2022
  %2024 = vdwg.mxu0
  %v2025 = vadd.f32 %v1952, %v2021
  %v2026 = vadd.f32 %v1953, %v2023
  %v2027 = vtanh.pop %v2025
  %v2028 = vtanh.pop %v2026
  %s2029 = smul.addr %s1768, 8
  %s2030 = scalar_lea.vmem [#allocation5], %s2029
  %v2031 = vld [vmem:[%s2030] sm:$0xff]
  %v2032 = vld [vmem:[%s2030 + $0x8] sm:$0xff]
  %2033 = vmatprep.subr.mxu0 %v984
  %2034 = vmatpush1.msra.mxu0 %v983
  %2035 = vmatprep.subr.mxu0 %v986
  %2036 = vmatpush1.msra.mxu0 %v985
  %2037 = vmatprep.subr.mxu0 %v988
  %2038 = vmatpush1.msra.mxu0 %v987
  %2039 = vmatprep.subr.mxu0 %v990
  %2040 = vmatpush1.msra.mxu0 %v989
  %2041 = vmatprep.subr.mxu0 %v992
  %2042 = vmatpush1.msra.mxu0 %v991
  %2043 = vmatprep.subr.mxu0 %v994
  %2044 = vmatpush1.msra.mxu0 %v993
  %2045 = vmatprep.subr.mxu0 %v996
  %2046 = vmatpush1.msra.mxu0 %v995
  %2047 = vmatprep.subr.mxu0 %v998
  %2048 = vmatpush1.msra.mxu0 %v997
  %2049 = vmatprep.subr.mxu0 %v1000
  %2050 = vmatpush1.msra.mxu0 %v999
  %2051 = vmatprep.subr.mxu0 %v1002
  %2052 = vmatpush1.msra.mxu0 %v1001
  %2053 = vmatprep.subr.mxu0 %v1004
  %2054 = vmatpush1.msra.mxu0 %v1003
  %2055 = vmatprep.subr.mxu0 %v1006
  %2056 = vmatpush1.msra.mxu0 %v1005
  %2057 = vmatprep.subr.mxu0 %v1008
  %2058 = vmatpush1.msra.mxu0 %v1007
  %2059 = vmatprep.subr.mxu0 %v1010
  %2060 = vmatpush1.msra.mxu0 %v1009
  %2061 = vmatprep.subr.mxu0 %v1012
  %2062 = vmatpush1.msra.mxu0 %v1011
  %2063 = vmatprep.subr.mxu0 %v1014
  %2064 = vmatpush1.msra.mxu0 %v1013
  %2065 = vmatprep.subr.mxu0 %v1016
  %2066 = vmatpush1.msra.mxu0 %v1015
  %2067 = vmatprep.subr.mxu0 %v1018
  %2068 = vmatpush1.msra.mxu0 %v1017
  %2069 = vmatprep.subr.mxu0 %v1020
  %2070 = vmatpush1.msra.mxu0 %v1019
  %2071 = vmatprep.subr.mxu0 %v1311
  %2072 = vmatpush1.msra.mxu0 %v1308
  %2073 = vmatprep.subr.mxu0 0.0
  %2074 = vmatpush1.msra.mxu0 0.0
  %2075 = vmatprep.subr.mxu0 0.0
  %2076 = vmatpush1.msra.mxu0 0.0
  %2077 = vmatprep.subr.mxu0 0.0
  %2078 = vmatpush1.msra.mxu0 0.0
  %2079 = vmatprep.subr.mxu0 0.0
  %2080 = vmatpush1.msra.mxu0 0.0
  %2081 = vmatprep.subr.mxu0 0.0
  %2082 = vmatpush1.msra.mxu0 0.0
  %2083 = vmatprep.subr.mxu0 0.0
  %2084 = vmatpush1.msra.mxu0 0.0
  %2085 = vmatprep.subr.mxu0 0.0
  %2086 = vmatpush1.msra.mxu0 0.0
  %2087 = vmatprep.subr.mxu0 0.0
  %2088 = vmatpush1.msra.mxu0 0.0
  %2089 = vmatprep.subr.mxu0 0.0
  %2090 = vmatpush1.msra.mxu0 0.0
  %2091 = vmatprep.subr.mxu0 0.0
  %2092 = vmatpush1.msra.mxu0 0.0
  %2093 = vmatprep.subr.mxu0 0.0
  %2094 = vmatpush1.msra.mxu0 0.0
  %2095 = vmatprep.subr.mxu0 0.0
  %2096 = vmatpush1.msra.mxu0 0.0
  %2097 = vmatprep.mubr.f32.mxu0 %v1774
  %2098 = vmatmul.mubr.f32.gmra.mrb[0].mxu0 %v1766
  %v2099 = vpop.f32.mrb[0].mxu0
  %v2100 = vadd.f32 0.0, %v2099
  %v2101 = vpop.f32.mrb[0].mxu0
  %v2102 = vadd.f32 0.0, %v2101
  %2103 = vdwg.mxu0
  %v2104 = vadd.f32 %v2031, %v2100
  %v2105 = vadd.f32 %v2032, %v2102
  %v2106 = vxor.u32 %v2104, 2147483648
  %v2107 = vxor.u32 %v2105, 2147483648
  %v2108 = vmul.f32 %v2106, 1.442695
  %v2109 = vpow.pop %v2108
  %v2110 = vmul.f32 %v2107, 1.442695
  %v2111 = vpow.pop %v2110
  %v2112 = vadd.f32 %v2109, 1.0
  %v2113 = vadd.f32 %v2111, 1.0
  %v2114 = vrcp.pop %v2112
  %v2115 = vmul.f32 1.0, %v2114
  %v2116 = vrcp.pop %v2113
  %v2117 = vmul.f32 1.0, %v2116
  %v2118 = vmul.f32 %v1947, %v1762
  %v2119 = vmul.f32 %v1949, %v1763
  %v2120 = vmul.f32 %v1858, %v2027
  %v2121 = vmul.f32 %v1860, %v2028
  %v2122 = vadd.f32 %v2118, %v2120
  %v2123 = vadd.f32 %v2119, %v2121
  %v2124 = vtanh.pop %v2122
  %v2125 = vtanh.pop %v2123
  %v2126 = vmul.f32 %v2115, %v2124
  %v2127 = vmul.f32 %v2117, %v2125
  %s2128 = smul.u32 3, 2
  %s2129 = smul.addr %s2128, 8
  %s2130 = scalar_lea.vmem [#allocation2], %s2129
  %v2131 = vld [vmem:[%s2130] sm:$0xff]
  %v2132 = vld [vmem:[%s2130 + $0x8] sm:$0xff]
  %v2134 = vsel %vm223, %v2127, 0
  %2136 = vmatprep.subr.mxu0 %v861
  %2137 = vmatpush1.msra.mxu0 %v860
  %2138 = vmatprep.subr.mxu0 %v863
  %2139 = vmatpush1.msra.mxu0 %v862
  %2140 = vmatprep.subr.mxu0 %v865
  %2141 = vmatpush1.msra.mxu0 %v864
  %2142 = vmatprep.subr.mxu0 %v867
  %2143 = vmatpush1.msra.mxu0 %v866
  %2144 = vmatprep.subr.mxu0 %v869
  %2145 = vmatpush1.msra.mxu0 %v868
  %2146 = vmatprep.subr.mxu0 %v871
  %2147 = vmatpush1.msra.mxu0 %v870
  %2148 = vmatprep.subr.mxu0 %v873
  %2149 = vmatpush1.msra.mxu0 %v872
  %2150 = vmatprep.subr.mxu0 %v875
  %2151 = vmatpush1.msra.mxu0 %v874
  %2152 = vmatprep.subr.mxu0 %v877
  %2153 = vmatpush1.msra.mxu0 %v876
  %2154 = vmatprep.subr.mxu0 %v879
  %2155 = vmatpush1.msra.mxu0 %v878
  %2156 = vmatprep.subr.mxu0 %v881
  %2157 = vmatpush1.msra.mxu0 %v880
  %2158 = vmatprep.subr.mxu0 %v883
  %2159 = vmatpush1.msra.mxu0 %v882
  %2160 = vmatprep.subr.mxu0 %v885
  %2161 = vmatpush1.msra.mxu0 %v884
  %2162 = vmatprep.subr.mxu0 %v887
  %2163 = vmatpush1.msra.mxu0 %v886
  %2164 = vmatprep.subr.mxu0 %v889
  %2165 = vmatpush1.msra.mxu0 %v888
  %2166 = vmatprep.subr.mxu0 %v891
  %2167 = vmatpush1.msra.mxu0 %v890
  %2168 = vmatprep.subr.mxu0 %v893
  %2169 = vmatpush1.msra.mxu0 %v892
  %2170 = vmatprep.subr.mxu0 %v895
  %2171 = vmatpush1.msra.mxu0 %v894
  %2172 = vmatprep.subr.mxu0 %v897
  %2173 = vmatpush1.msra.mxu0 %v896
  %2174 = vmatprep.subr.mxu0 %v1036
  %2175 = vmatpush1.msra.mxu0 %v1033
  %2176 = vmatprep.subr.mxu0 0.0
  %2177 = vmatpush1.msra.mxu0 0.0
  %2178 = vmatprep.subr.mxu0 0.0
  %2179 = vmatpush1.msra.mxu0 0.0
  %2180 = vmatprep.subr.mxu0 0.0
  %2181 = vmatpush1.msra.mxu0 0.0
  %2182 = vmatprep.subr.mxu0 0.0
  %2183 = vmatpush1.msra.mxu0 0.0
  %2184 = vmatprep.subr.mxu0 0.0
  %2185 = vmatpush1.msra.mxu0 0.0
  %2186 = vmatprep.subr.mxu0 0.0
  %2187 = vmatpush1.msra.mxu0 0.0
  %2188 = vmatprep.subr.mxu0 0.0
  %2189 = vmatpush1.msra.mxu0 0.0
  %2190 = vmatprep.subr.mxu0 0.0
  %2191 = vmatpush1.msra.mxu0 0.0
  %2192 = vmatprep.subr.mxu0 0.0
  %2193 = vmatpush1.msra.mxu0 0.0
  %2194 = vmatprep.subr.mxu0 0.0
  %2195 = vmatpush1.msra.mxu0 0.0
  %2196 = vmatprep.subr.mxu0 0.0
  %2197 = vmatpush1.msra.mxu0 0.0
  %2198 = vmatprep.subr.mxu0 0.0
  %2199 = vmatpush1.msra.mxu0 0.0
  %2200 = vmatprep.mubr.f32.mxu0 %v2134
  %2201 = vmatmul.mubr.f32.gmra.mrb[0].mxu0 %v2126
  %v2202 = vpop.f32.mrb[0].mxu0
  %v2203 = vadd.f32 0.0, %v2202
  %v2204 = vpop.f32.mrb[0].mxu0
  %v2205 = vadd.f32 0.0, %v2204
  %2206 = vdwg.mxu0
  %v2207 = vadd.f32 %v2131, %v2203
  %v2208 = vadd.f32 %v2132, %v2205
  %v2209 = vxor.u32 %v2207, 2147483648
  %v2210 = vxor.u32 %v2208, 2147483648
  %v2211 = vmul.f32 %v2209, 1.442695
  %v2212 = vpow.pop %v2211
  %v2213 = vmul.f32 %v2210, 1.442695
  %v2214 = vpow.pop %v2213
  %v2215 = vadd.f32 %v2212, 1.0
  %v2216 = vadd.f32 %v2214, 1.0
  %v2217 = vrcp.pop %v2215
  %v2218 = vmul.f32 1.0, %v2217
  %v2219 = vrcp.pop %v2216
  %v2220 = vmul.f32 1.0, %v2219
  %s2221 = smul.addr %s2128, 8
  %s2222 = scalar_lea.vmem [#allocation3], %s2221
  %v2223 = vld [vmem:[%s2222] sm:$0xff]
  %v2224 = vld [vmem:[%s2222 + $0x8] sm:$0xff]
  %2225 = vmatprep.subr.mxu0 %v902
  %2226 = vmatpush1.msra.mxu0 %v901
  %2227 = vmatprep.subr.mxu0 %v904
  %2228 = vmatpush1.msra.mxu0 %v903
  %2229 = vmatprep.subr.mxu0 %v906
  %2230 = vmatpush1.msra.mxu0 %v905
  %2231 = vmatprep.subr.mxu0 %v908
  %2232 = vmatpush1.msra.mxu0 %v907
  %2233 = vmatprep.subr.mxu0 %v910
  %2234 = vmatpush1.msra.mxu0 %v909
  %2235 = vmatprep.subr.mxu0 %v912
  %2236 = vmatpush1.msra.mxu0 %v911
  %2237 = vmatprep.subr.mxu0 %v914
  %2238 = vmatpush1.msra.mxu0 %v913
  %2239 = vmatprep.subr.mxu0 %v916
  %2240 = vmatpush1.msra.mxu0 %v915
  %2241 = vmatprep.subr.mxu0 %v918
  %2242 = vmatpush1.msra.mxu0 %v917
  %2243 = vmatprep.subr.mxu0 %v920
  %2244 = vmatpush1.msra.mxu0 %v919
  %2245 = vmatprep.subr.mxu0 %v922
  %2246 = vmatpush1.msra.mxu0 %v921
  %2247 = vmatprep.subr.mxu0 %v924
  %2248 = vmatpush1.msra.mxu0 %v923
  %2249 = vmatprep.subr.mxu0 %v926
  %2250 = vmatpush1.msra.mxu0 %v925
  %2251 = vmatprep.subr.mxu0 %v928
  %2252 = vmatpush1.msra.mxu0 %v927
  %2253 = vmatprep.subr.mxu0 %v930
  %2254 = vmatpush1.msra.mxu0 %v929
  %2255 = vmatprep.subr.mxu0 %v932
  %2256 = vmatpush1.msra.mxu0 %v931
  %2257 = vmatprep.subr.mxu0 %v934
  %2258 = vmatpush1.msra.mxu0 %v933
  %2259 = vmatprep.subr.mxu0 %v936
  %2260 = vmatpush1.msra.mxu0 %v935
  %2261 = vmatprep.subr.mxu0 %v938
  %2262 = vmatpush1.msra.mxu0 %v937
  %2263 = vmatprep.subr.mxu0 %v1131
  %2264 = vmatpush1.msra.mxu0 %v1128
  %2265 = vmatprep.subr.mxu0 0.0
  %2266 = vmatpush1.msra.mxu0 0.0
  %2267 = vmatprep.subr.mxu0 0.0
  %2268 = vmatpush1.msra.mxu0 0.0
  %2269 = vmatprep.subr.mxu0 0.0
  %2270 = vmatpush1.msra.mxu0 0.0
  %2271 = vmatprep.subr.mxu0 0.0
  %2272 = vmatpush1.msra.mxu0 0.0
  %2273 = vmatprep.subr.mxu0 0.0
  %2274 = vmatpush1.msra.mxu0 0.0
  %2275 = vmatprep.subr.mxu0 0.0
  %2276 = vmatpush1.msra.mxu0 0.0
  %2277 = vmatprep.subr.mxu0 0.0
  %2278 = vmatpush1.msra.mxu0 0.0
  %2279 = vmatprep.subr.mxu0 0.0
  %2280 = vmatpush1.msra.mxu0 0.0
  %2281 = vmatprep.subr.mxu0 0.0
  %2282 = vmatpush1.msra.mxu0 0.0
  %2283 = vmatprep.subr.mxu0 0.0
  %2284 = vmatpush1.msra.mxu0 0.0
  %2285 = vmatprep.subr.mxu0 0.0
  %2286 = vmatpush1.msra.mxu0 0.0
  %2287 = vmatprep.subr.mxu0 0.0
  %2288 = vmatpush1.msra.mxu0 0.0
  %2289 = vmatprep.mubr.f32.mxu0 %v2134
  %2290 = vmatmul.mubr.f32.gmra.mrb[0].mxu0 %v2126
  %v2291 = vpop.f32.mrb[0].mxu0
  %v2292 = vadd.f32 0.0, %v2291
  %v2293 = vpop.f32.mrb[0].mxu0
  %v2294 = vadd.f32 0.0, %v2293
  %2295 = vdwg.mxu0
  %v2296 = vadd.f32 %v2223, %v2292
  %v2297 = vadd.f32 %v2224, %v2294
  %v2298 = vxor.u32 %v2296, 2147483648
  %v2299 = vxor.u32 %v2297, 2147483648
  %v2300 = vmul.f32 %v2298, 1.442695
  %v2301 = vpow.pop %v2300
  %v2302 = vmul.f32 %v2299, 1.442695
  %v2303 = vpow.pop %v2302
  %v2304 = vadd.f32 %v2301, 1.0
  %v2305 = vadd.f32 %v2303, 1.0
  %v2306 = vrcp.pop %v2304
  %v2307 = vmul.f32 1.0, %v2306
  %v2308 = vrcp.pop %v2305
  %v2309 = vmul.f32 1.0, %v2308
  %s2310 = smul.addr %s2128, 8
  %s2311 = scalar_lea.vmem [#allocation4], %s2310
  %v2312 = vld [vmem:[%s2311] sm:$0xff]
  %v2313 = vld [vmem:[%s2311 + $0x8] sm:$0xff]
  %2314 = vmatprep.subr.mxu0 %v943
  %2315 = vmatpush1.msra.mxu0 %v942
  %2316 = vmatprep.subr.mxu0 %v945
  %2317 = vmatpush1.msra.mxu0 %v944
  %2318 = vmatprep.subr.mxu0 %v947
  %2319 = vmatpush1.msra.mxu0 %v946
  %2320 = vmatprep.subr.mxu0 %v949
  %2321 = vmatpush1.msra.mxu0 %v948
  %2322 = vmatprep.subr.mxu0 %v951
  %2323 = vmatpush1.msra.mxu0 %v950
  %2324 = vmatprep.subr.mxu0 %v953
  %2325 = vmatpush1.msra.mxu0 %v952
  %2326 = vmatprep.subr.mxu0 %v955
  %2327 = vmatpush1.msra.mxu0 %v954
  %2328 = vmatprep.subr.mxu0 %v957
  %2329 = vmatpush1.msra.mxu0 %v956
  %2330 = vmatprep.subr.mxu0 %v959
  %2331 = vmatpush1.msra.mxu0 %v958
  %2332 = vmatprep.subr.mxu0 %v961
  %2333 = vmatpush1.msra.mxu0 %v960
  %2334 = vmatprep.subr.mxu0 %v963
  %2335 = vmatpush1.msra.mxu0 %v962
  %2336 = vmatprep.subr.mxu0 %v965
  %2337 = vmatpush1.msra.mxu0 %v964
  %2338 = vmatprep.subr.mxu0 %v967
  %2339 = vmatpush1.msra.mxu0 %v966
  %2340 = vmatprep.subr.mxu0 %v969
  %2341 = vmatpush1.msra.mxu0 %v968
  %2342 = vmatprep.subr.mxu0 %v971
  %2343 = vmatpush1.msra.mxu0 %v970
  %2344 = vmatprep.subr.mxu0 %v973
  %2345 = vmatpush1.msra.mxu0 %v972
  %2346 = vmatprep.subr.mxu0 %v975
  %2347 = vmatpush1.msra.mxu0 %v974
  %2348 = vmatprep.subr.mxu0 %v977
  %2349 = vmatpush1.msra.mxu0 %v976
  %2350 = vmatprep.subr.mxu0 %v979
  %2351 = vmatpush1.msra.mxu0 %v978
  %2352 = vmatprep.subr.mxu0 %v1226
  %2353 = vmatpush1.msra.mxu0 %v1223
  %2354 = vmatprep.subr.mxu0 0.0
  %2355 = vmatpush1.msra.mxu0 0.0
  %2356 = vmatprep.subr.mxu0 0.0
  %2357 = vmatpush1.msra.mxu0 0.0
  %2358 = vmatprep.subr.mxu0 0.0
  %2359 = vmatpush1.msra.mxu0 0.0
  %2360 = vmatprep.subr.mxu0 0.0
  %2361 = vmatpush1.msra.mxu0 0.0
  %2362 = vmatprep.subr.mxu0 0.0
  %2363 = vmatpush1.msra.mxu0 0.0
  %2364 = vmatprep.subr.mxu0 0.0
  %2365 = vmatpush1.msra.mxu0 0.0
  %2366 = vmatprep.subr.mxu0 0.0
  %2367 = vmatpush1.msra.mxu0 0.0
  %2368 = vmatprep.subr.mxu0 0.0
  %2369 = vmatpush1.msra.mxu0 0.0
  %2370 = vmatprep.subr.mxu0 0.0
  %2371 = vmatpush1.msra.mxu0 0.0
  %2372 = vmatprep.subr.mxu0 0.0
  %2373 = vmatpush1.msra.mxu0 0.0
  %2374 = vmatprep.subr.mxu0 0.0
  %2375 = vmatpush1.msra.mxu0 0.0
  %2376 = vmatprep.subr.mxu0 0.0
  %2377 = vmatpush1.msra.mxu0 0.0
  %2378 = vmatprep.mubr.f32.mxu0 %v2134
  %2379 = vmatmul.mubr.f32.gmra.mrb[0].mxu0 %v2126
  %v2380 = vpop.f32.mrb[0].mxu0
  %v2381 = vadd.f32 0.0, %v2380
  %v2382 = vpop.f32.mrb[0].mxu0
  %v2383 = vadd.f32 0.0, %v2382
  %2384 = vdwg.mxu0
  %v2385 = vadd.f32 %v2312, %v2381
  %v2386 = vadd.f32 %v2313, %v2383
  %v2387 = vtanh.pop %v2385
  %v2388 = vtanh.pop %v2386
  %s2389 = smul.addr %s2128, 8
  %s2390 = scalar_lea.vmem [#allocation5], %s2389
  %v2391 = vld [vmem:[%s2390] sm:$0xff]
  %v2392 = vld [vmem:[%s2390 + $0x8] sm:$0xff]
  %2393 = vmatprep.subr.mxu0 %v984
  %2394 = vmatpush1.msra.mxu0 %v983
  %2395 = vmatprep.subr.mxu0 %v986
  %2396 = vmatpush1.msra.mxu0 %v985
  %2397 = vmatprep.subr.mxu0 %v988
  %2398 = vmatpush1.msra.mxu0 %v987
  %2399 = vmatprep.subr.mxu0 %v990
  %2400 = vmatpush1.msra.mxu0 %v989
  %2401 = vmatprep.subr.mxu0 %v992
  %2402 = vmatpush1.msra.mxu0 %v991
  %2403 = vmatprep.subr.mxu0 %v994
  %2404 = vmatpush1.msra.mxu0 %v993
  %2405 = vmatprep.subr.mxu0 %v996
  %2406 = vmatpush1.msra.mxu0 %v995
  %2407 = vmatprep.subr.mxu0 %v998
  %2408 = vmatpush1.msra.mxu0 %v997
  %2409 = vmatprep.subr.mxu0 %v1000
  %2410 = vmatpush1.msra.mxu0 %v999
  %2411 = vmatprep.subr.mxu0 %v1002
  %2412 = vmatpush1.msra.mxu0 %v1001
  %2413 = vmatprep.subr.mxu0 %v1004
  %2414 = vmatpush1.msra.mxu0 %v1003
  %2415 = vmatprep.subr.mxu0 %v1006
  %2416 = vmatpush1.msra.mxu0 %v1005
  %2417 = vmatprep.subr.mxu0 %v1008
  %2418 = vmatpush1.msra.mxu0 %v1007
  %2419 = vmatprep.subr.mxu0 %v1010
  %2420 = vmatpush1.msra.mxu0 %v1009
  %2421 = vmatprep.subr.mxu0 %v1012
  %2422 = vmatpush1.msra.mxu0 %v1011
  %2423 = vmatprep.subr.mxu0 %v1014
  %2424 = vmatpush1.msra.mxu0 %v1013
  %2425 = vmatprep.subr.mxu0 %v1016
  %2426 = vmatpush1.msra.mxu0 %v1015
  %2427 = vmatprep.subr.mxu0 %v1018
  %2428 = vmatpush1.msra.mxu0 %v1017
  %2429 = vmatprep.subr.mxu0 %v1020
  %2430 = vmatpush1.msra.mxu0 %v1019
  %2431 = vmatprep.subr.mxu0 %v1311
  %2432 = vmatpush1.msra.mxu0 %v1308
  %2433 = vmatprep.subr.mxu0 0.0
  %2434 = vmatpush1.msra.mxu0 0.0
  %2435 = vmatprep.subr.mxu0 0.0
  %2436 = vmatpush1.msra.mxu0 0.0
  %2437 = vmatprep.subr.mxu0 0.0
  %2438 = vmatpush1.msra.mxu0 0.0
  %2439 = vmatprep.subr.mxu0 0.0
  %2440 = vmatpush1.msra.mxu0 0.0
  %2441 = vmatprep.subr.mxu0 0.0
  %2442 = vmatpush1.msra.mxu0 0.0
  %2443 = vmatprep.subr.mxu0 0.0
  %2444 = vmatpush1.msra.mxu0 0.0
  %2445 = vmatprep.subr.mxu0 0.0
  %2446 = vmatpush1.msra.mxu0 0.0
  %2447 = vmatprep.subr.mxu0 0.0
  %2448 = vmatpush1.msra.mxu0 0.0
  %2449 = vmatprep.subr.mxu0 0.0
  %2450 = vmatpush1.msra.mxu0 0.0
  %2451 = vmatprep.subr.mxu0 0.0
  %2452 = vmatpush1.msra.mxu0 0.0
  %2453 = vmatprep.subr.mxu0 0.0
  %2454 = vmatpush1.msra.mxu0 0.0
  %2455 = vmatprep.subr.mxu0 0.0
  %2456 = vmatpush1.msra.mxu0 0.0
  %2457 = vmatprep.mubr.f32.mxu0 %v2134
  %2458 = vmatmul.mubr.f32.gmra.mrb[0].mxu0 %v2126
  %v2459 = vpop.f32.mrb[0].mxu0
  %v2460 = vadd.f32 0.0, %v2459
  %v2461 = vpop.f32.mrb[0].mxu0
  %v2462 = vadd.f32 0.0, %v2461
  %2463 = vdwg.mxu0
  %v2464 = vadd.f32 %v2391, %v2460
  %v2465 = vadd.f32 %v2392, %v2462
  %v2466 = vxor.u32 %v2464, 2147483648
  %v2467 = vxor.u32 %v2465, 2147483648
  %v2468 = vmul.f32 %v2466, 1.442695
  %v2469 = vpow.pop %v2468
  %v2470 = vmul.f32 %v2467, 1.442695
  %v2471 = vpow.pop %v2470
  %v2472 = vadd.f32 %v2469, 1.0
  %v2473 = vadd.f32 %v2471, 1.0
  %v2474 = vrcp.pop %v2472
  %v2475 = vmul.f32 1.0, %v2474
  %v2476 = vrcp.pop %v2473
  %v2477 = vmul.f32 1.0, %v2476
  %v2478 = vmul.f32 %v2307, %v2122
  %v2479 = vmul.f32 %v2309, %v2123
  %v2480 = vmul.f32 %v2218, %v2387
  %v2481 = vmul.f32 %v2220, %v2388
  %v2482 = vadd.f32 %v2478, %v2480
  %v2483 = vadd.f32 %v2479, %v2481
  %v2484 = vtanh.pop %v2482
  %v2485 = vtanh.pop %v2483
  %v2486 = vmul.f32 %v2475, %v2484
  %v2487 = vmul.f32 %v2477, %v2485
  %s2488 = smul.u32 4, 2
  %s2489 = smul.addr %s2488, 8
  %s2490 = scalar_lea.vmem [#allocation2], %s2489
  %v2491 = vld [vmem:[%s2490] sm:$0xff]
  %v2492 = vld [vmem:[%s2490 + $0x8] sm:$0xff]
  %v2494 = vsel %vm223, %v2487, 0
  %2496 = vmatprep.subr.mxu0 %v861
  %2497 = vmatpush1.msra.mxu0 %v860
  %2498 = vmatprep.subr.mxu0 %v863
  %2499 = vmatpush1.msra.mxu0 %v862
  %2500 = vmatprep.subr.mxu0 %v865
  %2501 = vmatpush1.msra.mxu0 %v864
  %2502 = vmatprep.subr.mxu0 %v867
  %2503 = vmatpush1.msra.mxu0 %v866
  %2504 = vmatprep.subr.mxu0 %v869
  %2505 = vmatpush1.msra.mxu0 %v868
  %2506 = vmatprep.subr.mxu0 %v871
  %2507 = vmatpush1.msra.mxu0 %v870
  %2508 = vmatprep.subr.mxu0 %v873
  %2509 = vmatpush1.msra.mxu0 %v872
  %2510 = vmatprep.subr.mxu0 %v875
  %2511 = vmatpush1.msra.mxu0 %v874
  %2512 = vmatprep.subr.mxu0 %v877
  %2513 = vmatpush1.msra.mxu0 %v876
  %2514 = vmatprep.subr.mxu0 %v879
  %2515 = vmatpush1.msra.mxu0 %v878
  %2516 = vmatprep.subr.mxu0 %v881
  %2517 = vmatpush1.msra.mxu0 %v880
  %2518 = vmatprep.subr.mxu0 %v883
  %2519 = vmatpush1.msra.mxu0 %v882
  %2520 = vmatprep.subr.mxu0 %v885
  %2521 = vmatpush1.msra.mxu0 %v884
  %2522 = vmatprep.subr.mxu0 %v887
  %2523 = vmatpush1.msra.mxu0 %v886
  %2524 = vmatprep.subr.mxu0 %v889
  %2525 = vmatpush1.msra.mxu0 %v888
  %2526 = vmatprep.subr.mxu0 %v891
  %2527 = vmatpush1.msra.mxu0 %v890
  %2528 = vmatprep.subr.mxu0 %v893
  %2529 = vmatpush1.msra.mxu0 %v892
  %2530 = vmatprep.subr.mxu0 %v895
  %2531 = vmatpush1.msra.mxu0 %v894
  %2532 = vmatprep.subr.mxu0 %v897
  %2533 = vmatpush1.msra.mxu0 %v896
  %2534 = vmatprep.subr.mxu0 %v1036
  %2535 = vmatpush1.msra.mxu0 %v1033
  %2536 = vmatprep.subr.mxu0 0.0
  %2537 = vmatpush1.msra.mxu0 0.0
  %2538 = vmatprep.subr.mxu0 0.0
  %2539 = vmatpush1.msra.mxu0 0.0
  %2540 = vmatprep.subr.mxu0 0.0
  %2541 = vmatpush1.msra.mxu0 0.0
  %2542 = vmatprep.subr.mxu0 0.0
  %2543 = vmatpush1.msra.mxu0 0.0
  %2544 = vmatprep.subr.mxu0 0.0
  %2545 = vmatpush1.msra.mxu0 0.0
  %2546 = vmatprep.subr.mxu0 0.0
  %2547 = vmatpush1.msra.mxu0 0.0
  %2548 = vmatprep.subr.mxu0 0.0
  %2549 = vmatpush1.msra.mxu0 0.0
  %2550 = vmatprep.subr.mxu0 0.0
  %2551 = vmatpush1.msra.mxu0 0.0
  %2552 = vmatprep.subr.mxu0 0.0
  %2553 = vmatpush1.msra.mxu0 0.0
  %2554 = vmatprep.subr.mxu0 0.0
  %2555 = vmatpush1.msra.mxu0 0.0
  %2556 = vmatprep.subr.mxu0 0.0
  %2557 = vmatpush1.msra.mxu0 0.0
  %2558 = vmatprep.subr.mxu0 0.0
  %2559 = vmatpush1.msra.mxu0 0.0
  %2560 = vmatprep.mubr.f32.mxu0 %v2494
  %2561 = vmatmul.mubr.f32.gmra.mrb[0].mxu0 %v2486
  %v2562 = vpop.f32.mrb[0].mxu0
  %v2563 = vadd.f32 0.0, %v2562
  %v2564 = vpop.f32.mrb[0].mxu0
  %v2565 = vadd.f32 0.0, %v2564
  %2566 = vdwg.mxu0
  %v2567 = vadd.f32 %v2491, %v2563
  %v2568 = vadd.f32 %v2492, %v2565
  %v2569 = vxor.u32 %v2567, 2147483648
  %v2570 = vxor.u32 %v2568, 2147483648
  %v2571 = vmul.f32 %v2569, 1.442695
  %v2572 = vpow.pop %v2571
  %v2573 = vmul.f32 %v2570, 1.442695
  %v2574 = vpow.pop %v2573
  %v2575 = vadd.f32 %v2572, 1.0
  %v2576 = vadd.f32 %v2574, 1.0
  %v2577 = vrcp.pop %v2575
  %v2578 = vmul.f32 1.0, %v2577
  %v2579 = vrcp.pop %v2576
  %v2580 = vmul.f32 1.0, %v2579
  %s2581 = smul.addr %s2488, 8
  %s2582 = scalar_lea.vmem [#allocation3], %s2581
  %v2583 = vld [vmem:[%s2582] sm:$0xff]
  %v2584 = vld [vmem:[%s2582 + $0x8] sm:$0xff]
  %2585 = vmatprep.subr.mxu0 %v902
  %2586 = vmatpush1.msra.mxu0 %v901
  %2587 = vmatprep.subr.mxu0 %v904
  %2588 = vmatpush1.msra.mxu0 %v903
  %2589 = vmatprep.subr.mxu0 %v906
  %2590 = vmatpush1.msra.mxu0 %v905
  %2591 = vmatprep.subr.mxu0 %v908
  %2592 = vmatpush1.msra.mxu0 %v907
  %2593 = vmatprep.subr.mxu0 %v910
  %2594 = vmatpush1.msra.mxu0 %v909
  %2595 = vmatprep.subr.mxu0 %v912
  %2596 = vmatpush1.msra.mxu0 %v911
  %2597 = vmatprep.subr.mxu0 %v914
  %2598 = vmatpush1.msra.mxu0 %v913
  %2599 = vmatprep.subr.mxu0 %v916
  %2600 = vmatpush1.msra.mxu0 %v915
  %2601 = vmatprep.subr.mxu0 %v918
  %2602 = vmatpush1.msra.mxu0 %v917
  %2603 = vmatprep.subr.mxu0 %v920
  %2604 = vmatpush1.msra.mxu0 %v919
  %2605 = vmatprep.subr.mxu0 %v922
  %2606 = vmatpush1.msra.mxu0 %v921
  %2607 = vmatprep.subr.mxu0 %v924
  %2608 = vmatpush1.msra.mxu0 %v923
  %2609 = vmatprep.subr.mxu0 %v926
  %2610 = vmatpush1.msra.mxu0 %v925
  %2611 = vmatprep.subr.mxu0 %v928
  %2612 = vmatpush1.msra.mxu0 %v927
  %2613 = vmatprep.subr.mxu0 %v930
  %2614 = vmatpush1.msra.mxu0 %v929
  %2615 = vmatprep.subr.mxu0 %v932
  %2616 = vmatpush1.msra.mxu0 %v931
  %2617 = vmatprep.subr.mxu0 %v934
  %2618 = vmatpush1.msra.mxu0 %v933
  %2619 = vmatprep.subr.mxu0 %v936
  %2620 = vmatpush1.msra.mxu0 %v935
  %2621 = vmatprep.subr.mxu0 %v938
  %2622 = vmatpush1.msra.mxu0 %v937
  %2623 = vmatprep.subr.mxu0 %v1131
  %2624 = vmatpush1.msra.mxu0 %v1128
  %2625 = vmatprep.subr.mxu0 0.0
  %2626 = vmatpush1.msra.mxu0 0.0
  %2627 = vmatprep.subr.mxu0 0.0
  %2628 = vmatpush1.msra.mxu0 0.0
  %2629 = vmatprep.subr.mxu0 0.0
  %2630 = vmatpush1.msra.mxu0 0.0
  %2631 = vmatprep.subr.mxu0 0.0
  %2632 = vmatpush1.msra.mxu0 0.0
  %2633 = vmatprep.subr.mxu0 0.0
  %2634 = vmatpush1.msra.mxu0 0.0
  %2635 = vmatprep.subr.mxu0 0.0
  %2636 = vmatpush1.msra.mxu0 0.0
  %2637 = vmatprep.subr.mxu0 0.0
  %2638 = vmatpush1.msra.mxu0 0.0
  %2639 = vmatprep.subr.mxu0 0.0
  %2640 = vmatpush1.msra.mxu0 0.0
  %2641 = vmatprep.subr.mxu0 0.0
  %2642 = vmatpush1.msra.mxu0 0.0
  %2643 = vmatprep.subr.mxu0 0.0
  %2644 = vmatpush1.msra.mxu0 0.0
  %2645 = vmatprep.subr.mxu0 0.0
  %2646 = vmatpush1.msra.mxu0 0.0
  %2647 = vmatprep.subr.mxu0 0.0
  %2648 = vmatpush1.msra.mxu0 0.0
  %2649 = vmatprep.mubr.f32.mxu0 %v2494
  %2650 = vmatmul.mubr.f32.gmra.mrb[0].mxu0 %v2486
  %v2651 = vpop.f32.mrb[0].mxu0
  %v2652 = vadd.f32 0.0, %v2651
  %v2653 = vpop.f32.mrb[0].mxu0
  %v2654 = vadd.f32 0.0, %v2653
  %2655 = vdwg.mxu0
  %v2656 = vadd.f32 %v2583, %v2652
  %v2657 = vadd.f32 %v2584, %v2654
  %v2658 = vxor.u32 %v2656, 2147483648
  %v2659 = vxor.u32 %v2657, 2147483648
  %v2660 = vmul.f32 %v2658, 1.442695
  %v2661 = vpow.pop %v2660
  %v2662 = vmul.f32 %v2659, 1.442695
  %v2663 = vpow.pop %v2662
  %v2664 = vadd.f32 %v2661, 1.0
  %v2665 = vadd.f32 %v2663, 1.0
  %v2666 = vrcp.pop %v2664
  %v2667 = vmul.f32 1.0, %v2666
  %v2668 = vrcp.pop %v2665
  %v2669 = vmul.f32 1.0, %v2668
  %s2670 = smul.addr %s2488, 8
  %s2671 = scalar_lea.vmem [#allocation4], %s2670
  %v2672 = vld [vmem:[%s2671] sm:$0xff]
  %v2673 = vld [vmem:[%s2671 + $0x8] sm:$0xff]
  %2674 = vmatprep.subr.mxu0 %v943
  %2675 = vmatpush1.msra.mxu0 %v942
  %2676 = vmatprep.subr.mxu0 %v945
  %2677 = vmatpush1.msra.mxu0 %v944
  %2678 = vmatprep.subr.mxu0 %v947
  %2679 = vmatpush1.msra.mxu0 %v946
  %2680 = vmatprep.subr.mxu0 %v949
  %2681 = vmatpush1.msra.mxu0 %v948
  %2682 = vmatprep.subr.mxu0 %v951
  %2683 = vmatpush1.msra.mxu0 %v950
  %2684 = vmatprep.subr.mxu0 %v953
  %2685 = vmatpush1.msra.mxu0 %v952
  %2686 = vmatprep.subr.mxu0 %v955
  %2687 = vmatpush1.msra.mxu0 %v954
  %2688 = vmatprep.subr.mxu0 %v957
  %2689 = vmatpush1.msra.mxu0 %v956
  %2690 = vmatprep.subr.mxu0 %v959
  %2691 = vmatpush1.msra.mxu0 %v958
  %2692 = vmatprep.subr.mxu0 %v961
  %2693 = vmatpush1.msra.mxu0 %v960
  %2694 = vmatprep.subr.mxu0 %v963
  %2695 = vmatpush1.msra.mxu0 %v962
  %2696 = vmatprep.subr.mxu0 %v965
  %2697 = vmatpush1.msra.mxu0 %v964
  %2698 = vmatprep.subr.mxu0 %v967
  %2699 = vmatpush1.msra.mxu0 %v966
  %2700 = vmatprep.subr.mxu0 %v969
  %2701 = vmatpush1.msra.mxu0 %v968
  %2702 = vmatprep.subr.mxu0 %v971
  %2703 = vmatpush1.msra.mxu0 %v970
  %2704 = vmatprep.subr.mxu0 %v973
  %2705 = vmatpush1.msra.mxu0 %v972
  %2706 = vmatprep.subr.mxu0 %v975
  %2707 = vmatpush1.msra.mxu0 %v974
  %2708 = vmatprep.subr.mxu0 %v977
  %2709 = vmatpush1.msra.mxu0 %v976
  %2710 = vmatprep.subr.mxu0 %v979
  %2711 = vmatpush1.msra.mxu0 %v978
  %2712 = vmatprep.subr.mxu0 %v1226
  %2713 = vmatpush1.msra.mxu0 %v1223
  %2714 = vmatprep.subr.mxu0 0.0
  %2715 = vmatpush1.msra.mxu0 0.0
  %2716 = vmatprep.subr.mxu0 0.0
  %2717 = vmatpush1.msra.mxu0 0.0
  %2718 = vmatprep.subr.mxu0 0.0
  %2719 = vmatpush1.msra.mxu0 0.0
  %2720 = vmatprep.subr.mxu0 0.0
  %2721 = vmatpush1.msra.mxu0 0.0
  %2722 = vmatprep.subr.mxu0 0.0
  %2723 = vmatpush1.msra.mxu0 0.0
  %2724 = vmatprep.subr.mxu0 0.0
  %2725 = vmatpush1.msra.mxu0 0.0
  %2726 = vmatprep.subr.mxu0 0.0
  %2727 = vmatpush1.msra.mxu0 0.0
  %2728 = vmatprep.subr.mxu0 0.0
  %2729 = vmatpush1.msra.mxu0 0.0
  %2730 = vmatprep.subr.mxu0 0.0
  %2731 = vmatpush1.msra.mxu0 0.0
  %2732 = vmatprep.subr.mxu0 0.0
  %2733 = vmatpush1.msra.mxu0 0.0
  %2734 = vmatprep.subr.mxu0 0.0
  %2735 = vmatpush1.msra.mxu0 0.0
  %2736 = vmatprep.subr.mxu0 0.0
  %2737 = vmatpush1.msra.mxu0 0.0
  %2738 = vmatprep.mubr.f32.mxu0 %v2494
  %2739 = vmatmul.mubr.f32.gmra.mrb[0].mxu0 %v2486
  %v2740 = vpop.f32.mrb[0].mxu0
  %v2741 = vadd.f32 0.0, %v2740
  %v2742 = vpop.f32.mrb[0].mxu0
  %v2743 = vadd.f32 0.0, %v2742
  %2744 = vdwg.mxu0
  %v2745 = vadd.f32 %v2672, %v2741
  %v2746 = vadd.f32 %v2673, %v2743
  %v2747 = vtanh.pop %v2745
  %v2748 = vtanh.pop %v2746
  %s2749 = smul.addr %s2488, 8
  %s2750 = scalar_lea.vmem [#allocation5], %s2749
  %v2751 = vld [vmem:[%s2750] sm:$0xff]
  %v2752 = vld [vmem:[%s2750 + $0x8] sm:$0xff]
  %2753 = vmatprep.subr.mxu0 %v984
  %2754 = vmatpush1.msra.mxu0 %v983
  %2755 = vmatprep.subr.mxu0 %v986
  %2756 = vmatpush1.msra.mxu0 %v985
  %2757 = vmatprep.subr.mxu0 %v988
  %2758 = vmatpush1.msra.mxu0 %v987
  %2759 = vmatprep.subr.mxu0 %v990
  %2760 = vmatpush1.msra.mxu0 %v989
  %2761 = vmatprep.subr.mxu0 %v992
  %2762 = vmatpush1.msra.mxu0 %v991
  %2763 = vmatprep.subr.mxu0 %v994
  %2764 = vmatpush1.msra.mxu0 %v993
  %2765 = vmatprep.subr.mxu0 %v996
  %2766 = vmatpush1.msra.mxu0 %v995
  %2767 = vmatprep.subr.mxu0 %v998
  %2768 = vmatpush1.msra.mxu0 %v997
  %2769 = vmatprep.subr.mxu0 %v1000
  %2770 = vmatpush1.msra.mxu0 %v999
  %2771 = vmatprep.subr.mxu0 %v1002
  %2772 = vmatpush1.msra.mxu0 %v1001
  %2773 = vmatprep.subr.mxu0 %v1004
  %2774 = vmatpush1.msra.mxu0 %v1003
  %2775 = vmatprep.subr.mxu0 %v1006
  %2776 = vmatpush1.msra.mxu0 %v1005
  %2777 = vmatprep.subr.mxu0 %v1008
  %2778 = vmatpush1.msra.mxu0 %v1007
  %2779 = vmatprep.subr.mxu0 %v1010
  %2780 = vmatpush1.msra.mxu0 %v1009
  %2781 = vmatprep.subr.mxu0 %v1012
  %2782 = vmatpush1.msra.mxu0 %v1011
  %2783 = vmatprep.subr.mxu0 %v1014
  %2784 = vmatpush1.msra.mxu0 %v1013
  %2785 = vmatprep.subr.mxu0 %v1016
  %2786 = vmatpush1.msra.mxu0 %v1015
  %2787 = vmatprep.subr.mxu0 %v1018
  %2788 = vmatpush1.msra.mxu0 %v1017
  %2789 = vmatprep.subr.mxu0 %v1020
  %2790 = vmatpush1.msra.mxu0 %v1019
  %2791 = vmatprep.subr.mxu0 %v1311
  %2792 = vmatpush1.msra.mxu0 %v1308
  %2793 = vmatprep.subr.mxu0 0.0
  %2794 = vmatpush1.msra.mxu0 0.0
  %2795 = vmatprep.subr.mxu0 0.0
  %2796 = vmatpush1.msra.mxu0 0.0
  %2797 = vmatprep.subr.mxu0 0.0
  %2798 = vmatpush1.msra.mxu0 0.0
  %2799 = vmatprep.subr.mxu0 0.0
  %2800 = vmatpush1.msra.mxu0 0.0
  %2801 = vmatprep.subr.mxu0 0.0
  %2802 = vmatpush1.msra.mxu0 0.0
  %2803 = vmatprep.subr.mxu0 0.0
  %2804 = vmatpush1.msra.mxu0 0.0
  %2805 = vmatprep.subr.mxu0 0.0
  %2806 = vmatpush1.msra.mxu0 0.0
  %2807 = vmatprep.subr.mxu0 0.0
  %2808 = vmatpush1.msra.mxu0 0.0
  %2809 = vmatprep.subr.mxu0 0.0
  %2810 = vmatpush1.msra.mxu0 0.0
  %2811 = vmatprep.subr.mxu0 0.0
  %2812 = vmatpush1.msra.mxu0 0.0
  %2813 = vmatprep.subr.mxu0 0.0
  %2814 = vmatpush1.msra.mxu0 0.0
  %2815 = vmatprep.subr.mxu0 0.0
  %2816 = vmatpush1.msra.mxu0 0.0
  %2817 = vmatprep.mubr.f32.mxu0 %v2494
  %2818 = vmatmul.mubr.f32.gmra.mrb[0].mxu0 %v2486
  %v2819 = vpop.f32.mrb[0].mxu0
  %v2820 = vadd.f32 0.0, %v2819
  %v2821 = vpop.f32.mrb[0].mxu0
  %v2822 = vadd.f32 0.0, %v2821
  %2823 = vdwg.mxu0
  %v2824 = vadd.f32 %v2751, %v2820
  %v2825 = vadd.f32 %v2752, %v2822
  %v2826 = vxor.u32 %v2824, 2147483648
  %v2827 = vxor.u32 %v2825, 2147483648
  %v2828 = vmul.f32 %v2826, 1.442695
  %v2829 = vpow.pop %v2828
  %v2830 = vmul.f32 %v2827, 1.442695
  %v2831 = vpow.pop %v2830
  %v2832 = vadd.f32 %v2829, 1.0
  %v2833 = vadd.f32 %v2831, 1.0
  %v2834 = vrcp.pop %v2832
  %v2835 = vmul.f32 1.0, %v2834
  %v2836 = vrcp.pop %v2833
  %v2837 = vmul.f32 1.0, %v2836
  %v2838 = vmul.f32 %v2667, %v2482
  %v2839 = vmul.f32 %v2669, %v2483
  %v2840 = vmul.f32 %v2578, %v2747
  %v2841 = vmul.f32 %v2580, %v2748
  %v2842 = vadd.f32 %v2838, %v2840
  %v2843 = vadd.f32 %v2839, %v2841
  %v2844 = vtanh.pop %v2842
  %v2845 = vtanh.pop %v2843
  %v2846 = vmul.f32 %v2835, %v2844
  %v2847 = vmul.f32 %v2837, %v2845
  %s2848 = smul.u32 5, 2
  %s2849 = smul.addr %s2848, 8
  %s2850 = scalar_lea.vmem [#allocation2], %s2849
  %v2851 = vld [vmem:[%s2850] sm:$0xff]
  %v2852 = vld [vmem:[%s2850 + $0x8] sm:$0xff]
  %v2854 = vsel %vm223, %v2847, 0
  %2856 = vmatprep.subr.mxu0 %v861
  %2857 = vmatpush1.msra.mxu0 %v860
  %2858 = vmatprep.subr.mxu0 %v863
  %2859 = vmatpush1.msra.mxu0 %v862
  %2860 = vmatprep.subr.mxu0 %v865
  %2861 = vmatpush1.msra.mxu0 %v864
  %2862 = vmatprep.subr.mxu0 %v867
  %2863 = vmatpush1.msra.mxu0 %v866
  %2864 = vmatprep.subr.mxu0 %v869
  %2865 = vmatpush1.msra.mxu0 %v868
  %2866 = vmatprep.subr.mxu0 %v871
  %2867 = vmatpush1.msra.mxu0 %v870
  %2868 = vmatprep.subr.mxu0 %v873
  %2869 = vmatpush1.msra.mxu0 %v872
  %2870 = vmatprep.subr.mxu0 %v875
  %2871 = vmatpush1.msra.mxu0 %v874
  %2872 = vmatprep.subr.mxu0 %v877
  %2873 = vmatpush1.msra.mxu0 %v876
  %2874 = vmatprep.subr.mxu0 %v879
  %2875 = vmatpush1.msra.mxu0 %v878
  %2876 = vmatprep.subr.mxu0 %v881
  %2877 = vmatpush1.msra.mxu0 %v880
  %2878 = vmatprep.subr.mxu0 %v883
  %2879 = vmatpush1.msra.mxu0 %v882
  %2880 = vmatprep.subr.mxu0 %v885
  %2881 = vmatpush1.msra.mxu0 %v884
  %2882 = vmatprep.subr.mxu0 %v887
  %2883 = vmatpush1.msra.mxu0 %v886
  %2884 = vmatprep.subr.mxu0 %v889
  %2885 = vmatpush1.msra.mxu0 %v888
  %2886 = vmatprep.subr.mxu0 %v891
  %2887 = vmatpush1.msra.mxu0 %v890
  %2888 = vmatprep.subr.mxu0 %v893
  %2889 = vmatpush1.msra.mxu0 %v892
  %2890 = vmatprep.subr.mxu0 %v895
  %2891 = vmatpush1.msra.mxu0 %v894
  %2892 = vmatprep.subr.mxu0 %v897
  %2893 = vmatpush1.msra.mxu0 %v896
  %2894 = vmatprep.subr.mxu0 %v1036
  %2895 = vmatpush1.msra.mxu0 %v1033
  %2896 = vmatprep.subr.mxu0 0.0
  %2897 = vmatpush1.msra.mxu0 0.0
  %2898 = vmatprep.subr.mxu0 0.0
  %2899 = vmatpush1.msra.mxu0 0.0
  %2900 = vmatprep.subr.mxu0 0.0
  %2901 = vmatpush1.msra.mxu0 0.0
  %2902 = vmatprep.subr.mxu0 0.0
  %2903 = vmatpush1.msra.mxu0 0.0
  %2904 = vmatprep.subr.mxu0 0.0
  %2905 = vmatpush1.msra.mxu0 0.0
  %2906 = vmatprep.subr.mxu0 0.0
  %2907 = vmatpush1.msra.mxu0 0.0
  %2908 = vmatprep.subr.mxu0 0.0
  %2909 = vmatpush1.msra.mxu0 0.0
  %2910 = vmatprep.subr.mxu0 0.0
  %2911 = vmatpush1.msra.mxu0 0.0
  %2912 = vmatprep.subr.mxu0 0.0
  %2913 = vmatpush1.msra.mxu0 0.0
  %2914 = vmatprep.subr.mxu0 0.0
  %2915 = vmatpush1.msra.mxu0 0.0
  %2916 = vmatprep.subr.mxu0 0.0
  %2917 = vmatpush1.msra.mxu0 0.0
  %2918 = vmatprep.subr.mxu0 0.0
  %2919 = vmatpush1.msra.mxu0 0.0
  %2920 = vmatprep.mubr.f32.mxu0 %v2854
  %2921 = vmatmul.mubr.f32.gmra.mrb[0].mxu0 %v2846
  %v2922 = vpop.f32.mrb[0].mxu0
  %v2923 = vadd.f32 0.0, %v2922
  %v2924 = vpop.f32.mrb[0].mxu0
  %v2925 = vadd.f32 0.0, %v2924
  %2926 = vdwg.mxu0
  %v2927 = vadd.f32 %v2851, %v2923
  %v2928 = vadd.f32 %v2852, %v2925
  %v2929 = vxor.u32 %v2927, 2147483648
  %v2930 = vxor.u32 %v2928, 2147483648
  %v2931 = vmul.f32 %v2929, 1.442695
  %v2932 = vpow.pop %v2931
  %v2933 = vmul.f32 %v2930, 1.442695
  %v2934 = vpow.pop %v2933
  %v2935 = vadd.f32 %v2932, 1.0
  %v2936 = vadd.f32 %v2934, 1.0
  %v2937 = vrcp.pop %v2935
  %v2938 = vmul.f32 1.0, %v2937
  %v2939 = vrcp.pop %v2936
  %v2940 = vmul.f32 1.0, %v2939
  %s2941 = smul.addr %s2848, 8
  %s2942 = scalar_lea.vmem [#allocation3], %s2941
  %v2943 = vld [vmem:[%s2942] sm:$0xff]
  %v2944 = vld [vmem:[%s2942 + $0x8] sm:$0xff]
  %2945 = vmatprep.subr.mxu0 %v902
  %2946 = vmatpush1.msra.mxu0 %v901
  %2947 = vmatprep.subr.mxu0 %v904
  %2948 = vmatpush1.msra.mxu0 %v903
  %2949 = vmatprep.subr.mxu0 %v906
  %2950 = vmatpush1.msra.mxu0 %v905
  %2951 = vmatprep.subr.mxu0 %v908
  %2952 = vmatpush1.msra.mxu0 %v907
  %2953 = vmatprep.subr.mxu0 %v910
  %2954 = vmatpush1.msra.mxu0 %v909
  %2955 = vmatprep.subr.mxu0 %v912
  %2956 = vmatpush1.msra.mxu0 %v911
  %2957 = vmatprep.subr.mxu0 %v914
  %2958 = vmatpush1.msra.mxu0 %v913
  %2959 = vmatprep.subr.mxu0 %v916
  %2960 = vmatpush1.msra.mxu0 %v915
  %2961 = vmatprep.subr.mxu0 %v918
  %2962 = vmatpush1.msra.mxu0 %v917
  %2963 = vmatprep.subr.mxu0 %v920
  %2964 = vmatpush1.msra.mxu0 %v919
  %2965 = vmatprep.subr.mxu0 %v922
  %2966 = vmatpush1.msra.mxu0 %v921
  %2967 = vmatprep.subr.mxu0 %v924
  %2968 = vmatpush1.msra.mxu0 %v923
  %2969 = vmatprep.subr.mxu0 %v926
  %2970 = vmatpush1.msra.mxu0 %v925
  %2971 = vmatprep.subr.mxu0 %v928
  %2972 = vmatpush1.msra.mxu0 %v927
  %2973 = vmatprep.subr.mxu0 %v930
  %2974 = vmatpush1.msra.mxu0 %v929
  %2975 = vmatprep.subr.mxu0 %v932
  %2976 = vmatpush1.msra.mxu0 %v931
  %2977 = vmatprep.subr.mxu0 %v934
  %2978 = vmatpush1.msra.mxu0 %v933
  %2979 = vmatprep.subr.mxu0 %v936
  %2980 = vmatpush1.msra.mxu0 %v935
  %2981 = vmatprep.subr.mxu0 %v938
  %2982 = vmatpush1.msra.mxu0 %v937
  %2983 = vmatprep.subr.mxu0 %v1131
  %2984 = vmatpush1.msra.mxu0 %v1128
  %2985 = vmatprep.subr.mxu0 0.0
  %2986 = vmatpush1.msra.mxu0 0.0
  %2987 = vmatprep.subr.mxu0 0.0
  %2988 = vmatpush1.msra.mxu0 0.0
  %2989 = vmatprep.subr.mxu0 0.0
  %2990 = vmatpush1.msra.mxu0 0.0
  %2991 = vmatprep.subr.mxu0 0.0
  %2992 = vmatpush1.msra.mxu0 0.0
  %2993 = vmatprep.subr.mxu0 0.0
  %2994 = vmatpush1.msra.mxu0 0.0
  %2995 = vmatprep.subr.mxu0 0.0
  %2996 = vmatpush1.msra.mxu0 0.0
  %2997 = vmatprep.subr.mxu0 0.0
  %2998 = vmatpush1.msra.mxu0 0.0
  %2999 = vmatprep.subr.mxu0 0.0
  %3000 = vmatpush1.msra.mxu0 0.0
  %3001 = vmatprep.subr.mxu0 0.0
  %3002 = vmatpush1.msra.mxu0 0.0
  %3003 = vmatprep.subr.mxu0 0.0
  %3004 = vmatpush1.msra.mxu0 0.0
  %3005 = vmatprep.subr.mxu0 0.0
  %3006 = vmatpush1.msra.mxu0 0.0
  %3007 = vmatprep.subr.mxu0 0.0
  %3008 = vmatpush1.msra.mxu0 0.0
  %3009 = vmatprep.mubr.f32.mxu0 %v2854
  %3010 = vmatmul.mubr.f32.gmra.mrb[0].mxu0 %v2846
  %v3011 = vpop.f32.mrb[0].mxu0
  %v3012 = vadd.f32 0.0, %v3011
  %v3013 = vpop.f32.mrb[0].mxu0
  %v3014 = vadd.f32 0.0, %v3013
  %3015 = vdwg.mxu0
  %v3016 = vadd.f32 %v2943, %v3012
  %v3017 = vadd.f32 %v2944, %v3014
  %v3018 = vxor.u32 %v3016, 2147483648
  %v3019 = vxor.u32 %v3017, 2147483648
  %v3020 = vmul.f32 %v3018, 1.442695
  %v3021 = vpow.pop %v3020
  %v3022 = vmul.f32 %v3019, 1.442695
  %v3023 = vpow.pop %v3022
  %v3024 = vadd.f32 %v3021, 1.0
  %v3025 = vadd.f32 %v3023, 1.0
  %v3026 = vrcp.pop %v3024
  %v3027 = vmul.f32 1.0, %v3026
  %v3028 = vrcp.pop %v3025
  %v3029 = vmul.f32 1.0, %v3028
  %s3030 = smul.addr %s2848, 8
  %s3031 = scalar_lea.vmem [#allocation4], %s3030
  %v3032 = vld [vmem:[%s3031] sm:$0xff]
  %v3033 = vld [vmem:[%s3031 + $0x8] sm:$0xff]
  %3034 = vmatprep.subr.mxu0 %v943
  %3035 = vmatpush1.msra.mxu0 %v942
  %3036 = vmatprep.subr.mxu0 %v945
  %3037 = vmatpush1.msra.mxu0 %v944
  %3038 = vmatprep.subr.mxu0 %v947
  %3039 = vmatpush1.msra.mxu0 %v946
  %3040 = vmatprep.subr.mxu0 %v949
  %3041 = vmatpush1.msra.mxu0 %v948
  %3042 = vmatprep.subr.mxu0 %v951
  %3043 = vmatpush1.msra.mxu0 %v950
  %3044 = vmatprep.subr.mxu0 %v953
  %3045 = vmatpush1.msra.mxu0 %v952
  %3046 = vmatprep.subr.mxu0 %v955
  %3047 = vmatpush1.msra.mxu0 %v954
  %3048 = vmatprep.subr.mxu0 %v957
  %3049 = vmatpush1.msra.mxu0 %v956
  %3050 = vmatprep.subr.mxu0 %v959
  %3051 = vmatpush1.msra.mxu0 %v958
  %3052 = vmatprep.subr.mxu0 %v961
  %3053 = vmatpush1.msra.mxu0 %v960
  %3054 = vmatprep.subr.mxu0 %v963
  %3055 = vmatpush1.msra.mxu0 %v962
  %3056 = vmatprep.subr.mxu0 %v965
  %3057 = vmatpush1.msra.mxu0 %v964
  %3058 = vmatprep.subr.mxu0 %v967
  %3059 = vmatpush1.msra.mxu0 %v966
  %3060 = vmatprep.subr.mxu0 %v969
  %3061 = vmatpush1.msra.mxu0 %v968
  %3062 = vmatprep.subr.mxu0 %v971
  %3063 = vmatpush1.msra.mxu0 %v970
  %3064 = vmatprep.subr.mxu0 %v973
  %3065 = vmatpush1.msra.mxu0 %v972
  %3066 = vmatprep.subr.mxu0 %v975
  %3067 = vmatpush1.msra.mxu0 %v974
  %3068 = vmatprep.subr.mxu0 %v977
  %3069 = vmatpush1.msra.mxu0 %v976
  %3070 = vmatprep.subr.mxu0 %v979
  %3071 = vmatpush1.msra.mxu0 %v978
  %3072 = vmatprep.subr.mxu0 %v1226
  %3073 = vmatpush1.msra.mxu0 %v1223
  %3074 = vmatprep.subr.mxu0 0.0
  %3075 = vmatpush1.msra.mxu0 0.0
  %3076 = vmatprep.subr.mxu0 0.0
  %3077 = vmatpush1.msra.mxu0 0.0
  %3078 = vmatprep.subr.mxu0 0.0
  %3079 = vmatpush1.msra.mxu0 0.0
  %3080 = vmatprep.subr.mxu0 0.0
  %3081 = vmatpush1.msra.mxu0 0.0
  %3082 = vmatprep.subr.mxu0 0.0
  %3083 = vmatpush1.msra.mxu0 0.0
  %3084 = vmatprep.subr.mxu0 0.0
  %3085 = vmatpush1.msra.mxu0 0.0
  %3086 = vmatprep.subr.mxu0 0.0
  %3087 = vmatpush1.msra.mxu0 0.0
  %3088 = vmatprep.subr.mxu0 0.0
  %3089 = vmatpush1.msra.mxu0 0.0
  %3090 = vmatprep.subr.mxu0 0.0
  %3091 = vmatpush1.msra.mxu0 0.0
  %3092 = vmatprep.subr.mxu0 0.0
  %3093 = vmatpush1.msra.mxu0 0.0
  %3094 = vmatprep.subr.mxu0 0.0
  %3095 = vmatpush1.msra.mxu0 0.0
  %3096 = vmatprep.subr.mxu0 0.0
  %3097 = vmatpush1.msra.mxu0 0.0
  %3098 = vmatprep.mubr.f32.mxu0 %v2854
  %3099 = vmatmul.mubr.f32.gmra.mrb[0].mxu0 %v2846
  %v3100 = vpop.f32.mrb[0].mxu0
  %v3101 = vadd.f32 0.0, %v3100
  %v3102 = vpop.f32.mrb[0].mxu0
  %v3103 = vadd.f32 0.0, %v3102
  %3104 = vdwg.mxu0
  %v3105 = vadd.f32 %v3032, %v3101
  %v3106 = vadd.f32 %v3033, %v3103
  %v3107 = vtanh.pop %v3105
  %v3108 = vtanh.pop %v3106
  %s3109 = smul.addr %s2848, 8
  %s3110 = scalar_lea.vmem [#allocation5], %s3109
  %v3111 = vld [vmem:[%s3110] sm:$0xff]
  %v3112 = vld [vmem:[%s3110 + $0x8] sm:$0xff]
  %3113 = vmatprep.subr.mxu0 %v984
  %3114 = vmatpush1.msra.mxu0 %v983
  %3115 = vmatprep.subr.mxu0 %v986
  %3116 = vmatpush1.msra.mxu0 %v985
  %3117 = vmatprep.subr.mxu0 %v988
  %3118 = vmatpush1.msra.mxu0 %v987
  %3119 = vmatprep.subr.mxu0 %v990
  %3120 = vmatpush1.msra.mxu0 %v989
  %3121 = vmatprep.subr.mxu0 %v992
  %3122 = vmatpush1.msra.mxu0 %v991
  %3123 = vmatprep.subr.mxu0 %v994
  %3124 = vmatpush1.msra.mxu0 %v993
  %3125 = vmatprep.subr.mxu0 %v996
  %3126 = vmatpush1.msra.mxu0 %v995
  %3127 = vmatprep.subr.mxu0 %v998
  %3128 = vmatpush1.msra.mxu0 %v997
  %3129 = vmatprep.subr.mxu0 %v1000
  %3130 = vmatpush1.msra.mxu0 %v999
  %3131 = vmatprep.subr.mxu0 %v1002
  %3132 = vmatpush1.msra.mxu0 %v1001
  %3133 = vmatprep.subr.mxu0 %v1004
  %3134 = vmatpush1.msra.mxu0 %v1003
  %3135 = vmatprep.subr.mxu0 %v1006
  %3136 = vmatpush1.msra.mxu0 %v1005
  %3137 = vmatprep.subr.mxu0 %v1008
  %3138 = vmatpush1.msra.mxu0 %v1007
  %3139 = vmatprep.subr.mxu0 %v1010
  %3140 = vmatpush1.msra.mxu0 %v1009
  %3141 = vmatprep.subr.mxu0 %v1012
  %3142 = vmatpush1.msra.mxu0 %v1011
  %3143 = vmatprep.subr.mxu0 %v1014
  %3144 = vmatpush1.msra.mxu0 %v1013
  %3145 = vmatprep.subr.mxu0 %v1016
  %3146 = vmatpush1.msra.mxu0 %v1015
  %3147 = vmatprep.subr.mxu0 %v1018
  %3148 = vmatpush1.msra.mxu0 %v1017
  %3149 = vmatprep.subr.mxu0 %v1020
  %3150 = vmatpush1.msra.mxu0 %v1019
  %3151 = vmatprep.subr.mxu0 %v1311
  %3152 = vmatpush1.msra.mxu0 %v1308
  %3153 = vmatprep.subr.mxu0 0.0
  %3154 = vmatpush1.msra.mxu0 0.0
  %3155 = vmatprep.subr.mxu0 0.0
  %3156 = vmatpush1.msra.mxu0 0.0
  %3157 = vmatprep.subr.mxu0 0.0
  %3158 = vmatpush1.msra.mxu0 0.0
  %3159 = vmatprep.subr.mxu0 0.0
  %3160 = vmatpush1.msra.mxu0 0.0
  %3161 = vmatprep.subr.mxu0 0.0
  %3162 = vmatpush1.msra.mxu0 0.0
  %3163 = vmatprep.subr.mxu0 0.0
  %3164 = vmatpush1.msra.mxu0 0.0
  %3165 = vmatprep.subr.mxu0 0.0
  %3166 = vmatpush1.msra.mxu0 0.0
  %3167 = vmatprep.subr.mxu0 0.0
  %3168 = vmatpush1.msra.mxu0 0.0
  %3169 = vmatprep.subr.mxu0 0.0
  %3170 = vmatpush1.msra.mxu0 0.0
  %3171 = vmatprep.subr.mxu0 0.0
  %3172 = vmatpush1.msra.mxu0 0.0
  %3173 = vmatprep.subr.mxu0 0.0
  %3174 = vmatpush1.msra.mxu0 0.0
  %3175 = vmatprep.subr.mxu0 0.0
  %3176 = vmatpush1.msra.mxu0 0.0
  %3177 = vmatprep.mubr.f32.mxu0 %v2854
  %3178 = vmatmul.mubr.f32.gmra.mrb[0].mxu0 %v2846
  %v3179 = vpop.f32.mrb[0].mxu0
  %v3180 = vadd.f32 0.0, %v3179
  %v3181 = vpop.f32.mrb[0].mxu0
  %v3182 = vadd.f32 0.0, %v3181
  %3183 = vdwg.mxu0
  %v3184 = vadd.f32 %v3111, %v3180
  %v3185 = vadd.f32 %v3112, %v3182
  %v3186 = vxor.u32 %v3184, 2147483648
  %v3187 = vxor.u32 %v3185, 2147483648
  %v3188 = vmul.f32 %v3186, 1.442695
  %v3189 = vpow.pop %v3188
  %v3190 = vmul.f32 %v3187, 1.442695
  %v3191 = vpow.pop %v3190
  %v3192 = vadd.f32 %v3189, 1.0
  %v3193 = vadd.f32 %v3191, 1.0
  %v3194 = vrcp.pop %v3192
  %v3195 = vmul.f32 1.0, %v3194
  %v3196 = vrcp.pop %v3193
  %v3197 = vmul.f32 1.0, %v3196
  %v3198 = vmul.f32 %v3027, %v2842
  %v3199 = vmul.f32 %v3029, %v2843
  %v3200 = vmul.f32 %v2938, %v3107
  %v3201 = vmul.f32 %v2940, %v3108
  %v3202 = vadd.f32 %v3198, %v3200
  %v3203 = vadd.f32 %v3199, %v3201
  %v3204 = vtanh.pop %v3202
  %v3205 = vtanh.pop %v3203
  %v3206 = vmul.f32 %v3195, %v3204
  %v3207 = vmul.f32 %v3197, %v3205
  %s3208 = smul.u32 6, 2
  %s3209 = smul.addr %s3208, 8
  %s3210 = scalar_lea.vmem [#allocation2], %s3209
  %v3211 = vld [vmem:[%s3210] sm:$0xff]
  %v3212 = vld [vmem:[%s3210 + $0x8] sm:$0xff]
  %v3214 = vsel %vm223, %v3207, 0
  %3216 = vmatprep.subr.mxu0 %v861
  %3217 = vmatpush1.msra.mxu0 %v860
  %3218 = vmatprep.subr.mxu0 %v863
  %3219 = vmatpush1.msra.mxu0 %v862
  %3220 = vmatprep.subr.mxu0 %v865
  %3221 = vmatpush1.msra.mxu0 %v864
  %3222 = vmatprep.subr.mxu0 %v867
  %3223 = vmatpush1.msra.mxu0 %v866
  %3224 = vmatprep.subr.mxu0 %v869
  %3225 = vmatpush1.msra.mxu0 %v868
  %3226 = vmatprep.subr.mxu0 %v871
  %3227 = vmatpush1.msra.mxu0 %v870
  %3228 = vmatprep.subr.mxu0 %v873
  %3229 = vmatpush1.msra.mxu0 %v872
  %3230 = vmatprep.subr.mxu0 %v875
  %3231 = vmatpush1.msra.mxu0 %v874
  %3232 = vmatprep.subr.mxu0 %v877
  %3233 = vmatpush1.msra.mxu0 %v876
  %3234 = vmatprep.subr.mxu0 %v879
  %3235 = vmatpush1.msra.mxu0 %v878
  %3236 = vmatprep.subr.mxu0 %v881
  %3237 = vmatpush1.msra.mxu0 %v880
  %3238 = vmatprep.subr.mxu0 %v883
  %3239 = vmatpush1.msra.mxu0 %v882
  %3240 = vmatprep.subr.mxu0 %v885
  %3241 = vmatpush1.msra.mxu0 %v884
  %3242 = vmatprep.subr.mxu0 %v887
  %3243 = vmatpush1.msra.mxu0 %v886
  %3244 = vmatprep.subr.mxu0 %v889
  %3245 = vmatpush1.msra.mxu0 %v888
  %3246 = vmatprep.subr.mxu0 %v891
  %3247 = vmatpush1.msra.mxu0 %v890
  %3248 = vmatprep.subr.mxu0 %v893
  %3249 = vmatpush1.msra.mxu0 %v892
  %3250 = vmatprep.subr.mxu0 %v895
  %3251 = vmatpush1.msra.mxu0 %v894
  %3252 = vmatprep.subr.mxu0 %v897
  %3253 = vmatpush1.msra.mxu0 %v896
  %3254 = vmatprep.subr.mxu0 %v1036
  %3255 = vmatpush1.msra.mxu0 %v1033
  %3256 = vmatprep.subr.mxu0 0.0
  %3257 = vmatpush1.msra.mxu0 0.0
  %3258 = vmatprep.subr.mxu0 0.0
  %3259 = vmatpush1.msra.mxu0 0.0
  %3260 = vmatprep.subr.mxu0 0.0
  %3261 = vmatpush1.msra.mxu0 0.0
  %3262 = vmatprep.subr.mxu0 0.0
  %3263 = vmatpush1.msra.mxu0 0.0
  %3264 = vmatprep.subr.mxu0 0.0
  %3265 = vmatpush1.msra.mxu0 0.0
  %3266 = vmatprep.subr.mxu0 0.0
  %3267 = vmatpush1.msra.mxu0 0.0
  %3268 = vmatprep.subr.mxu0 0.0
  %3269 = vmatpush1.msra.mxu0 0.0
  %3270 = vmatprep.subr.mxu0 0.0
  %3271 = vmatpush1.msra.mxu0 0.0
  %3272 = vmatprep.subr.mxu0 0.0
  %3273 = vmatpush1.msra.mxu0 0.0
  %3274 = vmatprep.subr.mxu0 0.0
  %3275 = vmatpush1.msra.mxu0 0.0
  %3276 = vmatprep.subr.mxu0 0.0
  %3277 = vmatpush1.msra.mxu0 0.0
  %3278 = vmatprep.subr.mxu0 0.0
  %3279 = vmatpush1.msra.mxu0 0.0
  %3280 = vmatprep.mubr.f32.mxu0 %v3214
  %3281 = vmatmul.mubr.f32.gmra.mrb[0].mxu0 %v3206
  %v3282 = vpop.f32.mrb[0].mxu0
  %v3283 = vadd.f32 0.0, %v3282
  %v3284 = vpop.f32.mrb[0].mxu0
  %v3285 = vadd.f32 0.0, %v3284
  %3286 = vdwg.mxu0
  %v3287 = vadd.f32 %v3211, %v3283
  %v3288 = vadd.f32 %v3212, %v3285
  %v3289 = vxor.u32 %v3287, 2147483648
  %v3290 = vxor.u32 %v3288, 2147483648
  %v3291 = vmul.f32 %v3289, 1.442695
  %v3292 = vpow.pop %v3291
  %v3293 = vmul.f32 %v3290, 1.442695
  %v3294 = vpow.pop %v3293
  %v3295 = vadd.f32 %v3292, 1.0
  %v3296 = vadd.f32 %v3294, 1.0
  %v3297 = vrcp.pop %v3295
  %v3298 = vmul.f32 1.0, %v3297
  %v3299 = vrcp.pop %v3296
  %v3300 = vmul.f32 1.0, %v3299
  %s3301 = smul.addr %s3208, 8
  %s3302 = scalar_lea.vmem [#allocation3], %s3301
  %v3303 = vld [vmem:[%s3302] sm:$0xff]
  %v3304 = vld [vmem:[%s3302 + $0x8] sm:$0xff]
  %3305 = vmatprep.subr.mxu0 %v902
  %3306 = vmatpush1.msra.mxu0 %v901
  %3307 = vmatprep.subr.mxu0 %v904
  %3308 = vmatpush1.msra.mxu0 %v903
  %3309 = vmatprep.subr.mxu0 %v906
  %3310 = vmatpush1.msra.mxu0 %v905
  %3311 = vmatprep.subr.mxu0 %v908
  %3312 = vmatpush1.msra.mxu0 %v907
  %3313 = vmatprep.subr.mxu0 %v910
  %3314 = vmatpush1.msra.mxu0 %v909
  %3315 = vmatprep.subr.mxu0 %v912
  %3316 = vmatpush1.msra.mxu0 %v911
  %3317 = vmatprep.subr.mxu0 %v914
  %3318 = vmatpush1.msra.mxu0 %v913
  %3319 = vmatprep.subr.mxu0 %v916
  %3320 = vmatpush1.msra.mxu0 %v915
  %3321 = vmatprep.subr.mxu0 %v918
  %3322 = vmatpush1.msra.mxu0 %v917
  %3323 = vmatprep.subr.mxu0 %v920
  %3324 = vmatpush1.msra.mxu0 %v919
  %3325 = vmatprep.subr.mxu0 %v922
  %3326 = vmatpush1.msra.mxu0 %v921
  %3327 = vmatprep.subr.mxu0 %v924
  %3328 = vmatpush1.msra.mxu0 %v923
  %3329 = vmatprep.subr.mxu0 %v926
  %3330 = vmatpush1.msra.mxu0 %v925
  %3331 = vmatprep.subr.mxu0 %v928
  %3332 = vmatpush1.msra.mxu0 %v927
  %3333 = vmatprep.subr.mxu0 %v930
  %3334 = vmatpush1.msra.mxu0 %v929
  %3335 = vmatprep.subr.mxu0 %v932
  %3336 = vmatpush1.msra.mxu0 %v931
  %3337 = vmatprep.subr.mxu0 %v934
  %3338 = vmatpush1.msra.mxu0 %v933
  %3339 = vmatprep.subr.mxu0 %v936
  %3340 = vmatpush1.msra.mxu0 %v935
  %3341 = vmatprep.subr.mxu0 %v938
  %3342 = vmatpush1.msra.mxu0 %v937
  %3343 = vmatprep.subr.mxu0 %v1131
  %3344 = vmatpush1.msra.mxu0 %v1128
  %3345 = vmatprep.subr.mxu0 0.0
  %3346 = vmatpush1.msra.mxu0 0.0
  %3347 = vmatprep.subr.mxu0 0.0
  %3348 = vmatpush1.msra.mxu0 0.0
  %3349 = vmatprep.subr.mxu0 0.0
  %3350 = vmatpush1.msra.mxu0 0.0
  %3351 = vmatprep.subr.mxu0 0.0
  %3352 = vmatpush1.msra.mxu0 0.0
  %3353 = vmatprep.subr.mxu0 0.0
  %3354 = vmatpush1.msra.mxu0 0.0
  %3355 = vmatprep.subr.mxu0 0.0
  %3356 = vmatpush1.msra.mxu0 0.0
  %3357 = vmatprep.subr.mxu0 0.0
  %3358 = vmatpush1.msra.mxu0 0.0
  %3359 = vmatprep.subr.mxu0 0.0
  %3360 = vmatpush1.msra.mxu0 0.0
  %3361 = vmatprep.subr.mxu0 0.0
  %3362 = vmatpush1.msra.mxu0 0.0
  %3363 = vmatprep.subr.mxu0 0.0
  %3364 = vmatpush1.msra.mxu0 0.0
  %3365 = vmatprep.subr.mxu0 0.0
  %3366 = vmatpush1.msra.mxu0 0.0
  %3367 = vmatprep.subr.mxu0 0.0
  %3368 = vmatpush1.msra.mxu0 0.0
  %3369 = vmatprep.mubr.f32.mxu0 %v3214
  %3370 = vmatmul.mubr.f32.gmra.mrb[0].mxu0 %v3206
  %v3371 = vpop.f32.mrb[0].mxu0
  %v3372 = vadd.f32 0.0, %v3371
  %v3373 = vpop.f32.mrb[0].mxu0
  %v3374 = vadd.f32 0.0, %v3373
  %3375 = vdwg.mxu0
  %v3376 = vadd.f32 %v3303, %v3372
  %v3377 = vadd.f32 %v3304, %v3374
  %v3378 = vxor.u32 %v3376, 2147483648
  %v3379 = vxor.u32 %v3377, 2147483648
  %v3380 = vmul.f32 %v3378, 1.442695
  %v3381 = vpow.pop %v3380
  %v3382 = vmul.f32 %v3379, 1.442695
  %v3383 = vpow.pop %v3382
  %v3384 = vadd.f32 %v3381, 1.0
  %v3385 = vadd.f32 %v3383, 1.0
  %v3386 = vrcp.pop %v3384
  %v3387 = vmul.f32 1.0, %v3386
  %v3388 = vrcp.pop %v3385
  %v3389 = vmul.f32 1.0, %v3388
  %s3390 = smul.addr %s3208, 8
  %s3391 = scalar_lea.vmem [#allocation4], %s3390
  %v3392 = vld [vmem:[%s3391] sm:$0xff]
  %v3393 = vld [vmem:[%s3391 + $0x8] sm:$0xff]
  %3394 = vmatprep.subr.mxu0 %v943
  %3395 = vmatpush1.msra.mxu0 %v942
  %3396 = vmatprep.subr.mxu0 %v945
  %3397 = vmatpush1.msra.mxu0 %v944
  %3398 = vmatprep.subr.mxu0 %v947
  %3399 = vmatpush1.msra.mxu0 %v946
  %3400 = vmatprep.subr.mxu0 %v949
  %3401 = vmatpush1.msra.mxu0 %v948
  %3402 = vmatprep.subr.mxu0 %v951
  %3403 = vmatpush1.msra.mxu0 %v950
  %3404 = vmatprep.subr.mxu0 %v953
  %3405 = vmatpush1.msra.mxu0 %v952
  %3406 = vmatprep.subr.mxu0 %v955
  %3407 = vmatpush1.msra.mxu0 %v954
  %3408 = vmatprep.subr.mxu0 %v957
  %3409 = vmatpush1.msra.mxu0 %v956
  %3410 = vmatprep.subr.mxu0 %v959
  %3411 = vmatpush1.msra.mxu0 %v958
  %3412 = vmatprep.subr.mxu0 %v961
  %3413 = vmatpush1.msra.mxu0 %v960
  %3414 = vmatprep.subr.mxu0 %v963
  %3415 = vmatpush1.msra.mxu0 %v962
  %3416 = vmatprep.subr.mxu0 %v965
  %3417 = vmatpush1.msra.mxu0 %v964
  %3418 = vmatprep.subr.mxu0 %v967
  %3419 = vmatpush1.msra.mxu0 %v966
  %3420 = vmatprep.subr.mxu0 %v969
  %3421 = vmatpush1.msra.mxu0 %v968
  %3422 = vmatprep.subr.mxu0 %v971
  %3423 = vmatpush1.msra.mxu0 %v970
  %3424 = vmatprep.subr.mxu0 %v973
  %3425 = vmatpush1.msra.mxu0 %v972
  %3426 = vmatprep.subr.mxu0 %v975
  %3427 = vmatpush1.msra.mxu0 %v974
  %3428 = vmatprep.subr.mxu0 %v977
  %3429 = vmatpush1.msra.mxu0 %v976
  %3430 = vmatprep.subr.mxu0 %v979
  %3431 = vmatpush1.msra.mxu0 %v978
  %3432 = vmatprep.subr.mxu0 %v1226
  %3433 = vmatpush1.msra.mxu0 %v1223
  %3434 = vmatprep.subr.mxu0 0.0
  %3435 = vmatpush1.msra.mxu0 0.0
  %3436 = vmatprep.subr.mxu0 0.0
  %3437 = vmatpush1.msra.mxu0 0.0
  %3438 = vmatprep.subr.mxu0 0.0
  %3439 = vmatpush1.msra.mxu0 0.0
  %3440 = vmatprep.subr.mxu0 0.0
  %3441 = vmatpush1.msra.mxu0 0.0
  %3442 = vmatprep.subr.mxu0 0.0
  %3443 = vmatpush1.msra.mxu0 0.0
  %3444 = vmatprep.subr.mxu0 0.0
  %3445 = vmatpush1.msra.mxu0 0.0
  %3446 = vmatprep.subr.mxu0 0.0
  %3447 = vmatpush1.msra.mxu0 0.0
  %3448 = vmatprep.subr.mxu0 0.0
  %3449 = vmatpush1.msra.mxu0 0.0
  %3450 = vmatprep.subr.mxu0 0.0
  %3451 = vmatpush1.msra.mxu0 0.0
  %3452 = vmatprep.subr.mxu0 0.0
  %3453 = vmatpush1.msra.mxu0 0.0
  %3454 = vmatprep.subr.mxu0 0.0
  %3455 = vmatpush1.msra.mxu0 0.0
  %3456 = vmatprep.subr.mxu0 0.0
  %3457 = vmatpush1.msra.mxu0 0.0
  %3458 = vmatprep.mubr.f32.mxu0 %v3214
  %3459 = vmatmul.mubr.f32.gmra.mrb[0].mxu0 %v3206
  %v3460 = vpop.f32.mrb[0].mxu0
  %v3461 = vadd.f32 0.0, %v3460
  %v3462 = vpop.f32.mrb[0].mxu0
  %v3463 = vadd.f32 0.0, %v3462
  %3464 = vdwg.mxu0
  %v3465 = vadd.f32 %v3392, %v3461
  %v3466 = vadd.f32 %v3393, %v3463
  %v3467 = vtanh.pop %v3465
  %v3468 = vtanh.pop %v3466
  %s3469 = smul.addr %s3208, 8
  %s3470 = scalar_lea.vmem [#allocation5], %s3469
  %v3471 = vld [vmem:[%s3470] sm:$0xff]
  %v3472 = vld [vmem:[%s3470 + $0x8] sm:$0xff]
  %3473 = vmatprep.subr.mxu0 %v984
  %3474 = vmatpush1.msra.mxu0 %v983
  %3475 = vmatprep.subr.mxu0 %v986
  %3476 = vmatpush1.msra.mxu0 %v985
  %3477 = vmatprep.subr.mxu0 %v988
  %3478 = vmatpush1.msra.mxu0 %v987
  %3479 = vmatprep.subr.mxu0 %v990
  %3480 = vmatpush1.msra.mxu0 %v989
  %3481 = vmatprep.subr.mxu0 %v992
  %3482 = vmatpush1.msra.mxu0 %v991
  %3483 = vmatprep.subr.mxu0 %v994
  %3484 = vmatpush1.msra.mxu0 %v993
  %3485 = vmatprep.subr.mxu0 %v996
  %3486 = vmatpush1.msra.mxu0 %v995
  %3487 = vmatprep.subr.mxu0 %v998
  %3488 = vmatpush1.msra.mxu0 %v997
  %3489 = vmatprep.subr.mxu0 %v1000
  %3490 = vmatpush1.msra.mxu0 %v999
  %3491 = vmatprep.subr.mxu0 %v1002
  %3492 = vmatpush1.msra.mxu0 %v1001
  %3493 = vmatprep.subr.mxu0 %v1004
  %3494 = vmatpush1.msra.mxu0 %v1003
  %3495 = vmatprep.subr.mxu0 %v1006
  %3496 = vmatpush1.msra.mxu0 %v1005
  %3497 = vmatprep.subr.mxu0 %v1008
  %3498 = vmatpush1.msra.mxu0 %v1007
  %3499 = vmatprep.subr.mxu0 %v1010
  %3500 = vmatpush1.msra.mxu0 %v1009
  %3501 = vmatprep.subr.mxu0 %v1012
  %3502 = vmatpush1.msra.mxu0 %v1011
  %3503 = vmatprep.subr.mxu0 %v1014
  %3504 = vmatpush1.msra.mxu0 %v1013
  %3505 = vmatprep.subr.mxu0 %v1016
  %3506 = vmatpush1.msra.mxu0 %v1015
  %3507 = vmatprep.subr.mxu0 %v1018
  %3508 = vmatpush1.msra.mxu0 %v1017
  %3509 = vmatprep.subr.mxu0 %v1020
  %3510 = vmatpush1.msra.mxu0 %v1019
  %3511 = vmatprep.subr.mxu0 %v1311
  %3512 = vmatpush1.msra.mxu0 %v1308
  %3513 = vmatprep.subr.mxu0 0.0
  %3514 = vmatpush1.msra.mxu0 0.0
  %3515 = vmatprep.subr.mxu0 0.0
  %3516 = vmatpush1.msra.mxu0 0.0
  %3517 = vmatprep.subr.mxu0 0.0
  %3518 = vmatpush1.msra.mxu0 0.0
  %3519 = vmatprep.subr.mxu0 0.0
  %3520 = vmatpush1.msra.mxu0 0.0
  %3521 = vmatprep.subr.mxu0 0.0
  %3522 = vmatpush1.msra.mxu0 0.0
  %3523 = vmatprep.subr.mxu0 0.0
  %3524 = vmatpush1.msra.mxu0 0.0
  %3525 = vmatprep.subr.mxu0 0.0
  %3526 = vmatpush1.msra.mxu0 0.0
  %3527 = vmatprep.subr.mxu0 0.0
  %3528 = vmatpush1.msra.mxu0 0.0
  %3529 = vmatprep.subr.mxu0 0.0
  %3530 = vmatpush1.msra.mxu0 0.0
  %3531 = vmatprep.subr.mxu0 0.0
  %3532 = vmatpush1.msra.mxu0 0.0
  %3533 = vmatprep.subr.mxu0 0.0
  %3534 = vmatpush1.msra.mxu0 0.0
  %3535 = vmatprep.subr.mxu0 0.0
  %3536 = vmatpush1.msra.mxu0 0.0
  %3537 = vmatprep.mubr.f32.mxu0 %v3214
  %3538 = vmatmul.mubr.f32.gmra.mrb[0].mxu0 %v3206
  %v3539 = vpop.f32.mrb[0].mxu0
  %v3540 = vadd.f32 0.0, %v3539
  %v3541 = vpop.f32.mrb[0].mxu0
  %v3542 = vadd.f32 0.0, %v3541
  %3543 = vdwg.mxu0
  %v3544 = vadd.f32 %v3471, %v3540
  %v3545 = vadd.f32 %v3472, %v3542
  %v3546 = vxor.u32 %v3544, 2147483648
  %v3547 = vxor.u32 %v3545, 2147483648
  %v3548 = vmul.f32 %v3546, 1.442695
  %v3549 = vpow.pop %v3548
  %v3550 = vmul.f32 %v3547, 1.442695
  %v3551 = vpow.pop %v3550
  %v3552 = vadd.f32 %v3549, 1.0
  %v3553 = vadd.f32 %v3551, 1.0
  %v3554 = vrcp.pop %v3552
  %v3555 = vmul.f32 1.0, %v3554
  %v3556 = vrcp.pop %v3553
  %v3557 = vmul.f32 1.0, %v3556
  %v3558 = vmul.f32 %v3387, %v3202
  %v3559 = vmul.f32 %v3389, %v3203
  %v3560 = vmul.f32 %v3298, %v3467
  %v3561 = vmul.f32 %v3300, %v3468
  %v3562 = vadd.f32 %v3558, %v3560
  %v3563 = vadd.f32 %v3559, %v3561
  %v3564 = vtanh.pop %v3562
  %v3565 = vtanh.pop %v3563
  %v3566 = vmul.f32 %v3555, %v3564
  %v3567 = vmul.f32 %v3557, %v3565
  %s3568 = smul.u32 7, 2
  %s3569 = smul.addr %s3568, 8
  %s3570 = scalar_lea.vmem [#allocation2], %s3569
  %v3571 = vld [vmem:[%s3570] sm:$0xff]
  %v3572 = vld [vmem:[%s3570 + $0x8] sm:$0xff]
  %v3574 = vsel %vm223, %v3567, 0
  %3576 = vmatprep.subr.mxu0 %v861
  %3577 = vmatpush1.msra.mxu0 %v860
  %3578 = vmatprep.subr.mxu0 %v863
  %3579 = vmatpush1.msra.mxu0 %v862
  %3580 = vmatprep.subr.mxu0 %v865
  %3581 = vmatpush1.msra.mxu0 %v864
  %3582 = vmatprep.subr.mxu0 %v867
  %3583 = vmatpush1.msra.mxu0 %v866
  %3584 = vmatprep.subr.mxu0 %v869
  %3585 = vmatpush1.msra.mxu0 %v868
  %3586 = vmatprep.subr.mxu0 %v871
  %3587 = vmatpush1.msra.mxu0 %v870
  %3588 = vmatprep.subr.mxu0 %v873
  %3589 = vmatpush1.msra.mxu0 %v872
  %3590 = vmatprep.subr.mxu0 %v875
  %3591 = vmatpush1.msra.mxu0 %v874
  %3592 = vmatprep.subr.mxu0 %v877
  %3593 = vmatpush1.msra.mxu0 %v876
  %3594 = vmatprep.subr.mxu0 %v879
  %3595 = vmatpush1.msra.mxu0 %v878
  %3596 = vmatprep.subr.mxu0 %v881
  %3597 = vmatpush1.msra.mxu0 %v880
  %3598 = vmatprep.subr.mxu0 %v883
  %3599 = vmatpush1.msra.mxu0 %v882
  %3600 = vmatprep.subr.mxu0 %v885
  %3601 = vmatpush1.msra.mxu0 %v884
  %3602 = vmatprep.subr.mxu0 %v887
  %3603 = vmatpush1.msra.mxu0 %v886
  %3604 = vmatprep.subr.mxu0 %v889
  %3605 = vmatpush1.msra.mxu0 %v888
  %3606 = vmatprep.subr.mxu0 %v891
  %3607 = vmatpush1.msra.mxu0 %v890
  %3608 = vmatprep.subr.mxu0 %v893
  %3609 = vmatpush1.msra.mxu0 %v892
  %3610 = vmatprep.subr.mxu0 %v895
  %3611 = vmatpush1.msra.mxu0 %v894
  %3612 = vmatprep.subr.mxu0 %v897
  %3613 = vmatpush1.msra.mxu0 %v896
  %3614 = vmatprep.subr.mxu0 %v1036
  %3615 = vmatpush1.msra.mxu0 %v1033
  %3616 = vmatprep.subr.mxu0 0.0
  %3617 = vmatpush1.msra.mxu0 0.0
  %3618 = vmatprep.subr.mxu0 0.0
  %3619 = vmatpush1.msra.mxu0 0.0
  %3620 = vmatprep.subr.mxu0 0.0
  %3621 = vmatpush1.msra.mxu0 0.0
  %3622 = vmatprep.subr.mxu0 0.0
  %3623 = vmatpush1.msra.mxu0 0.0
  %3624 = vmatprep.subr.mxu0 0.0
  %3625 = vmatpush1.msra.mxu0 0.0
  %3626 = vmatprep.subr.mxu0 0.0
  %3627 = vmatpush1.msra.mxu0 0.0
  %3628 = vmatprep.subr.mxu0 0.0
  %3629 = vmatpush1.msra.mxu0 0.0
  %3630 = vmatprep.subr.mxu0 0.0
  %3631 = vmatpush1.msra.mxu0 0.0
  %3632 = vmatprep.subr.mxu0 0.0
  %3633 = vmatpush1.msra.mxu0 0.0
  %3634 = vmatprep.subr.mxu0 0.0
  %3635 = vmatpush1.msra.mxu0 0.0
  %3636 = vmatprep.subr.mxu0 0.0
  %3637 = vmatpush1.msra.mxu0 0.0
  %3638 = vmatprep.subr.mxu0 0.0
  %3639 = vmatpush1.msra.mxu0 0.0
  %3640 = vmatprep.mubr.f32.mxu0 %v3574
  %3641 = vmatmul.mubr.f32.gmra.mrb[0].mxu0 %v3566
  %v3642 = vpop.f32.mrb[0].mxu0
  %v3643 = vadd.f32 0.0, %v3642
  %v3644 = vpop.f32.mrb[0].mxu0
  %v3645 = vadd.f32 0.0, %v3644
  %3646 = vdwg.mxu0
  %v3647 = vadd.f32 %v3571, %v3643
  %v3648 = vadd.f32 %v3572, %v3645
  %v3649 = vxor.u32 %v3647, 2147483648
  %v3650 = vxor.u32 %v3648, 2147483648
  %v3651 = vmul.f32 %v3649, 1.442695
  %v3652 = vpow.pop %v3651
  %v3653 = vmul.f32 %v3650, 1.442695
  %v3654 = vpow.pop %v3653
  %v3655 = vadd.f32 %v3652, 1.0
  %v3656 = vadd.f32 %v3654, 1.0
  %v3657 = vrcp.pop %v3655
  %v3658 = vmul.f32 1.0, %v3657
  %v3659 = vrcp.pop %v3656
  %v3660 = vmul.f32 1.0, %v3659
  %s3661 = smul.addr %s3568, 8
  %s3662 = scalar_lea.vmem [#allocation3], %s3661
  %v3663 = vld [vmem:[%s3662] sm:$0xff]
  %v3664 = vld [vmem:[%s3662 + $0x8] sm:$0xff]
  %3665 = vmatprep.subr.mxu0 %v902
  %3666 = vmatpush1.msra.mxu0 %v901
  %3667 = vmatprep.subr.mxu0 %v904
  %3668 = vmatpush1.msra.mxu0 %v903
  %3669 = vmatprep.subr.mxu0 %v906
  %3670 = vmatpush1.msra.mxu0 %v905
  %3671 = vmatprep.subr.mxu0 %v908
  %3672 = vmatpush1.msra.mxu0 %v907
  %3673 = vmatprep.subr.mxu0 %v910
  %3674 = vmatpush1.msra.mxu0 %v909
  %3675 = vmatprep.subr.mxu0 %v912
  %3676 = vmatpush1.msra.mxu0 %v911
  %3677 = vmatprep.subr.mxu0 %v914
  %3678 = vmatpush1.msra.mxu0 %v913
  %3679 = vmatprep.subr.mxu0 %v916
  %3680 = vmatpush1.msra.mxu0 %v915
  %3681 = vmatprep.subr.mxu0 %v918
  %3682 = vmatpush1.msra.mxu0 %v917
  %3683 = vmatprep.subr.mxu0 %v920
  %3684 = vmatpush1.msra.mxu0 %v919
  %3685 = vmatprep.subr.mxu0 %v922
  %3686 = vmatpush1.msra.mxu0 %v921
  %3687 = vmatprep.subr.mxu0 %v924
  %3688 = vmatpush1.msra.mxu0 %v923
  %3689 = vmatprep.subr.mxu0 %v926
  %3690 = vmatpush1.msra.mxu0 %v925
  %3691 = vmatprep.subr.mxu0 %v928
  %3692 = vmatpush1.msra.mxu0 %v927
  %3693 = vmatprep.subr.mxu0 %v930
  %3694 = vmatpush1.msra.mxu0 %v929
  %3695 = vmatprep.subr.mxu0 %v932
  %3696 = vmatpush1.msra.mxu0 %v931
  %3697 = vmatprep.subr.mxu0 %v934
  %3698 = vmatpush1.msra.mxu0 %v933
  %3699 = vmatprep.subr.mxu0 %v936
  %3700 = vmatpush1.msra.mxu0 %v935
  %3701 = vmatprep.subr.mxu0 %v938
  %3702 = vmatpush1.msra.mxu0 %v937
  %3703 = vmatprep.subr.mxu0 %v1131
  %3704 = vmatpush1.msra.mxu0 %v1128
  %3705 = vmatprep.subr.mxu0 0.0
  %3706 = vmatpush1.msra.mxu0 0.0
  %3707 = vmatprep.subr.mxu0 0.0
  %3708 = vmatpush1.msra.mxu0 0.0
  %3709 = vmatprep.subr.mxu0 0.0
  %3710 = vmatpush1.msra.mxu0 0.0
  %3711 = vmatprep.subr.mxu0 0.0
  %3712 = vmatpush1.msra.mxu0 0.0
  %3713 = vmatprep.subr.mxu0 0.0
  %3714 = vmatpush1.msra.mxu0 0.0
  %3715 = vmatprep.subr.mxu0 0.0
  %3716 = vmatpush1.msra.mxu0 0.0
  %3717 = vmatprep.subr.mxu0 0.0
  %3718 = vmatpush1.msra.mxu0 0.0
  %3719 = vmatprep.subr.mxu0 0.0
  %3720 = vmatpush1.msra.mxu0 0.0
  %3721 = vmatprep.subr.mxu0 0.0
  %3722 = vmatpush1.msra.mxu0 0.0
  %3723 = vmatprep.subr.mxu0 0.0
  %3724 = vmatpush1.msra.mxu0 0.0
  %3725 = vmatprep.subr.mxu0 0.0
  %3726 = vmatpush1.msra.mxu0 0.0
  %3727 = vmatprep.subr.mxu0 0.0
  %3728 = vmatpush1.msra.mxu0 0.0
  %3729 = vmatprep.mubr.f32.mxu0 %v3574
  %3730 = vmatmul.mubr.f32.gmra.mrb[0].mxu0 %v3566
  %v3731 = vpop.f32.mrb[0].mxu0
  %v3732 = vadd.f32 0.0, %v3731
  %v3733 = vpop.f32.mrb[0].mxu0
  %v3734 = vadd.f32 0.0, %v3733
  %3735 = vdwg.mxu0
  %v3736 = vadd.f32 %v3663, %v3732
  %v3737 = vadd.f32 %v3664, %v3734
  %v3738 = vxor.u32 %v3736, 2147483648
  %v3739 = vxor.u32 %v3737, 2147483648
  %v3740 = vmul.f32 %v3738, 1.442695
  %v3741 = vpow.pop %v3740
  %v3742 = vmul.f32 %v3739, 1.442695
  %v3743 = vpow.pop %v3742
  %v3744 = vadd.f32 %v3741, 1.0
  %v3745 = vadd.f32 %v3743, 1.0
  %v3746 = vrcp.pop %v3744
  %v3747 = vmul.f32 1.0, %v3746
  %v3748 = vrcp.pop %v3745
  %v3749 = vmul.f32 1.0, %v3748
  %s3750 = smul.addr %s3568, 8
  %s3751 = scalar_lea.vmem [#allocation4], %s3750
  %v3752 = vld [vmem:[%s3751] sm:$0xff]
  %v3753 = vld [vmem:[%s3751 + $0x8] sm:$0xff]
  %3754 = vmatprep.subr.mxu0 %v943
  %3755 = vmatpush1.msra.mxu0 %v942
  %3756 = vmatprep.subr.mxu0 %v945
  %3757 = vmatpush1.msra.mxu0 %v944
  %3758 = vmatprep.subr.mxu0 %v947
  %3759 = vmatpush1.msra.mxu0 %v946
  %3760 = vmatprep.subr.mxu0 %v949
  %3761 = vmatpush1.msra.mxu0 %v948
  %3762 = vmatprep.subr.mxu0 %v951
  %3763 = vmatpush1.msra.mxu0 %v950
  %3764 = vmatprep.subr.mxu0 %v953
  %3765 = vmatpush1.msra.mxu0 %v952
  %3766 = vmatprep.subr.mxu0 %v955
  %3767 = vmatpush1.msra.mxu0 %v954
  %3768 = vmatprep.subr.mxu0 %v957
  %3769 = vmatpush1.msra.mxu0 %v956
  %3770 = vmatprep.subr.mxu0 %v959
  %3771 = vmatpush1.msra.mxu0 %v958
  %3772 = vmatprep.subr.mxu0 %v961
  %3773 = vmatpush1.msra.mxu0 %v960
  %3774 = vmatprep.subr.mxu0 %v963
  %3775 = vmatpush1.msra.mxu0 %v962
  %3776 = vmatprep.subr.mxu0 %v965
  %3777 = vmatpush1.msra.mxu0 %v964
  %3778 = vmatprep.subr.mxu0 %v967
  %3779 = vmatpush1.msra.mxu0 %v966
  %3780 = vmatprep.subr.mxu0 %v969
  %3781 = vmatpush1.msra.mxu0 %v968
  %3782 = vmatprep.subr.mxu0 %v971
  %3783 = vmatpush1.msra.mxu0 %v970
  %3784 = vmatprep.subr.mxu0 %v973
  %3785 = vmatpush1.msra.mxu0 %v972
  %3786 = vmatprep.subr.mxu0 %v975
  %3787 = vmatpush1.msra.mxu0 %v974
  %3788 = vmatprep.subr.mxu0 %v977
  %3789 = vmatpush1.msra.mxu0 %v976
  %3790 = vmatprep.subr.mxu0 %v979
  %3791 = vmatpush1.msra.mxu0 %v978
  %3792 = vmatprep.subr.mxu0 %v1226
  %3793 = vmatpush1.msra.mxu0 %v1223
  %3794 = vmatprep.subr.mxu0 0.0
  %3795 = vmatpush1.msra.mxu0 0.0
  %3796 = vmatprep.subr.mxu0 0.0
  %3797 = vmatpush1.msra.mxu0 0.0
  %3798 = vmatprep.subr.mxu0 0.0
  %3799 = vmatpush1.msra.mxu0 0.0
  %3800 = vmatprep.subr.mxu0 0.0
  %3801 = vmatpush1.msra.mxu0 0.0
  %3802 = vmatprep.subr.mxu0 0.0
  %3803 = vmatpush1.msra.mxu0 0.0
  %3804 = vmatprep.subr.mxu0 0.0
  %3805 = vmatpush1.msra.mxu0 0.0
  %3806 = vmatprep.subr.mxu0 0.0
  %3807 = vmatpush1.msra.mxu0 0.0
  %3808 = vmatprep.subr.mxu0 0.0
  %3809 = vmatpush1.msra.mxu0 0.0
  %3810 = vmatprep.subr.mxu0 0.0
  %3811 = vmatpush1.msra.mxu0 0.0
  %3812 = vmatprep.subr.mxu0 0.0
  %3813 = vmatpush1.msra.mxu0 0.0
  %3814 = vmatprep.subr.mxu0 0.0
  %3815 = vmatpush1.msra.mxu0 0.0
  %3816 = vmatprep.subr.mxu0 0.0
  %3817 = vmatpush1.msra.mxu0 0.0
  %3818 = vmatprep.mubr.f32.mxu0 %v3574
  %3819 = vmatmul.mubr.f32.gmra.mrb[0].mxu0 %v3566
  %v3820 = vpop.f32.mrb[0].mxu0
  %v3821 = vadd.f32 0.0, %v3820
  %v3822 = vpop.f32.mrb[0].mxu0
  %v3823 = vadd.f32 0.0, %v3822
  %3824 = vdwg.mxu0
  %v3825 = vadd.f32 %v3752, %v3821
  %v3826 = vadd.f32 %v3753, %v3823
  %v3827 = vtanh.pop %v3825
  %v3828 = vtanh.pop %v3826
  %s3829 = smul.addr %s3568, 8
  %s3830 = scalar_lea.vmem [#allocation5], %s3829
  %v3831 = vld [vmem:[%s3830] sm:$0xff]
  %v3832 = vld [vmem:[%s3830 + $0x8] sm:$0xff]
  %3833 = vmatprep.subr.mxu0 %v984
  %3834 = vmatpush1.msra.mxu0 %v983
  %3835 = vmatprep.subr.mxu0 %v986
  %3836 = vmatpush1.msra.mxu0 %v985
  %3837 = vmatprep.subr.mxu0 %v988
  %3838 = vmatpush1.msra.mxu0 %v987
  %3839 = vmatprep.subr.mxu0 %v990
  %3840 = vmatpush1.msra.mxu0 %v989
  %3841 = vmatprep.subr.mxu0 %v992
  %3842 = vmatpush1.msra.mxu0 %v991
  %3843 = vmatprep.subr.mxu0 %v994
  %3844 = vmatpush1.msra.mxu0 %v993
  %3845 = vmatprep.subr.mxu0 %v996
  %3846 = vmatpush1.msra.mxu0 %v995
  %3847 = vmatprep.subr.mxu0 %v998
  %3848 = vmatpush1.msra.mxu0 %v997
  %3849 = vmatprep.subr.mxu0 %v1000
  %3850 = vmatpush1.msra.mxu0 %v999
  %3851 = vmatprep.subr.mxu0 %v1002
  %3852 = vmatpush1.msra.mxu0 %v1001
  %3853 = vmatprep.subr.mxu0 %v1004
  %3854 = vmatpush1.msra.mxu0 %v1003
  %3855 = vmatprep.subr.mxu0 %v1006
  %3856 = vmatpush1.msra.mxu0 %v1005
  %3857 = vmatprep.subr.mxu0 %v1008
  %3858 = vmatpush1.msra.mxu0 %v1007
  %3859 = vmatprep.subr.mxu0 %v1010
  %3860 = vmatpush1.msra.mxu0 %v1009
  %3861 = vmatprep.subr.mxu0 %v1012
  %3862 = vmatpush1.msra.mxu0 %v1011
  %3863 = vmatprep.subr.mxu0 %v1014
  %3864 = vmatpush1.msra.mxu0 %v1013
  %3865 = vmatprep.subr.mxu0 %v1016
  %3866 = vmatpush1.msra.mxu0 %v1015
  %3867 = vmatprep.subr.mxu0 %v1018
  %3868 = vmatpush1.msra.mxu0 %v1017
  %3869 = vmatprep.subr.mxu0 %v1020
  %3870 = vmatpush1.msra.mxu0 %v1019
  %3871 = vmatprep.subr.mxu0 %v1311
  %3872 = vmatpush1.msra.mxu0 %v1308
  %3873 = vmatprep.subr.mxu0 0.0
  %3874 = vmatpush1.msra.mxu0 0.0
  %3875 = vmatprep.subr.mxu0 0.0
  %3876 = vmatpush1.msra.mxu0 0.0
  %3877 = vmatprep.subr.mxu0 0.0
  %3878 = vmatpush1.msra.mxu0 0.0
  %3879 = vmatprep.subr.mxu0 0.0
  %3880 = vmatpush1.msra.mxu0 0.0
  %3881 = vmatprep.subr.mxu0 0.0
  %3882 = vmatpush1.msra.mxu0 0.0
  %3883 = vmatprep.subr.mxu0 0.0
  %3884 = vmatpush1.msra.mxu0 0.0
  %3885 = vmatprep.subr.mxu0 0.0
  %3886 = vmatpush1.msra.mxu0 0.0
  %3887 = vmatprep.subr.mxu0 0.0
  %3888 = vmatpush1.msra.mxu0 0.0
  %3889 = vmatprep.subr.mxu0 0.0
  %3890 = vmatpush1.msra.mxu0 0.0
  %3891 = vmatprep.subr.mxu0 0.0
  %3892 = vmatpush1.msra.mxu0 0.0
  %3893 = vmatprep.subr.mxu0 0.0
  %3894 = vmatpush1.msra.mxu0 0.0
  %3895 = vmatprep.subr.mxu0 0.0
  %3896 = vmatpush1.msra.mxu0 0.0
  %3897 = vmatprep.mubr.f32.mxu0 %v3574
  %3898 = vmatmul.mubr.f32.gmra.mrb[0].mxu0 %v3566
  %v3899 = vpop.f32.mrb[0].mxu0
  %v3900 = vadd.f32 0.0, %v3899
  %v3901 = vpop.f32.mrb[0].mxu0
  %v3902 = vadd.f32 0.0, %v3901
  %3903 = vdwg.mxu0
  %v3904 = vadd.f32 %v3831, %v3900
  %v3905 = vadd.f32 %v3832, %v3902
  %v3906 = vxor.u32 %v3904, 2147483648
  %v3907 = vxor.u32 %v3905, 2147483648
  %v3908 = vmul.f32 %v3906, 1.442695
  %v3909 = vpow.pop %v3908
  %v3910 = vmul.f32 %v3907, 1.442695
  %v3911 = vpow.pop %v3910
  %v3912 = vadd.f32 %v3909, 1.0
  %v3913 = vadd.f32 %v3911, 1.0
  %v3914 = vrcp.pop %v3912
  %v3915 = vmul.f32 1.0, %v3914
  %v3916 = vrcp.pop %v3913
  %v3917 = vmul.f32 1.0, %v3916
  %v3918 = vmul.f32 %v3747, %v3562
  %v3919 = vmul.f32 %v3749, %v3563
  %v3920 = vmul.f32 %v3658, %v3827
  %v3921 = vmul.f32 %v3660, %v3828
  %v3922 = vadd.f32 %v3918, %v3920
  %v3923 = vadd.f32 %v3919, %v3921
  %v3924 = vtanh.pop %v3922
  %v3925 = vtanh.pop %v3923
  %v3926 = vmul.f32 %v3915, %v3924
  %v3927 = vmul.f32 %v3917, %v3925
  %3928 = vst [vmem:[%s4] sm:$0xff] %v3926
  %3929 = vst.msk [vmem:[%s4 + $0x8] sm:$0xff] %vm223, %v3927
  // Predicated region
  $region18: #{lstm_classifier_forward.1} parent=0 // pred_check
    _
  $region19: #{lstm_classifier_forward.1} parent=0 // pred_check_branch
    %3931 = sbr.rel (0) target = $region21
  $region20: #{lstm_classifier_forward.1} parent=0 // pred_region
    _
  $region21: #{lstm_classifier_forward.1} parent=0 // pred_fallthru
    _
  // Predicated region
  $region22: #{lstm_classifier_forward.1} parent=0 // pred_check
    _
  $region23: #{lstm_classifier_forward.1} parent=0 // pred_check_branch
    %3933 = sbr.rel (0) target = $region25
  $region24: #{lstm_classifier_forward.1} parent=0 // pred_region
    _
  $region25: #{lstm_classifier_forward.1} parent=0 // pred_fallthru
    _

</llo_original>
